<compile_context>
chip_gen: v6e
topology: v6e:2x2x1
jax: 0.10.0
libtpu: 0.0.40
codegen_flags: <defaults>
</compile_context>

<pallas_src>
import functools

import jax
import jax.numpy as jnp
from jax import lax
from jax.experimental import pallas as pl
from jax.experimental.pallas import tpu as pltpu

BN_EPS = 1e-5
BIG = 1e30  # "infinite" score for masked / already-selected pairs


def _silu(v):
    return v * jax.nn.sigmoid(v)


def _pad_up(v, m):
    return ((int(v) + m - 1) // m) * m


# ---------------------------------------------------------------------------------------------
# Phase A: kNN selection + pre-BN edge features + shifted BatchNorm partial sums (per row tile).
# ---------------------------------------------------------------------------------------------
def _phase_a_kernel(K, x_all_ref, x_t_ref, bcol_ref, brow_ref, w1a_ref, w1b_ref, b1_ref,
                    h_ref, ps1_ref, ps2_ref):
    x_all = x_all_ref[...]                                    # [N, C]  neighbour-source rows
    x_t = x_t_ref[...]                                        # [TM, C] query rows of this tile
    TM, C = x_t.shape
    N = x_all.shape[0]
    F = w1a_ref.shape[1]

    # Squared distances via the Gram matrix (||x_i||^2 kept so magnitudes match the reference;
    # the argmin is unchanged either way).  Gram-based distances can lose precision for nearly
    # identical far-from-origin points; acceptable at the module's 1e-3 tolerance.
    gram = lax.dot_general(x_t, x_all, (((1,), (1,)), ((), ())),
                           preferred_element_type=jnp.float32)            # [TM, N] <x_i, x_j>
    n2_j = lax.dot_general(jnp.ones((1, C), jnp.float32), x_all * x_all,
                           (((1,), (1,)), ((), ())),
                           preferred_element_type=jnp.float32)            # [1, N]  ||x_j||^2
    n2_i = jnp.sum(x_t * x_t, axis=1, keepdims=True)                      # [TM, 1] ||x_i||^2
    score = n2_i + (n2_j - 2.0 * gram)
    same_batch = bcol_ref[...] == brow_ref[...]                           # [TM, N] int32 compare
    score = jnp.where(same_batch, score, BIG)

    # Hoisted edge-linear pieces:
    #   h = x_i@W1a + (x_j - x_i)@W1b + b1 = (x_i@W1a - x_i@W1b + b1) + gather_j(x@W1b)
    w1a = w1a_ref[...]
    w1b = w1b_ref[...]
    b1 = b1_ref[...]                                                      # [1, F]
    xa_t = jnp.dot(x_t, w1a, preferred_element_type=jnp.float32)          # [TM, F]
    xb_t = jnp.dot(x_t, w1b, preferred_element_type=jnp.float32)          # [TM, F]
    base = xa_t - xb_t + b1                                               # [TM, F]

    xb = jnp.dot(x_all, w1b, preferred_element_type=jnp.float32)          # [N, F]  gather source
    # Exact bf16 hi/lo split: the K one-hot gather matmuls run on the bf16-native MXU instead of
    # an ~3x-emulated f32 matmul; reconstruction error ~1e-5 relative.
    xb_hi = xb.astype(jnp.bfloat16)
    xb_lo = (xb - xb_hi.astype(jnp.float32)).astype(jnp.bfloat16)

    def select_body(m, carry):
        scur, s1, s2 = carry
        col_idx = lax.broadcasted_iota(jnp.int32, (TM, N), 1)             # regenerated: cheap iota
        minval = jnp.min(scur, axis=1, keepdims=True)                     # [TM, 1]
        cand = jnp.where(scur <= minval, col_idx, N)                      # tie-break: smallest index
        sel = jnp.min(cand, axis=1, keepdims=True)                        # [TM, 1] chosen neighbour
        onehot = col_idx == sel                                           # [TM, N]
        oh = onehot.astype(jnp.bfloat16)                                  # exact 0/1 in bf16
        xj = (jnp.dot(oh, xb_hi, preferred_element_type=jnp.float32)
              + jnp.dot(oh, xb_lo, preferred_element_type=jnp.float32))   # [TM, F] gathered x_j@W1b
        h_m = base + xj
        h_ref[m] = h_m                                                    # pre-BN edge features
        d = h_m - b1                                                      # shifted stats, proxy = b1
        s1 = s1 + jnp.sum(d, axis=0, keepdims=True)
        s2 = s2 + jnp.sum(d * d, axis=0, keepdims=True)
        scur = jnp.where(onehot, BIG, scur)                               # drop selected neighbour
        return scur, s1, s2

    zf = jnp.zeros((1, F), jnp.float32)
    # Heavy MXU body carrying a [TM, N] slab: kept rolled (loop overhead amortized by the matmuls).
    _, s1, s2 = lax.fori_loop(0, K, select_body, (score, zf, zf))
    ps1_ref[...] = s1.reshape(1, 1, F)
    ps2_ref[...] = s2.reshape(1, 1, F)


# ---------------------------------------------------------------------------------------------
# Phase B: BN + silu on h, gate linear as a lane reduction (raw, pre-gate-BN values).
# ---------------------------------------------------------------------------------------------
def _phase_b_kernel(K, h_ref, scale_ref, shift_ref, wg_ref, g_ref):
    scale = scale_ref[...]
    shift = shift_ref[...]
    wg = wg_ref[...]                                                      # [1, F]

    def body(m, carry):
        hact = _silu(h_ref[m] * scale + shift)                            # [TM, F] BN1 + silu
        # Gate linear as a broadcast-multiply + lane reduce (keeps the MXU free).
        g_ref[m] = jnp.sum(hact * wg, axis=-1, keepdims=True)             # [TM, 1]
        return carry

    lax.fori_loop(0, K, body, 0, unroll=True)


# ---------------------------------------------------------------------------------------------
# Phase C: BN + silu on h (recomputed) and softmax-weighted aggregation over the k edges.
# ---------------------------------------------------------------------------------------------
def _phase_c_kernel(K, h_ref, alpha_ref, scale_ref, shift_ref, out_ref):
    scale = scale_ref[...]
    shift = shift_ref[...]
    TM, F = out_ref.shape

    def body(m, acc):
        hact = _silu(h_ref[m] * scale + shift)                            # [TM, F]
        return acc + alpha_ref[m] * hact                                  # alpha_ref[m]: [TM, 1]

    out_ref[...] = lax.fori_loop(0, K, body, jnp.zeros((TM, F), jnp.float32), unroll=True)


# ---------------------------------------------------------------------------------------------
# Padding-aware VMEM estimates (f32 lanes pad to 128, sublanes to 8).
# ---------------------------------------------------------------------------------------------
def _phase_a_vmem_bytes(N, C, F, k, tm):
    nl, fl, cl = _pad_up(N, 128), _pad_up(F, 128), _pad_up(C, 128)
    ns, tms = _pad_up(N, 8), _pad_up(tm, 8)
    b = 6 * tms * nl * 4                        # score / scur / cand / onehot / gram slabs [TM, N]
    b += ns * fl * (4 + 2 + 2)                  # x@W1b in f32 + bf16 hi/lo
    b += 2 * (ns + tms) * cl * 4                # x_all + x tile (double buffered)
    b += 2 * (tms * 128 + 8 * nl) * 4           # batch-id column / row blocks
    b += 2 * cl * fl * 4 + 8 * fl * 4           # W1a, W1b, b1
    b += 2 * k * tms * fl * 4                   # h output block (double buffered)
    b += 6 * tms * fl * 4                       # xa / xb_t / base / h_m temporaries
    return b


def _phase_bc_vmem_bytes(F, k, tm):
    fl = _pad_up(F, 128)
    tms = _pad_up(tm, 8)
    return (2 * k * tms * fl * 4                # h block (double buffered)
            + 2 * k * tms * 128 * 4             # gate / alpha blocks (lane-padded)
            + 4 * tms * fl * 4                  # out block + activation temporaries
            + 4 * 8 * fl * 4)                   # scale/shift/wg rows


# ---------------------------------------------------------------------------------------------
# Wrapper: tile selection, three pallas_calls, tiny JAX glue for global BN stats / gate softmax.
# ---------------------------------------------------------------------------------------------
@functools.partial(jax.jit, static_argnames=("k", "row_tile"))
def attn_edge_conv(x, batch, W1, b1, gamma1, beta1, Wg, bg, gammag, betag, *, k, row_tile=None):
    N, C = x.shape
    F = W1.shape[1]
    assert W1.shape[0] == 2 * C
    x = x.astype(jnp.float32)
    batch = batch.astype(jnp.int32)
    bcol = batch.reshape(N, 1)
    brow = batch.reshape(1, N)
    W1a = W1[:C].astype(jnp.float32)                    # multiplies x_i
    W1b = W1[C:].astype(jnp.float32)                    # multiplies (x_j - x_i)
    b1r = b1.reshape(1, F).astype(jnp.float32)
    wg_row = Wg.reshape(1, F).astype(jnp.float32)

    # ---- generation-aware VMEM budget (v5e/v6e: 128 MiB, v7x: 64 MiB per TensorCore) ----
    try:
        vmem_cap = int(pltpu.get_tpu_info().vmem_capacity_bytes)
    except Exception:
        vmem_cap = 64 * 1024 * 1024                     # conservative (v7x-sized) fallback
    vmem_cap85 = int(0.85 * vmem_cap)

    # ---- row-tile selection: biggest tile whose padded working set fits ~1/3 of VMEM ----
    tm = None
    if row_tile is not None:
        rt = int(row_tile)
        if N % rt == 0 and (rt % 8 == 0 or rt == N):
            tm = rt
    if tm is None:
        for cand in (1024, 512, 256, 128, 64, 32, 16, 8):
            if N % cand == 0 and _phase_a_vmem_bytes(N, C, F, k, cand) <= vmem_cap85 // 3:
                tm = cand
                break
    if tm is None:
        tm = N                                          # single-tile fallback (block == full array)
    grid_t = N // tm
    # TODO(synk): for N large enough that the per-tile resident neighbour-source arrays
    # (x [N,C] and x@W1b [N,F]) overflow VMEM, a second-level tiling over neighbour columns
    # (two-level kNN merge) is required; not implemented here.
    # TODO(synk): graphs with fewer than k nodes hit degenerate kNN tie-breaking that can differ
    # from PyG's behaviour (both are arbitrary in that regime).

    vmem_a = int(min(vmem_cap85, max(32 << 20, 2 * _phase_a_vmem_bytes(N, C, F, k, tm))))
    vmem_bc = int(min(vmem_cap85, max(32 << 20, 2 * _phase_bc_vmem_bytes(F, k, tm))))
    cp_a = pltpu.CompilerParams(dimension_semantics=("parallel",), vmem_limit_bytes=vmem_a)
    cp_bc = pltpu.CompilerParams(dimension_semantics=("parallel",), vmem_limit_bytes=vmem_bc)

    # ---- phase A: kNN + pre-BN edge features + shifted BN partials ----
    h_pre, ps1, ps2 = pl.pallas_call(
        functools.partial(_phase_a_kernel, k),
        grid=(grid_t,),
        out_shape=(jax.ShapeDtypeStruct((k, N, F), jnp.float32),
                   jax.ShapeDtypeStruct((grid_t, 1, F), jnp.float32),
                   jax.ShapeDtypeStruct((grid_t, 1, F), jnp.float32)),
        in_specs=[pl.BlockSpec((N, C), lambda i: (0, 0)),      # x (neighbour source, full)
                  pl.BlockSpec((tm, C), lambda i: (i, 0)),     # x (query rows of this tile)
                  pl.BlockSpec((tm, 1), lambda i: (i, 0)),     # batch ids, tile column
                  pl.BlockSpec((1, N), lambda i: (0, 0)),      # batch ids, full row
                  pl.BlockSpec((C, F), lambda i: (0, 0)),      # W1a
                  pl.BlockSpec((C, F), lambda i: (0, 0)),      # W1b
                  pl.BlockSpec((1, F), lambda i: (0, 0))],     # b1
        out_specs=(pl.BlockSpec((k, tm, F), lambda i: (0, i, 0)),
                   pl.BlockSpec((1, 1, F), lambda i: (i, 0, 0)),
                   pl.BlockSpec((1, 1, F), lambda i: (i, 0, 0))),
        compiler_params=cp_a,
    )(x, x, bcol, brow, W1a, W1b, b1r)

    # ---- BN1 statistics over all k*N edges (shifted two-pass, proxy = b1) ----
    kn = float(k) * N
    s1 = jnp.sum(ps1, axis=0).reshape(F) / kn
    s2 = jnp.sum(ps2, axis=0).reshape(F) / kn
    mean1 = b1.reshape(F) + s1
    var1 = s2 - s1 * s1                                  # biased variance
    inv1 = gamma1.reshape(F) * lax.rsqrt(var1 + BN_EPS)
    scale1 = inv1.reshape(1, F)
    shift1 = (beta1.reshape(F) - mean1 * inv1).reshape(1, F)

    # ---- phase B: BN + silu on h, raw gate values via lane reduction ----
    g_raw = pl.pallas_call(
        functools.partial(_phase_b_kernel, k),
        grid=(grid_t,),
        out_shape=jax.ShapeDtypeStruct((k, N, 1), jnp.float32),
        in_specs=[pl.BlockSpec((k, tm, F), lambda i: (0, i, 0)),
                  pl.BlockSpec((1, F), lambda i: (0, 0)),
                  pl.BlockSpec((1, F), lambda i: (0, 0)),
                  pl.BlockSpec((1, F), lambda i: (0, 0))],
        out_specs=pl.BlockSpec((k, tm, 1), lambda i: (0, i, 0)),
        compiler_params=cp_bc,
    )(h_pre, scale1, shift1, wg_row)

    # ---- gate BatchNorm1d(1) over all k*N edges + silu + per-node softmax (tiny [N, k] math) ----
    g = jnp.transpose(g_raw[..., 0], (1, 0)) + jnp.reshape(bg, (-1,))[0]   # [N, k]
    gm = jnp.mean(g)
    gv = jnp.mean((g - gm) ** 2)
    gate = jax.nn.silu((g - gm) * lax.rsqrt(gv + BN_EPS) * gammag + betag)
    alpha = jax.nn.softmax(gate, axis=1)                                    # [N, k]
    alpha_t = jnp.transpose(alpha, (1, 0))[:, :, None]                      # [k, N, 1]

    # ---- phase C: softmax-weighted aggregation ----
    out = pl.pallas_call(
        functools.partial(_phase_c_kernel, k),
        grid=(grid_t,),
        out_shape=jax.ShapeDtypeStruct((N, F), jnp.float32),
        in_specs=[pl.BlockSpec((k, tm, F), lambda i: (0, i, 0)),
                  pl.BlockSpec((k, tm, 1), lambda i: (0, i, 0)),
                  pl.BlockSpec((1, F), lambda i: (0, 0)),
                  pl.BlockSpec((1, F), lambda i: (0, 0))],
        out_specs=pl.BlockSpec((tm, F), lambda i: (i, 0)),
        compiler_params=cp_bc,
    )(h_pre, alpha_t, scale1, shift1)
    return out


def reference(x, batch, W1, b1, gamma1, beta1, Wg, bg, gammag, betag, k):
    """Pure-JAX reference of the same forward pass."""
    N, C = x.shape
    d = jnp.sum((x[:, None, :] - x[None, :, :]) ** 2, axis=-1)
    d = jnp.where(batch[:, None] == batch[None, :], d, jnp.inf)
    idx = jnp.argsort(d, axis=1)[:, :k]                       # [N, k]
    xj = x[idx]                                               # [N, k, C]
    xi = jnp.broadcast_to(x[:, None, :], (N, k, C))
    e = jnp.concatenate([xi, xj - xi], axis=-1).reshape(N * k, 2 * C)
    h = e @ W1 + b1
    h = (h - h.mean(0)) * lax.rsqrt(h.var(0) + BN_EPS) * gamma1 + beta1
    h = jax.nn.silu(h)
    g = h @ Wg + bg
    g = (g - g.mean()) * lax.rsqrt(g.var() + BN_EPS) * gammag + betag
    g = jax.nn.silu(g).reshape(N, k)
    a = jax.nn.softmax(g, axis=1)[..., None]
    return jnp.sum(a * h.reshape(N, k, -1), axis=1)


if __name__ == "__main__":
    B, P = 2, 16            # 2 graphs, 16 points each
    C, F, K = 4, 32, 8      # in_channels, out_channels, k
    N = B * P

    key = jax.random.PRNGKey(0)
    kx, kw1, kb1, kwg, kbg = jax.random.split(key, 5)
    x = jax.random.normal(kx, (N, C), dtype=jnp.float32)
    batch = jnp.repeat(jnp.arange(B, dtype=jnp.int32), P)

    # Deterministic parameter init (Linear: U(-1/sqrt(fan_in), 1/sqrt(fan_in)); BN: gamma=1, beta=0)
    bound1 = 1.0 / float(jnp.sqrt(2.0 * C))
    W1 = jax.random.uniform(kw1, (2 * C, F), jnp.float32, -bound1, bound1)
    b1 = jax.random.uniform(kb1, (F,), jnp.float32, -bound1, bound1)
    gamma1 = jnp.ones((F,), jnp.float32)
    beta1 = jnp.zeros((F,), jnp.float32)
    boundg = 1.0 / float(jnp.sqrt(1.0 * F))
    Wg = jax.random.uniform(kwg, (F, 1), jnp.float32, -boundg, boundg)
    bg = jax.random.uniform(kbg, (1,), jnp.float32, -boundg, boundg)
    gammag = jnp.float32(1.0)
    betag = jnp.float32(0.0)

    # row_tile=16 exercises the multi-tile "parallel" grid path even at this small N.
    out = attn_edge_conv(x, batch, W1, b1, gamma1, beta1, Wg, bg, gammag, betag,
                         k=K, row_tile=16)
    out = jax.block_until_ready(out)

    ref = reference(x, batch, W1, b1, gamma1, beta1, Wg, bg, gammag, betag, K)
    assert out.shape == (N, F)
    assert jnp.allclose(out, ref, rtol=1e-3, atol=1e-3), float(jnp.max(jnp.abs(out - ref)))
    print("KERNEL_OK")
</pallas_src>

<mosaic_0001>
module attributes {stable_mosaic.version = 11 : i64} {
  func.func @_phase_a_kernel(%arg0: i32, %arg1: memref<32x4xf32, #tpu.memory_space<vmem>>, %arg2: memref<16x4xf32, #tpu.memory_space<vmem>>, %arg3: memref<16x1xi32, #tpu.memory_space<vmem>>, %arg4: memref<1x32xi32, #tpu.memory_space<vmem>>, %arg5: memref<4x32xf32, #tpu.memory_space<vmem>>, %arg6: memref<4x32xf32, #tpu.memory_space<vmem>>, %arg7: memref<1x32xf32, #tpu.memory_space<vmem>>, %arg8: memref<8x16x32xf32, #tpu.memory_space<vmem>>, %arg9: memref<1x1x32xf32, #tpu.memory_space<vmem>>, %arg10: memref<1x1x32xf32, #tpu.memory_space<vmem>>) attributes {dimension_semantics = [#tpu.dimension_semantics<parallel>], iteration_bounds = array<i64: 2>, scalar_prefetch = 0 : i64, scratch_operands = 0 : i64, tpu.core_type = #tpu.core_type<tc>, window_params = [{pipeline_mode = #tpu.pipeline_mode<synchronous>, transform_indices = @transform_0, window_bounds = array<i64: 32, 4>}, {transform_indices = @transform_1, window_bounds = array<i64: 16, 4>}, {transform_indices = @transform_2, window_bounds = array<i64: 16, 1>}, {pipeline_mode = #tpu.pipeline_mode<synchronous>, transform_indices = @transform_3, window_bounds = array<i64: 1, 32>}, {pipeline_mode = #tpu.pipeline_mode<synchronous>, transform_indices = @transform_4, window_bounds = array<i64: 4, 32>}, {pipeline_mode = #tpu.pipeline_mode<synchronous>, transform_indices = @transform_5, window_bounds = array<i64: 4, 32>}, {pipeline_mode = #tpu.pipeline_mode<synchronous>, transform_indices = @transform_6, window_bounds = array<i64: 1, 32>}, {transform_indices = @transform_7, window_bounds = array<i64: 8, 16, 32>}, {transform_indices = @transform_8, window_bounds = array<i64: 1, 1, 32>}, {transform_indices = @transform_9, window_bounds = array<i64: 1, 1, 32>}]} {
    %c0 = arith.constant 0 : index
    %c0_0 = arith.constant 0 : index
    %0 = vector.load %arg1[%c0, %c0_0] : memref<32x4xf32, #tpu.memory_space<vmem>>, vector<32x4xf32>
    %c0_1 = arith.constant 0 : index
    %c0_2 = arith.constant 0 : index
    %1 = vector.load %arg2[%c0_1, %c0_2] : memref<16x4xf32, #tpu.memory_space<vmem>>, vector<16x4xf32>
    %cst = arith.constant dense<0.000000e+00> : vector<16x32xf32>
    %2 = tpu.matmul %1, %0, %cst {dimension_numbers = #tpu.dot_dimension_numbers<[1], [1], [0], [0], [0, 0, 1, 0], [], []>} : vector<16x4xf32>, vector<32x4xf32>, vector<16x32xf32> -> vector<16x32xf32>
    %cst_3 = arith.constant 1.000000e+00 : f32
    %3 = vector.broadcast %cst_3 : f32 to vector<1x4xf32>
    %4 = arith.mulf %0, %0 : vector<32x4xf32>
    %cst_4 = arith.constant dense<0.000000e+00> : vector<1x32xf32>
    %5 = tpu.matmul %3, %4, %cst_4 {dimension_numbers = #tpu.dot_dimension_numbers<[1], [1], [0], [0], [0, 0, 1, 0], [], []>} : vector<1x4xf32>, vector<32x4xf32>, vector<1x32xf32> -> vector<1x32xf32>
    %6 = arith.mulf %1, %1 : vector<16x4xf32>
    %cst_5 = arith.constant dense<0.000000e+00> : vector<16xf32>
    %7 = vector.multi_reduction <add>, %6, %cst_5 [1] : vector<16x4xf32> to vector<16xf32>
    %8 = vector.shape_cast %7 : vector<16xf32> to vector<16x1xf32>
    %cst_6 = arith.constant 2.000000e+00 : f32
    %9 = vector.broadcast %cst_6 : f32 to vector<16x32xf32>
    %10 = arith.mulf %9, %2 : vector<16x32xf32>
    %11 = vector.broadcast %5 : vector<1x32xf32> to vector<16x32xf32>
    %12 = arith.subf %11, %10 : vector<16x32xf32>
    %13 = vector.broadcast %8 : vector<16x1xf32> to vector<16x32xf32>
    %14 = arith.addf %13, %12 : vector<16x32xf32>
    %c0_7 = arith.constant 0 : index
    %c0_8 = arith.constant 0 : index
    %15 = vector.load %arg3[%c0_7, %c0_8] : memref<16x1xi32, #tpu.memory_space<vmem>>, vector<16x1xi32>
    %c0_9 = arith.constant 0 : index
    %c0_10 = arith.constant 0 : index
    %16 = vector.load %arg4[%c0_9, %c0_10] : memref<1x32xi32, #tpu.memory_space<vmem>>, vector<1x32xi32>
    %17 = vector.broadcast %15 : vector<16x1xi32> to vector<16x32xi32>
    %18 = vector.broadcast %16 : vector<1x32xi32> to vector<16x32xi32>
    %19 = arith.cmpi eq, %17, %18 : vector<16x32xi32>
    %cst_11 = arith.constant 1.000000e+30 : f32
    %20 = vector.broadcast %cst_11 : f32 to vector<16x32xf32>
    %21 = arith.select %19, %14, %20 : vector<16x32xi1>, vector<16x32xf32>
    %c0_12 = arith.constant 0 : index
    %c0_13 = arith.constant 0 : index
    %22 = vector.load %arg5[%c0_12, %c0_13] : memref<4x32xf32, #tpu.memory_space<vmem>>, vector<4x32xf32>
    %c0_14 = arith.constant 0 : index
    %c0_15 = arith.constant 0 : index
    %23 = vector.load %arg6[%c0_14, %c0_15] : memref<4x32xf32, #tpu.memory_space<vmem>>, vector<4x32xf32>
    %c0_16 = arith.constant 0 : index
    %c0_17 = arith.constant 0 : index
    %24 = vector.load %arg7[%c0_16, %c0_17] : memref<1x32xf32, #tpu.memory_space<vmem>>, vector<1x32xf32>
    %cst_18 = arith.constant dense<0.000000e+00> : vector<16x32xf32>
    %25 = tpu.matmul %1, %22, %cst_18 {dimension_numbers = #tpu.dot_dimension_numbers<[1], [0], [0], [1], [0, 0, 1, 1], [], []>} : vector<16x4xf32>, vector<4x32xf32>, vector<16x32xf32> -> vector<16x32xf32>
    %cst_19 = arith.constant dense<0.000000e+00> : vector<16x32xf32>
    %26 = tpu.matmul %1, %23, %cst_19 {dimension_numbers = #tpu.dot_dimension_numbers<[1], [0], [0], [1], [0, 0, 1, 1], [], []>} : vector<16x4xf32>, vector<4x32xf32>, vector<16x32xf32> -> vector<16x32xf32>
    %27 = arith.subf %25, %26 : vector<16x32xf32>
    %28 = vector.broadcast %24 : vector<1x32xf32> to vector<16x32xf32>
    %29 = arith.addf %27, %28 : vector<16x32xf32>
    %cst_20 = arith.constant dense<0.000000e+00> : vector<32x32xf32>
    %30 = tpu.matmul %0, %23, %cst_20 {dimension_numbers = #tpu.dot_dimension_numbers<[1], [0], [0], [1], [0, 0, 1, 1], [], []>} : vector<32x4xf32>, vector<4x32xf32>, vector<32x32xf32> -> vector<32x32xf32>
    %31 = arith.truncf %30 : vector<32x32xf32> to vector<32x32xbf16>
    %32 = arith.extf %31 : vector<32x32xbf16> to vector<32x32xf32>
    %33 = arith.subf %30, %32 : vector<32x32xf32>
    %34 = arith.truncf %33 : vector<32x32xf32> to vector<32x32xbf16>
    %cst_21 = arith.constant 0.000000e+00 : f32
    %35 = vector.broadcast %cst_21 : f32 to vector<1x32xf32>
    %c0_i32 = arith.constant 0 : i32
    %c8_i32 = arith.constant 8 : i32
    %36 = arith.addi %c0_i32, %c8_i32 : i32
    %c1_i32 = arith.constant 1 : i32
    %37:3 = scf.for %arg11 = %c0_i32 to %36 step %c1_i32 iter_args(%arg12 = %21, %arg13 = %35, %arg14 = %35) -> (vector<16x32xf32>, vector<1x32xf32>, vector<1x32xf32>)  : i32 {
      %42 = tpu.iota {dimensions = array<i32: 1>} : vector<16x32xi32>
      %cst_29 = arith.constant dense<0x7F800000> : vector<16xf32>
      %43 = vector.multi_reduction <minimumf>, %arg12, %cst_29 [1] : vector<16x32xf32> to vector<16xf32>
      %44 = vector.shape_cast %43 : vector<16xf32> to vector<16x1xf32>
      %45 = vector.broadcast %44 : vector<16x1xf32> to vector<16x32xf32>
      %46 = arith.cmpf ole, %arg12, %45 : vector<16x32xf32>
      %c32_i32 = arith.constant 32 : i32
      %47 = vector.broadcast %c32_i32 : i32 to vector<16x32xi32>
      %48 = arith.select %46, %42, %47 : vector<16x32xi1>, vector<16x32xi32>
      %cst_30 = arith.constant dense<2147483647> : vector<16xi32>
      %49 = vector.multi_reduction <minsi>, %48, %cst_30 [1] : vector<16x32xi32> to vector<16xi32>
      %50 = vector.shape_cast %49 : vector<16xi32> to vector<16x1xi32>
      %51 = vector.broadcast %50 : vector<16x1xi32> to vector<16x32xi32>
      %52 = arith.cmpi eq, %42, %51 : vector<16x32xi32>
      %53 = arith.extui %52 : vector<16x32xi1> to vector<16x32xi32>
      %54 = arith.sitofp %53 : vector<16x32xi32> to vector<16x32xf32>
      %55 = arith.truncf %54 : vector<16x32xf32> to vector<16x32xbf16>
      %cst_31 = arith.constant dense<0.000000e+00> : vector<16x32xf32>
      %56 = tpu.matmul %55, %31, %cst_31 {dimension_numbers = #tpu.dot_dimension_numbers<[1], [0], [0], [1], [0, 0, 1, 1], [], []>} : vector<16x32xbf16>, vector<32x32xbf16>, vector<16x32xf32> -> vector<16x32xf32>
      %cst_32 = arith.constant dense<0.000000e+00> : vector<16x32xf32>
      %57 = tpu.matmul %55, %34, %cst_32 {dimension_numbers = #tpu.dot_dimension_numbers<[1], [0], [0], [1], [0, 0, 1, 1], [], []>} : vector<16x32xbf16>, vector<32x32xbf16>, vector<16x32xf32> -> vector<16x32xf32>
      %58 = arith.addf %56, %57 : vector<16x32xf32>
      %59 = arith.addf %29, %58 : vector<16x32xf32>
      %60 = arith.index_cast %arg11 : i32 to index
      %c0_33 = arith.constant 0 : index
      %c0_34 = arith.constant 0 : index
      %61 = vector.load %arg8[%60, %c0_33, %c0_34] : memref<8x16x32xf32, #tpu.memory_space<vmem>>, vector<1x16x32xf32>
      %62 = vector.shape_cast %61 : vector<1x16x32xf32> to vector<16x32xf32>
      %63 = vector.shape_cast %59 : vector<16x32xf32> to vector<1x16x32xf32>
      tpu.vector_store %arg8[%60, %c0_33, %c0_34], %63 {strides = array<i32>} : memref<8x16x32xf32, #tpu.memory_space<vmem>>, vector<1x16x32xf32>,
      %64 = vector.broadcast %24 : vector<1x32xf32> to vector<16x32xf32>
      %65 = arith.subf %59, %64 : vector<16x32xf32>
      %cst_35 = arith.constant dense<0.000000e+00> : vector<32xf32>
      %66 = vector.multi_reduction <add>, %65, %cst_35 [0] : vector<16x32xf32> to vector<32xf32>
      %67 = vector.shape_cast %66 : vector<32xf32> to vector<1x32xf32>
      %68 = arith.addf %arg13, %67 : vector<1x32xf32>
      %69 = arith.mulf %65, %65 : vector<16x32xf32>
      %cst_36 = arith.constant dense<0.000000e+00> : vector<32xf32>
      %70 = vector.multi_reduction <add>, %69, %cst_36 [0] : vector<16x32xf32> to vector<32xf32>
      %71 = vector.shape_cast %70 : vector<32xf32> to vector<1x32xf32>
      %72 = arith.addf %arg14, %71 : vector<1x32xf32>
      %cst_37 = arith.constant 1.000000e+30 : f32
      %73 = vector.broadcast %cst_37 : f32 to vector<16x32xf32>
      %74 = arith.select %52, %73, %arg12 : vector<16x32xi1>, vector<16x32xf32>
      scf.yield %74, %68, %72 : vector<16x32xf32>, vector<1x32xf32>, vector<1x32xf32>
    }
    %c8_i32_22 = arith.constant 8 : i32
    %38 = vector.shape_cast %37#1 : vector<1x32xf32> to vector<1x1x32xf32>
    %c0_23 = arith.constant 0 : index
    %c0_24 = arith.constant 0 : index
    %c0_25 = arith.constant 0 : index
    %39 = vector.load %arg9[%c0_23, %c0_24, %c0_25] : memref<1x1x32xf32, #tpu.memory_space<vmem>>, vector<1x1x32xf32>
    tpu.vector_store %arg9[%c0_23, %c0_24, %c0_25], %38 {strides = array<i32>} : memref<1x1x32xf32, #tpu.memory_space<vmem>>, vector<1x1x32xf32>,
    %40 = vector.shape_cast %37#2 : vector<1x32xf32> to vector<1x1x32xf32>
    %c0_26 = arith.constant 0 : index
    %c0_27 = arith.constant 0 : index
    %c0_28 = arith.constant 0 : index
    %41 = vector.load %arg10[%c0_26, %c0_27, %c0_28] : memref<1x1x32xf32, #tpu.memory_space<vmem>>, vector<1x1x32xf32>
    tpu.vector_store %arg10[%c0_26, %c0_27, %c0_28], %40 {strides = array<i32>} : memref<1x1x32xf32, #tpu.memory_space<vmem>>, vector<1x1x32xf32>,
    return
  }
  func.func @transform_0(%arg0: i32) -> (i32, i32) {
    %c0_i32 = arith.constant 0 : i32
    %c0_i32_0 = arith.constant 0 : i32
    %c0_i32_1 = arith.constant 0 : i32
    return %c0_i32, %c0_i32_0 : i32, i32
  }
  func.func @transform_1(%arg0: i32) -> (i32, i32) {
    %c0_i32 = arith.constant 0 : i32
    %c0_i32_0 = arith.constant 0 : i32
    return %arg0, %c0_i32 : i32, i32
  }
  func.func @transform_2(%arg0: i32) -> (i32, i32) {
    %c0_i32 = arith.constant 0 : i32
    %c0_i32_0 = arith.constant 0 : i32
    return %arg0, %c0_i32 : i32, i32
  }
  func.func @transform_3(%arg0: i32) -> (i32, i32) {
    %c0_i32 = arith.constant 0 : i32
    %c0_i32_0 = arith.constant 0 : i32
    %c0_i32_1 = arith.constant 0 : i32
    return %c0_i32, %c0_i32_0 : i32, i32
  }
  func.func @transform_4(%arg0: i32) -> (i32, i32) {
    %c0_i32 = arith.constant 0 : i32
    %c0_i32_0 = arith.constant 0 : i32
    %c0_i32_1 = arith.constant 0 : i32
    return %c0_i32, %c0_i32_0 : i32, i32
  }
  func.func @transform_5(%arg0: i32) -> (i32, i32) {
    %c0_i32 = arith.constant 0 : i32
    %c0_i32_0 = arith.constant 0 : i32
    %c0_i32_1 = arith.constant 0 : i32
    return %c0_i32, %c0_i32_0 : i32, i32
  }
  func.func @transform_6(%arg0: i32) -> (i32, i32) {
    %c0_i32 = arith.constant 0 : i32
    %c0_i32_0 = arith.constant 0 : i32
    %c0_i32_1 = arith.constant 0 : i32
    return %c0_i32, %c0_i32_0 : i32, i32
  }
  func.func @transform_7(%arg0: i32) -> (i32, i32, i32) {
    %c0_i32 = arith.constant 0 : i32
    %c0_i32_0 = arith.constant 0 : i32
    %c0_i32_1 = arith.constant 0 : i32
    return %c0_i32, %arg0, %c0_i32_0 : i32, i32, i32
  }
  func.func @transform_8(%arg0: i32) -> (i32, i32, i32) {
    %c0_i32 = arith.constant 0 : i32
    %c0_i32_0 = arith.constant 0 : i32
    %c0_i32_1 = arith.constant 0 : i32
    return %arg0, %c0_i32, %c0_i32_0 : i32, i32, i32
  }
  func.func @transform_9(%arg0: i32) -> (i32, i32, i32) {
    %c0_i32 = arith.constant 0 : i32
    %c0_i32_0 = arith.constant 0 : i32
    %c0_i32_1 = arith.constant 0 : i32
    return %arg0, %c0_i32, %c0_i32_0 : i32, i32, i32
  }
}

module attributes {stable_mosaic.version = 11 : i64} {
  func.func @_phase_b_kernel(%arg0: i32, %arg1: memref<8x16x32xf32, #tpu.memory_space<vmem>>, %arg2: memref<1x32xf32, #tpu.memory_space<vmem>>, %arg3: memref<1x32xf32, #tpu.memory_space<vmem>>, %arg4: memref<1x32xf32, #tpu.memory_space<vmem>>, %arg5: memref<8x16x1xf32, #tpu.memory_space<vmem>>) attributes {dimension_semantics = [#tpu.dimension_semantics<parallel>], iteration_bounds = array<i64: 2>, scalar_prefetch = 0 : i64, scratch_operands = 0 : i64, tpu.core_type = #tpu.core_type<tc>, window_params = [{transform_indices = @transform_0, window_bounds = array<i64: 8, 16, 32>}, {pipeline_mode = #tpu.pipeline_mode<synchronous>, transform_indices = @transform_1, window_bounds = array<i64: 1, 32>}, {pipeline_mode = #tpu.pipeline_mode<synchronous>, transform_indices = @transform_2, window_bounds = array<i64: 1, 32>}, {pipeline_mode = #tpu.pipeline_mode<synchronous>, transform_indices = @transform_3, window_bounds = array<i64: 1, 32>}, {transform_indices = @transform_4, window_bounds = array<i64: 8, 16, 1>}]} {
    %c0 = arith.constant 0 : index
    %c0_0 = arith.constant 0 : index
    %0 = vector.load %arg2[%c0, %c0_0] : memref<1x32xf32, #tpu.memory_space<vmem>>, vector<1x32xf32>
    %c0_1 = arith.constant 0 : index
    %c0_2 = arith.constant 0 : index
    %1 = vector.load %arg3[%c0_1, %c0_2] : memref<1x32xf32, #tpu.memory_space<vmem>>, vector<1x32xf32>
    %c0_3 = arith.constant 0 : index
    %c0_4 = arith.constant 0 : index
    %2 = vector.load %arg4[%c0_3, %c0_4] : memref<1x32xf32, #tpu.memory_space<vmem>>, vector<1x32xf32>
    %c0_i32 = arith.constant 0 : i32
    %3 = arith.index_cast %c0_i32 : i32 to index
    %c0_5 = arith.constant 0 : index
    %c0_6 = arith.constant 0 : index
    %4 = vector.load %arg1[%3, %c0_5, %c0_6] : memref<8x16x32xf32, #tpu.memory_space<vmem>>, vector<1x16x32xf32>
    %5 = vector.shape_cast %4 : vector<1x16x32xf32> to vector<16x32xf32>
    %6 = vector.broadcast %0 : vector<1x32xf32> to vector<16x32xf32>
    %7 = arith.mulf %5, %6 : vector<16x32xf32>
    %8 = vector.broadcast %1 : vector<1x32xf32> to vector<16x32xf32>
    %9 = arith.addf %7, %8 : vector<16x32xf32>
    %10 = arith.negf %9 : vector<16x32xf32>
    %11 = math.exp %10 : vector<16x32xf32>
    %cst = arith.constant 1.000000e+00 : f32
    %12 = vector.broadcast %cst : f32 to vector<16x32xf32>
    %13 = arith.addf %12, %11 : vector<16x32xf32>
    %14 = arith.divf %12, %13 : vector<16x32xf32>
    %15 = arith.mulf %9, %14 : vector<16x32xf32>
    %16 = vector.broadcast %2 : vector<1x32xf32> to vector<16x32xf32>
    %17 = arith.mulf %15, %16 : vector<16x32xf32>
    %cst_7 = arith.constant dense<0.000000e+00> : vector<16xf32>
    %18 = vector.multi_reduction <add>, %17, %cst_7 [1] : vector<16x32xf32> to vector<16xf32>
    %19 = vector.shape_cast %18 : vector<16xf32> to vector<16x1xf32>
    %20 = arith.index_cast %c0_i32 : i32 to index
    %c0_8 = arith.constant 0 : index
    %c0_9 = arith.constant 0 : index
    %21 = vector.load %arg5[%20, %c0_8, %c0_9] : memref<8x16x1xf32, #tpu.memory_space<vmem>>, vector<1x16x1xf32>
    %22 = vector.shape_cast %21 : vector<1x16x1xf32> to vector<16x1xf32>
    %23 = vector.shape_cast %19 : vector<16x1xf32> to vector<1x16x1xf32>
    tpu.vector_store %arg5[%20, %c0_8, %c0_9], %23 {strides = array<i32>} : memref<8x16x1xf32, #tpu.memory_space<vmem>>, vector<1x16x1xf32>,
    %c1_i32 = arith.constant 1 : i32
    %24 = arith.index_cast %c1_i32 : i32 to index
    %c0_10 = arith.constant 0 : index
    %c0_11 = arith.constant 0 : index
    %25 = vector.load %arg1[%24, %c0_10, %c0_11] : memref<8x16x32xf32, #tpu.memory_space<vmem>>, vector<1x16x32xf32>
    %26 = vector.shape_cast %25 : vector<1x16x32xf32> to vector<16x32xf32>
    %27 = vector.broadcast %0 : vector<1x32xf32> to vector<16x32xf32>
    %28 = arith.mulf %26, %27 : vector<16x32xf32>
    %29 = vector.broadcast %1 : vector<1x32xf32> to vector<16x32xf32>
    %30 = arith.addf %28, %29 : vector<16x32xf32>
    %31 = arith.negf %30 : vector<16x32xf32>
    %32 = math.exp %31 : vector<16x32xf32>
    %cst_12 = arith.constant 1.000000e+00 : f32
    %33 = vector.broadcast %cst_12 : f32 to vector<16x32xf32>
    %34 = arith.addf %33, %32 : vector<16x32xf32>
    %35 = arith.divf %33, %34 : vector<16x32xf32>
    %36 = arith.mulf %30, %35 : vector<16x32xf32>
    %37 = vector.broadcast %2 : vector<1x32xf32> to vector<16x32xf32>
    %38 = arith.mulf %36, %37 : vector<16x32xf32>
    %cst_13 = arith.constant dense<0.000000e+00> : vector<16xf32>
    %39 = vector.multi_reduction <add>, %38, %cst_13 [1] : vector<16x32xf32> to vector<16xf32>
    %40 = vector.shape_cast %39 : vector<16xf32> to vector<16x1xf32>
    %41 = arith.index_cast %c1_i32 : i32 to index
    %c0_14 = arith.constant 0 : index
    %c0_15 = arith.constant 0 : index
    %42 = vector.load %arg5[%41, %c0_14, %c0_15] : memref<8x16x1xf32, #tpu.memory_space<vmem>>, vector<1x16x1xf32>
    %43 = vector.shape_cast %42 : vector<1x16x1xf32> to vector<16x1xf32>
    %44 = vector.shape_cast %40 : vector<16x1xf32> to vector<1x16x1xf32>
    tpu.vector_store %arg5[%41, %c0_14, %c0_15], %44 {strides = array<i32>} : memref<8x16x1xf32, #tpu.memory_space<vmem>>, vector<1x16x1xf32>,
    %c2_i32 = arith.constant 2 : i32
    %45 = arith.index_cast %c2_i32 : i32 to index
    %c0_16 = arith.constant 0 : index
    %c0_17 = arith.constant 0 : index
    %46 = vector.load %arg1[%45, %c0_16, %c0_17] : memref<8x16x32xf32, #tpu.memory_space<vmem>>, vector<1x16x32xf32>
    %47 = vector.shape_cast %46 : vector<1x16x32xf32> to vector<16x32xf32>
    %48 = vector.broadcast %0 : vector<1x32xf32> to vector<16x32xf32>
    %49 = arith.mulf %47, %48 : vector<16x32xf32>
    %50 = vector.broadcast %1 : vector<1x32xf32> to vector<16x32xf32>
    %51 = arith.addf %49, %50 : vector<16x32xf32>
    %52 = arith.negf %51 : vector<16x32xf32>
    %53 = math.exp %52 : vector<16x32xf32>
    %cst_18 = arith.constant 1.000000e+00 : f32
    %54 = vector.broadcast %cst_18 : f32 to vector<16x32xf32>
    %55 = arith.addf %54, %53 : vector<16x32xf32>
    %56 = arith.divf %54, %55 : vector<16x32xf32>
    %57 = arith.mulf %51, %56 : vector<16x32xf32>
    %58 = vector.broadcast %2 : vector<1x32xf32> to vector<16x32xf32>
    %59 = arith.mulf %57, %58 : vector<16x32xf32>
    %cst_19 = arith.constant dense<0.000000e+00> : vector<16xf32>
    %60 = vector.multi_reduction <add>, %59, %cst_19 [1] : vector<16x32xf32> to vector<16xf32>
    %61 = vector.shape_cast %60 : vector<16xf32> to vector<16x1xf32>
    %62 = arith.index_cast %c2_i32 : i32 to index
    %c0_20 = arith.constant 0 : index
    %c0_21 = arith.constant 0 : index
    %63 = vector.load %arg5[%62, %c0_20, %c0_21] : memref<8x16x1xf32, #tpu.memory_space<vmem>>, vector<1x16x1xf32>
    %64 = vector.shape_cast %63 : vector<1x16x1xf32> to vector<16x1xf32>
    %65 = vector.shape_cast %61 : vector<16x1xf32> to vector<1x16x1xf32>
    tpu.vector_store %arg5[%62, %c0_20, %c0_21], %65 {strides = array<i32>} : memref<8x16x1xf32, #tpu.memory_space<vmem>>, vector<1x16x1xf32>,
    %c3_i32 = arith.constant 3 : i32
    %66 = arith.index_cast %c3_i32 : i32 to index
    %c0_22 = arith.constant 0 : index
    %c0_23 = arith.constant 0 : index
    %67 = vector.load %arg1[%66, %c0_22, %c0_23] : memref<8x16x32xf32, #tpu.memory_space<vmem>>, vector<1x16x32xf32>
    %68 = vector.shape_cast %67 : vector<1x16x32xf32> to vector<16x32xf32>
    %69 = vector.broadcast %0 : vector<1x32xf32> to vector<16x32xf32>
    %70 = arith.mulf %68, %69 : vector<16x32xf32>
    %71 = vector.broadcast %1 : vector<1x32xf32> to vector<16x32xf32>
    %72 = arith.addf %70, %71 : vector<16x32xf32>
    %73 = arith.negf %72 : vector<16x32xf32>
    %74 = math.exp %73 : vector<16x32xf32>
    %cst_24 = arith.constant 1.000000e+00 : f32
    %75 = vector.broadcast %cst_24 : f32 to vector<16x32xf32>
    %76 = arith.addf %75, %74 : vector<16x32xf32>
    %77 = arith.divf %75, %76 : vector<16x32xf32>
    %78 = arith.mulf %72, %77 : vector<16x32xf32>
    %79 = vector.broadcast %2 : vector<1x32xf32> to vector<16x32xf32>
    %80 = arith.mulf %78, %79 : vector<16x32xf32>
    %cst_25 = arith.constant dense<0.000000e+00> : vector<16xf32>
    %81 = vector.multi_reduction <add>, %80, %cst_25 [1] : vector<16x32xf32> to vector<16xf32>
    %82 = vector.shape_cast %81 : vector<16xf32> to vector<16x1xf32>
    %83 = arith.index_cast %c3_i32 : i32 to index
    %c0_26 = arith.constant 0 : index
    %c0_27 = arith.constant 0 : index
    %84 = vector.load %arg5[%83, %c0_26, %c0_27] : memref<8x16x1xf32, #tpu.memory_space<vmem>>, vector<1x16x1xf32>
    %85 = vector.shape_cast %84 : vector<1x16x1xf32> to vector<16x1xf32>
    %86 = vector.shape_cast %82 : vector<16x1xf32> to vector<1x16x1xf32>
    tpu.vector_store %arg5[%83, %c0_26, %c0_27], %86 {strides = array<i32>} : memref<8x16x1xf32, #tpu.memory_space<vmem>>, vector<1x16x1xf32>,
    %c4_i32 = arith.constant 4 : i32
    %87 = arith.index_cast %c4_i32 : i32 to index
    %c0_28 = arith.constant 0 : index
    %c0_29 = arith.constant 0 : index
    %88 = vector.load %arg1[%87, %c0_28, %c0_29] : memref<8x16x32xf32, #tpu.memory_space<vmem>>, vector<1x16x32xf32>
    %89 = vector.shape_cast %88 : vector<1x16x32xf32> to vector<16x32xf32>
    %90 = vector.broadcast %0 : vector<1x32xf32> to vector<16x32xf32>
    %91 = arith.mulf %89, %90 : vector<16x32xf32>
    %92 = vector.broadcast %1 : vector<1x32xf32> to vector<16x32xf32>
    %93 = arith.addf %91, %92 : vector<16x32xf32>
    %94 = arith.negf %93 : vector<16x32xf32>
    %95 = math.exp %94 : vector<16x32xf32>
    %cst_30 = arith.constant 1.000000e+00 : f32
    %96 = vector.broadcast %cst_30 : f32 to vector<16x32xf32>
    %97 = arith.addf %96, %95 : vector<16x32xf32>
    %98 = arith.divf %96, %97 : vector<16x32xf32>
    %99 = arith.mulf %93, %98 : vector<16x32xf32>
    %100 = vector.broadcast %2 : vector<1x32xf32> to vector<16x32xf32>
    %101 = arith.mulf %99, %100 : vector<16x32xf32>
    %cst_31 = arith.constant dense<0.000000e+00> : vector<16xf32>
    %102 = vector.multi_reduction <add>, %101, %cst_31 [1] : vector<16x32xf32> to vector<16xf32>
    %103 = vector.shape_cast %102 : vector<16xf32> to vector<16x1xf32>
    %104 = arith.index_cast %c4_i32 : i32 to index
    %c0_32 = arith.constant 0 : index
    %c0_33 = arith.constant 0 : index
    %105 = vector.load %arg5[%104, %c0_32, %c0_33] : memref<8x16x1xf32, #tpu.memory_space<vmem>>, vector<1x16x1xf32>
    %106 = vector.shape_cast %105 : vector<1x16x1xf32> to vector<16x1xf32>
    %107 = vector.shape_cast %103 : vector<16x1xf32> to vector<1x16x1xf32>
    tpu.vector_store %arg5[%104, %c0_32, %c0_33], %107 {strides = array<i32>} : memref<8x16x1xf32, #tpu.memory_space<vmem>>, vector<1x16x1xf32>,
    %c5_i32 = arith.constant 5 : i32
    %108 = arith.index_cast %c5_i32 : i32 to index
    %c0_34 = arith.constant 0 : index
    %c0_35 = arith.constant 0 : index
    %109 = vector.load %arg1[%108, %c0_34, %c0_35] : memref<8x16x32xf32, #tpu.memory_space<vmem>>, vector<1x16x32xf32>
    %110 = vector.shape_cast %109 : vector<1x16x32xf32> to vector<16x32xf32>
    %111 = vector.broadcast %0 : vector<1x32xf32> to vector<16x32xf32>
    %112 = arith.mulf %110, %111 : vector<16x32xf32>
    %113 = vector.broadcast %1 : vector<1x32xf32> to vector<16x32xf32>
    %114 = arith.addf %112, %113 : vector<16x32xf32>
    %115 = arith.negf %114 : vector<16x32xf32>
    %116 = math.exp %115 : vector<16x32xf32>
    %cst_36 = arith.constant 1.000000e+00 : f32
    %117 = vector.broadcast %cst_36 : f32 to vector<16x32xf32>
    %118 = arith.addf %117, %116 : vector<16x32xf32>
    %119 = arith.divf %117, %118 : vector<16x32xf32>
    %120 = arith.mulf %114, %119 : vector<16x32xf32>
    %121 = vector.broadcast %2 : vector<1x32xf32> to vector<16x32xf32>
    %122 = arith.mulf %120, %121 : vector<16x32xf32>
    %cst_37 = arith.constant dense<0.000000e+00> : vector<16xf32>
    %123 = vector.multi_reduction <add>, %122, %cst_37 [1] : vector<16x32xf32> to vector<16xf32>
    %124 = vector.shape_cast %123 : vector<16xf32> to vector<16x1xf32>
    %125 = arith.index_cast %c5_i32 : i32 to index
    %c0_38 = arith.constant 0 : index
    %c0_39 = arith.constant 0 : index
    %126 = vector.load %arg5[%125, %c0_38, %c0_39] : memref<8x16x1xf32, #tpu.memory_space<vmem>>, vector<1x16x1xf32>
    %127 = vector.shape_cast %126 : vector<1x16x1xf32> to vector<16x1xf32>
    %128 = vector.shape_cast %124 : vector<16x1xf32> to vector<1x16x1xf32>
    tpu.vector_store %arg5[%125, %c0_38, %c0_39], %128 {strides = array<i32>} : memref<8x16x1xf32, #tpu.memory_space<vmem>>, vector<1x16x1xf32>,
    %c6_i32 = arith.constant 6 : i32
    %129 = arith.index_cast %c6_i32 : i32 to index
    %c0_40 = arith.constant 0 : index
    %c0_41 = arith.constant 0 : index
    %130 = vector.load %arg1[%129, %c0_40, %c0_41] : memref<8x16x32xf32, #tpu.memory_space<vmem>>, vector<1x16x32xf32>
    %131 = vector.shape_cast %130 : vector<1x16x32xf32> to vector<16x32xf32>
    %132 = vector.broadcast %0 : vector<1x32xf32> to vector<16x32xf32>
    %133 = arith.mulf %131, %132 : vector<16x32xf32>
    %134 = vector.broadcast %1 : vector<1x32xf32> to vector<16x32xf32>
    %135 = arith.addf %133, %134 : vector<16x32xf32>
    %136 = arith.negf %135 : vector<16x32xf32>
    %137 = math.exp %136 : vector<16x32xf32>
    %cst_42 = arith.constant 1.000000e+00 : f32
    %138 = vector.broadcast %cst_42 : f32 to vector<16x32xf32>
    %139 = arith.addf %138, %137 : vector<16x32xf32>
    %140 = arith.divf %138, %139 : vector<16x32xf32>
    %141 = arith.mulf %135, %140 : vector<16x32xf32>
    %142 = vector.broadcast %2 : vector<1x32xf32> to vector<16x32xf32>
    %143 = arith.mulf %141, %142 : vector<16x32xf32>
    %cst_43 = arith.constant dense<0.000000e+00> : vector<16xf32>
    %144 = vector.multi_reduction <add>, %143, %cst_43 [1] : vector<16x32xf32> to vector<16xf32>
    %145 = vector.shape_cast %144 : vector<16xf32> to vector<16x1xf32>
    %146 = arith.index_cast %c6_i32 : i32 to index
    %c0_44 = arith.constant 0 : index
    %c0_45 = arith.constant 0 : index
    %147 = vector.load %arg5[%146, %c0_44, %c0_45] : memref<8x16x1xf32, #tpu.memory_space<vmem>>, vector<1x16x1xf32>
    %148 = vector.shape_cast %147 : vector<1x16x1xf32> to vector<16x1xf32>
    %149 = vector.shape_cast %145 : vector<16x1xf32> to vector<1x16x1xf32>
    tpu.vector_store %arg5[%146, %c0_44, %c0_45], %149 {strides = array<i32>} : memref<8x16x1xf32, #tpu.memory_space<vmem>>, vector<1x16x1xf32>,
    %c7_i32 = arith.constant 7 : i32
    %150 = arith.index_cast %c7_i32 : i32 to index
    %c0_46 = arith.constant 0 : index
    %c0_47 = arith.constant 0 : index
    %151 = vector.load %arg1[%150, %c0_46, %c0_47] : memref<8x16x32xf32, #tpu.memory_space<vmem>>, vector<1x16x32xf32>
    %152 = vector.shape_cast %151 : vector<1x16x32xf32> to vector<16x32xf32>
    %153 = vector.broadcast %0 : vector<1x32xf32> to vector<16x32xf32>
    %154 = arith.mulf %152, %153 : vector<16x32xf32>
    %155 = vector.broadcast %1 : vector<1x32xf32> to vector<16x32xf32>
    %156 = arith.addf %154, %155 : vector<16x32xf32>
    %157 = arith.negf %156 : vector<16x32xf32>
    %158 = math.exp %157 : vector<16x32xf32>
    %cst_48 = arith.constant 1.000000e+00 : f32
    %159 = vector.broadcast %cst_48 : f32 to vector<16x32xf32>
    %160 = arith.addf %159, %158 : vector<16x32xf32>
    %161 = arith.divf %159, %160 : vector<16x32xf32>
    %162 = arith.mulf %156, %161 : vector<16x32xf32>
    %163 = vector.broadcast %2 : vector<1x32xf32> to vector<16x32xf32>
    %164 = arith.mulf %162, %163 : vector<16x32xf32>
    %cst_49 = arith.constant dense<0.000000e+00> : vector<16xf32>
    %165 = vector.multi_reduction <add>, %164, %cst_49 [1] : vector<16x32xf32> to vector<16xf32>
    %166 = vector.shape_cast %165 : vector<16xf32> to vector<16x1xf32>
    %167 = arith.index_cast %c7_i32 : i32 to index
    %c0_50 = arith.constant 0 : index
    %c0_51 = arith.constant 0 : index
    %168 = vector.load %arg5[%167, %c0_50, %c0_51] : memref<8x16x1xf32, #tpu.memory_space<vmem>>, vector<1x16x1xf32>
    %169 = vector.shape_cast %168 : vector<1x16x1xf32> to vector<16x1xf32>
    %170 = vector.shape_cast %166 : vector<16x1xf32> to vector<1x16x1xf32>
    tpu.vector_store %arg5[%167, %c0_50, %c0_51], %170 {strides = array<i32>} : memref<8x16x1xf32, #tpu.memory_space<vmem>>, vector<1x16x1xf32>,
    %c8_i32 = arith.constant 8 : i32
    return
  }
  func.func @transform_0(%arg0: i32) -> (i32, i32, i32) {
    %c0_i32 = arith.constant 0 : i32
    %c0_i32_0 = arith.constant 0 : i32
    %c0_i32_1 = arith.constant 0 : i32
    return %c0_i32, %arg0, %c0_i32_0 : i32, i32, i32
  }
  func.func @transform_1(%arg0: i32) -> (i32, i32) {
    %c0_i32 = arith.constant 0 : i32
    %c0_i32_0 = arith.constant 0 : i32
    %c0_i32_1 = arith.constant 0 : i32
    return %c0_i32, %c0_i32_0 : i32, i32
  }
  func.func @transform_2(%arg0: i32) -> (i32, i32) {
    %c0_i32 = arith.constant 0 : i32
    %c0_i32_0 = arith.constant 0 : i32
    %c0_i32_1 = arith.constant 0 : i32
    return %c0_i32, %c0_i32_0 : i32, i32
  }
  func.func @transform_3(%arg0: i32) -> (i32, i32) {
    %c0_i32 = arith.constant 0 : i32
    %c0_i32_0 = arith.constant 0 : i32
    %c0_i32_1 = arith.constant 0 : i32
    return %c0_i32, %c0_i32_0 : i32, i32
  }
  func.func @transform_4(%arg0: i32) -> (i32, i32, i32) {
    %c0_i32 = arith.constant 0 : i32
    %c0_i32_0 = arith.constant 0 : i32
    %c0_i32_1 = arith.constant 0 : i32
    return %c0_i32, %arg0, %c0_i32_0 : i32, i32, i32
  }
}

module attributes {stable_mosaic.version = 11 : i64} {
  func.func @_phase_c_kernel(%arg0: i32, %arg1: memref<8x16x32xf32, #tpu.memory_space<vmem>>, %arg2: memref<8x16x1xf32, #tpu.memory_space<vmem>>, %arg3: memref<1x32xf32, #tpu.memory_space<vmem>>, %arg4: memref<1x32xf32, #tpu.memory_space<vmem>>, %arg5: memref<16x32xf32, #tpu.memory_space<vmem>>) attributes {dimension_semantics = [#tpu.dimension_semantics<parallel>], iteration_bounds = array<i64: 2>, scalar_prefetch = 0 : i64, scratch_operands = 0 : i64, tpu.core_type = #tpu.core_type<tc>, window_params = [{transform_indices = @transform_0, window_bounds = array<i64: 8, 16, 32>}, {transform_indices = @transform_1, window_bounds = array<i64: 8, 16, 1>}, {pipeline_mode = #tpu.pipeline_mode<synchronous>, transform_indices = @transform_2, window_bounds = array<i64: 1, 32>}, {pipeline_mode = #tpu.pipeline_mode<synchronous>, transform_indices = @transform_3, window_bounds = array<i64: 1, 32>}, {transform_indices = @transform_4, window_bounds = array<i64: 16, 32>}]} {
    %c0 = arith.constant 0 : index
    %c0_0 = arith.constant 0 : index
    %0 = vector.load %arg3[%c0, %c0_0] : memref<1x32xf32, #tpu.memory_space<vmem>>, vector<1x32xf32>
    %c0_1 = arith.constant 0 : index
    %c0_2 = arith.constant 0 : index
    %1 = vector.load %arg4[%c0_1, %c0_2] : memref<1x32xf32, #tpu.memory_space<vmem>>, vector<1x32xf32>
    %cst = arith.constant 0.000000e+00 : f32
    %2 = vector.broadcast %cst : f32 to vector<16x32xf32>
    %c0_i32 = arith.constant 0 : i32
    %3 = arith.index_cast %c0_i32 : i32 to index
    %c0_3 = arith.constant 0 : index
    %c0_4 = arith.constant 0 : index
    %4 = vector.load %arg1[%3, %c0_3, %c0_4] : memref<8x16x32xf32, #tpu.memory_space<vmem>>, vector<1x16x32xf32>
    %5 = vector.shape_cast %4 : vector<1x16x32xf32> to vector<16x32xf32>
    %6 = vector.broadcast %0 : vector<1x32xf32> to vector<16x32xf32>
    %7 = arith.mulf %5, %6 : vector<16x32xf32>
    %8 = vector.broadcast %1 : vector<1x32xf32> to vector<16x32xf32>
    %9 = arith.addf %7, %8 : vector<16x32xf32>
    %10 = arith.negf %9 : vector<16x32xf32>
    %11 = math.exp %10 : vector<16x32xf32>
    %cst_5 = arith.constant 1.000000e+00 : f32
    %12 = vector.broadcast %cst_5 : f32 to vector<16x32xf32>
    %13 = arith.addf %12, %11 : vector<16x32xf32>
    %14 = arith.divf %12, %13 : vector<16x32xf32>
    %15 = arith.mulf %9, %14 : vector<16x32xf32>
    %16 = arith.index_cast %c0_i32 : i32 to index
    %c0_6 = arith.constant 0 : index
    %c0_7 = arith.constant 0 : index
    %17 = vector.load %arg2[%16, %c0_6, %c0_7] : memref<8x16x1xf32, #tpu.memory_space<vmem>>, vector<1x16x1xf32>
    %18 = vector.shape_cast %17 : vector<1x16x1xf32> to vector<16x1xf32>
    %19 = vector.broadcast %18 : vector<16x1xf32> to vector<16x32xf32>
    %20 = arith.mulf %19, %15 : vector<16x32xf32>
    %21 = arith.addf %2, %20 : vector<16x32xf32>
    %c1_i32 = arith.constant 1 : i32
    %22 = arith.index_cast %c1_i32 : i32 to index
    %c0_8 = arith.constant 0 : index
    %c0_9 = arith.constant 0 : index
    %23 = vector.load %arg1[%22, %c0_8, %c0_9] : memref<8x16x32xf32, #tpu.memory_space<vmem>>, vector<1x16x32xf32>
    %24 = vector.shape_cast %23 : vector<1x16x32xf32> to vector<16x32xf32>
    %25 = vector.broadcast %0 : vector<1x32xf32> to vector<16x32xf32>
    %26 = arith.mulf %24, %25 : vector<16x32xf32>
    %27 = vector.broadcast %1 : vector<1x32xf32> to vector<16x32xf32>
    %28 = arith.addf %26, %27 : vector<16x32xf32>
    %29 = arith.negf %28 : vector<16x32xf32>
    %30 = math.exp %29 : vector<16x32xf32>
    %cst_10 = arith.constant 1.000000e+00 : f32
    %31 = vector.broadcast %cst_10 : f32 to vector<16x32xf32>
    %32 = arith.addf %31, %30 : vector<16x32xf32>
    %33 = arith.divf %31, %32 : vector<16x32xf32>
    %34 = arith.mulf %28, %33 : vector<16x32xf32>
    %35 = arith.index_cast %c1_i32 : i32 to index
    %c0_11 = arith.constant 0 : index
    %c0_12 = arith.constant 0 : index
    %36 = vector.load %arg2[%35, %c0_11, %c0_12] : memref<8x16x1xf32, #tpu.memory_space<vmem>>, vector<1x16x1xf32>
    %37 = vector.shape_cast %36 : vector<1x16x1xf32> to vector<16x1xf32>
    %38 = vector.broadcast %37 : vector<16x1xf32> to vector<16x32xf32>
    %39 = arith.mulf %38, %34 : vector<16x32xf32>
    %40 = arith.addf %21, %39 : vector<16x32xf32>
    %c2_i32 = arith.constant 2 : i32
    %41 = arith.index_cast %c2_i32 : i32 to index
    %c0_13 = arith.constant 0 : index
    %c0_14 = arith.constant 0 : index
    %42 = vector.load %arg1[%41, %c0_13, %c0_14] : memref<8x16x32xf32, #tpu.memory_space<vmem>>, vector<1x16x32xf32>
    %43 = vector.shape_cast %42 : vector<1x16x32xf32> to vector<16x32xf32>
    %44 = vector.broadcast %0 : vector<1x32xf32> to vector<16x32xf32>
    %45 = arith.mulf %43, %44 : vector<16x32xf32>
    %46 = vector.broadcast %1 : vector<1x32xf32> to vector<16x32xf32>
    %47 = arith.addf %45, %46 : vector<16x32xf32>
    %48 = arith.negf %47 : vector<16x32xf32>
    %49 = math.exp %48 : vector<16x32xf32>
    %cst_15 = arith.constant 1.000000e+00 : f32
    %50 = vector.broadcast %cst_15 : f32 to vector<16x32xf32>
    %51 = arith.addf %50, %49 : vector<16x32xf32>
    %52 = arith.divf %50, %51 : vector<16x32xf32>
    %53 = arith.mulf %47, %52 : vector<16x32xf32>
    %54 = arith.index_cast %c2_i32 : i32 to index
    %c0_16 = arith.constant 0 : index
    %c0_17 = arith.constant 0 : index
    %55 = vector.load %arg2[%54, %c0_16, %c0_17] : memref<8x16x1xf32, #tpu.memory_space<vmem>>, vector<1x16x1xf32>
    %56 = vector.shape_cast %55 : vector<1x16x1xf32> to vector<16x1xf32>
    %57 = vector.broadcast %56 : vector<16x1xf32> to vector<16x32xf32>
    %58 = arith.mulf %57, %53 : vector<16x32xf32>
    %59 = arith.addf %40, %58 : vector<16x32xf32>
    %c3_i32 = arith.constant 3 : i32
    %60 = arith.index_cast %c3_i32 : i32 to index
    %c0_18 = arith.constant 0 : index
    %c0_19 = arith.constant 0 : index
    %61 = vector.load %arg1[%60, %c0_18, %c0_19] : memref<8x16x32xf32, #tpu.memory_space<vmem>>, vector<1x16x32xf32>
    %62 = vector.shape_cast %61 : vector<1x16x32xf32> to vector<16x32xf32>
    %63 = vector.broadcast %0 : vector<1x32xf32> to vector<16x32xf32>
    %64 = arith.mulf %62, %63 : vector<16x32xf32>
    %65 = vector.broadcast %1 : vector<1x32xf32> to vector<16x32xf32>
    %66 = arith.addf %64, %65 : vector<16x32xf32>
    %67 = arith.negf %66 : vector<16x32xf32>
    %68 = math.exp %67 : vector<16x32xf32>
    %cst_20 = arith.constant 1.000000e+00 : f32
    %69 = vector.broadcast %cst_20 : f32 to vector<16x32xf32>
    %70 = arith.addf %69, %68 : vector<16x32xf32>
    %71 = arith.divf %69, %70 : vector<16x32xf32>
    %72 = arith.mulf %66, %71 : vector<16x32xf32>
    %73 = arith.index_cast %c3_i32 : i32 to index
    %c0_21 = arith.constant 0 : index
    %c0_22 = arith.constant 0 : index
    %74 = vector.load %arg2[%73, %c0_21, %c0_22] : memref<8x16x1xf32, #tpu.memory_space<vmem>>, vector<1x16x1xf32>
    %75 = vector.shape_cast %74 : vector<1x16x1xf32> to vector<16x1xf32>
    %76 = vector.broadcast %75 : vector<16x1xf32> to vector<16x32xf32>
    %77 = arith.mulf %76, %72 : vector<16x32xf32>
    %78 = arith.addf %59, %77 : vector<16x32xf32>
    %c4_i32 = arith.constant 4 : i32
    %79 = arith.index_cast %c4_i32 : i32 to index
    %c0_23 = arith.constant 0 : index
    %c0_24 = arith.constant 0 : index
    %80 = vector.load %arg1[%79, %c0_23, %c0_24] : memref<8x16x32xf32, #tpu.memory_space<vmem>>, vector<1x16x32xf32>
    %81 = vector.shape_cast %80 : vector<1x16x32xf32> to vector<16x32xf32>
    %82 = vector.broadcast %0 : vector<1x32xf32> to vector<16x32xf32>
    %83 = arith.mulf %81, %82 : vector<16x32xf32>
    %84 = vector.broadcast %1 : vector<1x32xf32> to vector<16x32xf32>
    %85 = arith.addf %83, %84 : vector<16x32xf32>
    %86 = arith.negf %85 : vector<16x32xf32>
    %87 = math.exp %86 : vector<16x32xf32>
    %cst_25 = arith.constant 1.000000e+00 : f32
    %88 = vector.broadcast %cst_25 : f32 to vector<16x32xf32>
    %89 = arith.addf %88, %87 : vector<16x32xf32>
    %90 = arith.divf %88, %89 : vector<16x32xf32>
    %91 = arith.mulf %85, %90 : vector<16x32xf32>
    %92 = arith.index_cast %c4_i32 : i32 to index
    %c0_26 = arith.constant 0 : index
    %c0_27 = arith.constant 0 : index
    %93 = vector.load %arg2[%92, %c0_26, %c0_27] : memref<8x16x1xf32, #tpu.memory_space<vmem>>, vector<1x16x1xf32>
    %94 = vector.shape_cast %93 : vector<1x16x1xf32> to vector<16x1xf32>
    %95 = vector.broadcast %94 : vector<16x1xf32> to vector<16x32xf32>
    %96 = arith.mulf %95, %91 : vector<16x32xf32>
    %97 = arith.addf %78, %96 : vector<16x32xf32>
    %c5_i32 = arith.constant 5 : i32
    %98 = arith.index_cast %c5_i32 : i32 to index
    %c0_28 = arith.constant 0 : index
    %c0_29 = arith.constant 0 : index
    %99 = vector.load %arg1[%98, %c0_28, %c0_29] : memref<8x16x32xf32, #tpu.memory_space<vmem>>, vector<1x16x32xf32>
    %100 = vector.shape_cast %99 : vector<1x16x32xf32> to vector<16x32xf32>
    %101 = vector.broadcast %0 : vector<1x32xf32> to vector<16x32xf32>
    %102 = arith.mulf %100, %101 : vector<16x32xf32>
    %103 = vector.broadcast %1 : vector<1x32xf32> to vector<16x32xf32>
    %104 = arith.addf %102, %103 : vector<16x32xf32>
    %105 = arith.negf %104 : vector<16x32xf32>
    %106 = math.exp %105 : vector<16x32xf32>
    %cst_30 = arith.constant 1.000000e+00 : f32
    %107 = vector.broadcast %cst_30 : f32 to vector<16x32xf32>
    %108 = arith.addf %107, %106 : vector<16x32xf32>
    %109 = arith.divf %107, %108 : vector<16x32xf32>
    %110 = arith.mulf %104, %109 : vector<16x32xf32>
    %111 = arith.index_cast %c5_i32 : i32 to index
    %c0_31 = arith.constant 0 : index
    %c0_32 = arith.constant 0 : index
    %112 = vector.load %arg2[%111, %c0_31, %c0_32] : memref<8x16x1xf32, #tpu.memory_space<vmem>>, vector<1x16x1xf32>
    %113 = vector.shape_cast %112 : vector<1x16x1xf32> to vector<16x1xf32>
    %114 = vector.broadcast %113 : vector<16x1xf32> to vector<16x32xf32>
    %115 = arith.mulf %114, %110 : vector<16x32xf32>
    %116 = arith.addf %97, %115 : vector<16x32xf32>
    %c6_i32 = arith.constant 6 : i32
    %117 = arith.index_cast %c6_i32 : i32 to index
    %c0_33 = arith.constant 0 : index
    %c0_34 = arith.constant 0 : index
    %118 = vector.load %arg1[%117, %c0_33, %c0_34] : memref<8x16x32xf32, #tpu.memory_space<vmem>>, vector<1x16x32xf32>
    %119 = vector.shape_cast %118 : vector<1x16x32xf32> to vector<16x32xf32>
    %120 = vector.broadcast %0 : vector<1x32xf32> to vector<16x32xf32>
    %121 = arith.mulf %119, %120 : vector<16x32xf32>
    %122 = vector.broadcast %1 : vector<1x32xf32> to vector<16x32xf32>
    %123 = arith.addf %121, %122 : vector<16x32xf32>
    %124 = arith.negf %123 : vector<16x32xf32>
    %125 = math.exp %124 : vector<16x32xf32>
    %cst_35 = arith.constant 1.000000e+00 : f32
    %126 = vector.broadcast %cst_35 : f32 to vector<16x32xf32>
    %127 = arith.addf %126, %125 : vector<16x32xf32>
    %128 = arith.divf %126, %127 : vector<16x32xf32>
    %129 = arith.mulf %123, %128 : vector<16x32xf32>
    %130 = arith.index_cast %c6_i32 : i32 to index
    %c0_36 = arith.constant 0 : index
    %c0_37 = arith.constant 0 : index
    %131 = vector.load %arg2[%130, %c0_36, %c0_37] : memref<8x16x1xf32, #tpu.memory_space<vmem>>, vector<1x16x1xf32>
    %132 = vector.shape_cast %131 : vector<1x16x1xf32> to vector<16x1xf32>
    %133 = vector.broadcast %132 : vector<16x1xf32> to vector<16x32xf32>
    %134 = arith.mulf %133, %129 : vector<16x32xf32>
    %135 = arith.addf %116, %134 : vector<16x32xf32>
    %c7_i32 = arith.constant 7 : i32
    %136 = arith.index_cast %c7_i32 : i32 to index
    %c0_38 = arith.constant 0 : index
    %c0_39 = arith.constant 0 : index
    %137 = vector.load %arg1[%136, %c0_38, %c0_39] : memref<8x16x32xf32, #tpu.memory_space<vmem>>, vector<1x16x32xf32>
    %138 = vector.shape_cast %137 : vector<1x16x32xf32> to vector<16x32xf32>
    %139 = vector.broadcast %0 : vector<1x32xf32> to vector<16x32xf32>
    %140 = arith.mulf %138, %139 : vector<16x32xf32>
    %141 = vector.broadcast %1 : vector<1x32xf32> to vector<16x32xf32>
    %142 = arith.addf %140, %141 : vector<16x32xf32>
    %143 = arith.negf %142 : vector<16x32xf32>
    %144 = math.exp %143 : vector<16x32xf32>
    %cst_40 = arith.constant 1.000000e+00 : f32
    %145 = vector.broadcast %cst_40 : f32 to vector<16x32xf32>
    %146 = arith.addf %145, %144 : vector<16x32xf32>
    %147 = arith.divf %145, %146 : vector<16x32xf32>
    %148 = arith.mulf %142, %147 : vector<16x32xf32>
    %149 = arith.index_cast %c7_i32 : i32 to index
    %c0_41 = arith.constant 0 : index
    %c0_42 = arith.constant 0 : index
    %150 = vector.load %arg2[%149, %c0_41, %c0_42] : memref<8x16x1xf32, #tpu.memory_space<vmem>>, vector<1x16x1xf32>
    %151 = vector.shape_cast %150 : vector<1x16x1xf32> to vector<16x1xf32>
    %152 = vector.broadcast %151 : vector<16x1xf32> to vector<16x32xf32>
    %153 = arith.mulf %152, %148 : vector<16x32xf32>
    %154 = arith.addf %135, %153 : vector<16x32xf32>
    %c8_i32 = arith.constant 8 : i32
    %c0_43 = arith.constant 0 : index
    %c0_44 = arith.constant 0 : index
    %155 = vector.load %arg5[%c0_43, %c0_44] : memref<16x32xf32, #tpu.memory_space<vmem>>, vector<16x32xf32>
    tpu.vector_store %arg5[%c0_43, %c0_44], %154 {strides = array<i32>} : memref<16x32xf32, #tpu.memory_space<vmem>>, vector<16x32xf32>,
    return
  }
  func.func @transform_0(%arg0: i32) -> (i32, i32, i32) {
    %c0_i32 = arith.constant 0 : i32
    %c0_i32_0 = arith.constant 0 : i32
    %c0_i32_1 = arith.constant 0 : i32
    return %c0_i32, %arg0, %c0_i32_0 : i32, i32, i32
  }
  func.func @transform_1(%arg0: i32) -> (i32, i32, i32) {
    %c0_i32 = arith.constant 0 : i32
    %c0_i32_0 = arith.constant 0 : i32
    %c0_i32_1 = arith.constant 0 : i32
    return %c0_i32, %arg0, %c0_i32_0 : i32, i32, i32
  }
  func.func @transform_2(%arg0: i32) -> (i32, i32) {
    %c0_i32 = arith.constant 0 : i32
    %c0_i32_0 = arith.constant 0 : i32
    %c0_i32_1 = arith.constant 0 : i32
    return %c0_i32, %c0_i32_0 : i32, i32
  }
  func.func @transform_3(%arg0: i32) -> (i32, i32) {
    %c0_i32 = arith.constant 0 : i32
    %c0_i32_0 = arith.constant 0 : i32
    %c0_i32_1 = arith.constant 0 : i32
    return %c0_i32, %c0_i32_0 : i32, i32
  }
  func.func @transform_4(%arg0: i32) -> (i32, i32) {
    %c0_i32 = arith.constant 0 : i32
    %c0_i32_0 = arith.constant 0 : i32
    return %arg0, %c0_i32 : i32, i32
  }
}

</mosaic_0001>

<llo_original>
// kernel: attn_edge_conv.4
$region0: #{attn_edge_conv.4}
  #allocation0 [shape = 'u32[]', space=smem, size = 0x4, offset = 0x4, fixed_abs, tag = 'smem constant byte address 0x4 - core index']
  #allocation1 [shape = 'u32[144,128]{1,0:T(1,128)}', space=vmem, size = 0x12000, scoped, tag = 'internal scratch']
  %s0 = inlined_call_operand.vmem [shape: f32[8,32,32], index: 0, kind: input, shape index: {}]
  %s1 = inlined_call_operand.vmem [shape: f32[1,32], index: 1, kind: input, shape index: {}]
  %s2 = inlined_call_operand.vmem [shape: f32[1,32], index: 2, kind: input, shape index: {}]
  %s3 = inlined_call_operand.vmem [shape: f32[1,32], index: 3, kind: input, shape index: {}]
  %s4 = inlined_call_operand.vmem [shape: f32[8,32,1], index: 4, kind: output, shape index: {}]
  %s5 = sld [smem:[#allocation0]]
  $region121: #{attn_edge_conv.4} parent=0
    _
  %s7 = ssub.s32 1, %s5
  %s8 = scalar_select 0, %s7, %s5
  $region1: #{attn_edge_conv.4} parent=0
    #allocation2 [shape = 'u8[131072]{0}', space=vmem, size = 0x20000, scoped, tag = 'input window, operand 0']
    #allocation3 [shape = 'u8[131072]{0}', space=vmem, size = 0x20000, scoped, tag = 'output window, operand 0']
    loop: start=0, step=1, limit=4
    $region2: #{attn_edge_conv.4} parent=1 // loop_pre_header
      _
    $region3: #{attn_edge_conv.4} parent=1 // loop_header
      %s10 = sphi 0, %s14
      %p11 = scmp.ge.s32.totalorder %s10, 4
      %s20 = sphi 0, %s22
      %s23 = sphi 0, %s20
      %s24 = sphi 0, %s23
      %s40 = sphi 0, %s24
      %s44 = sphi 0, %s44
      %s46 = sphi 0, %s44
      %s47 = sphi 0, %s46
      %s61 = sphi 0, %s47
      %s65 = sphi 0, %s65
      %s67 = sphi 0, %s65
      %s68 = sphi 0, %s67
      %s82 = sphi 0, %s68
      %s86 = sphi 0, %s86
      %s88 = sphi 0, %s86
      %s89 = sphi 0, %s88
      %s103 = sphi 0, %s89
      %s109 = sphi 0, %s111
      %s112 = sphi 0, %s109
      %s113 = sphi 0, %s112
      %s129 = sphi 0, %s113
    $region4: #{attn_edge_conv.4} parent=1 // loop_header_branch
      %13 = sbr.rel (%p11) target = $region8
    $region5: #{attn_edge_conv.4} parent=1 // loop_body
      %s15 = ssub.s32 %s10, 1
      %s16 = ssub.s32 %s10, 2
      %s17 = sadd.s32 %s10, 1
      %s18 = ssub.s32 %s10, %s17
      %p19 = scmp.eq.s32.totalorder %s18, 0
      %s21 = sadd.s32 %s20, 1
      %s22 = scalar_select %p19, %s20, %s21
      %p25 = pneg %p19
      %p26 = scmp.eq.s32.totalorder %s10, 1
      %p27 = por %p25, %p26
      %p28 = scmp.ne.s32.totalorder %s20, %s23
      %p29 = scmp.eq.s32.totalorder %s10, 0
      %p30 = por %p28, %p29
      %p31 = scmp.ne.s32.totalorder %s20, %s23
      %p32 = scmp.eq.s32.totalorder %s15, 1
      %p33 = por %p31, %p32
      %p34 = scmp.ne.s32.totalorder %s23, %s24
      %p35 = scmp.eq.s32.totalorder %s15, 0
      %p36 = por %p34, %p35
      %p37 = scmp.ne.s32.totalorder %s23, %s24
      %p38 = scmp.eq.s32.totalorder %s16, 1
      %p39 = por %p37, %p38
      %p41 = scmp.ne.s32.totalorder %s24, %s40
      %p42 = scmp.eq.s32.totalorder %s16, 0
      %p43 = por %p41, %p42
      %s45 = sadd.s32 %s44, 1
      %p48 = scmp.eq.s32.totalorder %s10, 1
      %p49 = scmp.ne.s32.totalorder %s44, %s46
      %p50 = scmp.eq.s32.totalorder %s10, 0
      %p51 = por %p49, %p50
      %p52 = scmp.ne.s32.totalorder %s44, %s46
      %p53 = scmp.eq.s32.totalorder %s15, 1
      %p54 = por %p52, %p53
      %p55 = scmp.ne.s32.totalorder %s46, %s47
      %p56 = scmp.eq.s32.totalorder %s15, 0
      %p57 = por %p55, %p56
      %p58 = scmp.ne.s32.totalorder %s46, %s47
      %p59 = scmp.eq.s32.totalorder %s16, 1
      %p60 = por %p58, %p59
      %p62 = scmp.ne.s32.totalorder %s47, %s61
      %p63 = scmp.eq.s32.totalorder %s16, 0
      %p64 = por %p62, %p63
      %s66 = sadd.s32 %s65, 1
      %p69 = scmp.eq.s32.totalorder %s10, 1
      %p70 = scmp.ne.s32.totalorder %s65, %s67
      %p71 = scmp.eq.s32.totalorder %s10, 0
      %p72 = por %p70, %p71
      %p73 = scmp.ne.s32.totalorder %s65, %s67
      %p74 = scmp.eq.s32.totalorder %s15, 1
      %p75 = por %p73, %p74
      %p76 = scmp.ne.s32.totalorder %s67, %s68
      %p77 = scmp.eq.s32.totalorder %s15, 0
      %p78 = por %p76, %p77
      %p79 = scmp.ne.s32.totalorder %s67, %s68
      %p80 = scmp.eq.s32.totalorder %s16, 1
      %p81 = por %p79, %p80
      %p83 = scmp.ne.s32.totalorder %s68, %s82
      %p84 = scmp.eq.s32.totalorder %s16, 0
      %p85 = por %p83, %p84
      %s87 = sadd.s32 %s86, 1
      %p90 = scmp.eq.s32.totalorder %s10, 1
      %p91 = scmp.ne.s32.totalorder %s86, %s88
      %p92 = scmp.eq.s32.totalorder %s10, 0
      %p93 = por %p91, %p92
      %p94 = scmp.ne.s32.totalorder %s86, %s88
      %p95 = scmp.eq.s32.totalorder %s15, 1
      %p96 = por %p94, %p95
      %p97 = scmp.ne.s32.totalorder %s88, %s89
      %p98 = scmp.eq.s32.totalorder %s15, 0
      %p99 = por %p97, %p98
      %p100 = scmp.ne.s32.totalorder %s88, %s89
      %p101 = scmp.eq.s32.totalorder %s16, 1
      %p102 = por %p100, %p101
      %p104 = scmp.ne.s32.totalorder %s89, %s103
      %p105 = scmp.eq.s32.totalorder %s16, 0
      %p106 = por %p104, %p105
      %s107 = ssub.s32 %s10, %s17
      %p108 = scmp.eq.s32.totalorder %s107, 0
      %s110 = sadd.s32 %s109, 1
      %s111 = scalar_select %p108, %s109, %s110
      %p114 = pneg %p108
      %p115 = scmp.eq.s32.totalorder %s10, 1
      %p116 = por %p114, %p115
      %p117 = scmp.ne.s32.totalorder %s109, %s112
      %p118 = scmp.eq.s32.totalorder %s10, 0
      %p119 = por %p117, %p118
      %p120 = scmp.ne.s32.totalorder %s109, %s112
      %p121 = scmp.eq.s32.totalorder %s15, 1
      %p122 = por %p120, %p121
      %p123 = scmp.ne.s32.totalorder %s112, %s113
      %p124 = scmp.eq.s32.totalorder %s15, 0
      %p125 = por %p123, %p124
      %p126 = scmp.ne.s32.totalorder %s112, %s113
      %p127 = scmp.eq.s32.totalorder %s16, 1
      %p128 = por %p126, %p127
      %p130 = scmp.ne.s32.totalorder %s113, %s129
      %p131 = scmp.eq.s32.totalorder %s16, 0
      %p132 = por %p130, %p131
      %p133 = scmp.le.s32.totalorder 1, %s10
      %p134 = scmp.lt.s32.totalorder %s10, 3
      %p135 = pnand %p133, %p134
      %p136 = pneg %p135
      // Predicated region
      $region9: #{attn_edge_conv.4} parent=5 // pred_check
        _
      $region10: #{attn_edge_conv.4} parent=5 // pred_check_branch
        %138 = sbr.rel (%p135) target = $region12
      $region11: #{attn_edge_conv.4} parent=5 // pred_region
        %s139 = ssub.s32 %s10, 1
        // Predicated region
        $region13: #{attn_edge_conv.4} parent=11 // pred_check
          %p140 = pneg %p57
        $region14: #{attn_edge_conv.4} parent=11 // pred_check_branch
          %142 = sbr.rel (%p140) target = $region16
        $region15: #{attn_edge_conv.4} parent=11 // pred_region
          _
        $region16: #{attn_edge_conv.4} parent=11 // pred_fallthru
          _
        // Predicated region
        $region17: #{attn_edge_conv.4} parent=11 // pred_check
          %p143 = pneg %p78
        $region18: #{attn_edge_conv.4} parent=11 // pred_check_branch
          %145 = sbr.rel (%p143) target = $region20
        $region19: #{attn_edge_conv.4} parent=11 // pred_region
          _
        $region20: #{attn_edge_conv.4} parent=11 // pred_fallthru
          _
        // Predicated region
        $region21: #{attn_edge_conv.4} parent=11 // pred_check
          %p146 = pneg %p99
        $region22: #{attn_edge_conv.4} parent=11 // pred_check_branch
          %148 = sbr.rel (%p146) target = $region24
        $region23: #{attn_edge_conv.4} parent=11 // pred_region
          _
        $region24: #{attn_edge_conv.4} parent=11 // pred_fallthru
          _
      $region12: #{attn_edge_conv.4} parent=5 // pred_fallthru
        _
      %p149 = scmp.lt.s32.totalorder %s10, 2
      // Predicated region
      $region25: #{attn_edge_conv.4} parent=5 // pred_check
        %p150 = pneg %p149
      $region26: #{attn_edge_conv.4} parent=5 // pred_check_branch
        %152 = sbr.rel (%p150) target = $region28
      $region27: #{attn_edge_conv.4} parent=5 // pred_region
        // Predicated region
        $region29: #{attn_edge_conv.4} parent=27 // pred_check
          %p153 = pneg %p30
        $region30: #{attn_edge_conv.4} parent=27 // pred_check_branch
          %155 = sbr.rel (%p153) target = $region32
        $region31: #{attn_edge_conv.4} parent=27 // pred_region
          %s156 = sand.u32 %s20, 1
          %s157 = sand.u32 %s20, 1
          %s158 = smul.addr %s157, 128
          %s159 = scalar_lea.vmem [#allocation2], %s158
          %s160 = smul.u32 2, %s10
          %s161 = smul.addr %s160, 8
          %s162 = scalar_lea.vmem %s0, %s161
          // Predicated region
          $region33: #{attn_edge_conv.4} parent=31 // pred_check
            _
          $region34: #{attn_edge_conv.4} parent=31 // pred_check_branch
            %164 = sbr.rel (0) target = $region36
          $region35: #{attn_edge_conv.4} parent=31 // pred_region
            // Predicated region
            $region37: #{attn_edge_conv.4} parent=35 // pred_check
              _
            $region38: #{attn_edge_conv.4} parent=35 // pred_check_branch
              %166 = sbr.rel (0) target = $region40
            $region39: #{attn_edge_conv.4} parent=35 // pred_region
              // Predicated region
              $region52: #{attn_edge_conv.4} parent=39 // pred_check
                _
              $region53: #{attn_edge_conv.4} parent=39 // pred_check_branch
                %212 = sbr.rel (0) target = $region55
              $region54: #{attn_edge_conv.4} parent=39 // pred_region
                loop: start=0, step=1, limit=1
                $region56: #{attn_edge_conv.4} parent=54 // loop_pre_header
                  _
                $region57: #{attn_edge_conv.4} parent=54 // loop_header
                  %s214 = sphi 0, %s218
                  %p215 = scmp.ge.s32.totalorder %s214, 1
                  %s219 = sphi %s162, %s162
                  %s220 = sphi %s159, %s159
                $region58: #{attn_edge_conv.4} parent=54 // loop_header_branch
                  %217 = sbr.rel (%p215) target = $region62
                $region59: #{attn_edge_conv.4} parent=54 // loop_body
                  %v221 = vld [vmem:[%s219] sm:$0xff]
                  %222 = vst [vmem:[%s220] sm:$0xff] %v221
                  %v223 = vld [vmem:[%s219 + $0x8] sm:$0xff]
                  %224 = vst [vmem:[%s220 + $0x8] sm:$0xff] %v223
                  %v225 = vld [vmem:[%s219 + $0x20] sm:$0xff]
                  %226 = vst [vmem:[%s220 + $0x10] sm:$0xff] %v225
                  %v227 = vld [vmem:[%s219 + $0x28] sm:$0xff]
                  %228 = vst [vmem:[%s220 + $0x18] sm:$0xff] %v227
                  %v229 = vld [vmem:[%s219 + $0x40] sm:$0xff]
                  %230 = vst [vmem:[%s220 + $0x20] sm:$0xff] %v229
                  %v231 = vld [vmem:[%s219 + $0x48] sm:$0xff]
                  %232 = vst [vmem:[%s220 + $0x28] sm:$0xff] %v231
                  %v233 = vld [vmem:[%s219 + $0x60] sm:$0xff]
                  %234 = vst [vmem:[%s220 + $0x30] sm:$0xff] %v233
                  %v235 = vld [vmem:[%s219 + $0x68] sm:$0xff]
                  %236 = vst [vmem:[%s220 + $0x38] sm:$0xff] %v235
                  %v237 = vld [vmem:[%s219 + $0x80] sm:$0xff]
                  %238 = vst [vmem:[%s220 + $0x40] sm:$0xff] %v237
                  %v239 = vld [vmem:[%s219 + $0x88] sm:$0xff]
                  %240 = vst [vmem:[%s220 + $0x48] sm:$0xff] %v239
                  %v241 = vld [vmem:[%s219 + $0xa0] sm:$0xff]
                  %242 = vst [vmem:[%s220 + $0x50] sm:$0xff] %v241
                  %v243 = vld [vmem:[%s219 + $0xa8] sm:$0xff]
                  %244 = vst [vmem:[%s220 + $0x58] sm:$0xff] %v243
                  %v245 = vld [vmem:[%s219 + $0xc0] sm:$0xff]
                  %246 = vst [vmem:[%s220 + $0x60] sm:$0xff] %v245
                  %v247 = vld [vmem:[%s219 + $0xc8] sm:$0xff]
                  %248 = vst [vmem:[%s220 + $0x68] sm:$0xff] %v247
                  %v249 = vld [vmem:[%s219 + $0xe0] sm:$0xff]
                  %250 = vst [vmem:[%s220 + $0x70] sm:$0xff] %v249
                  %v251 = vld [vmem:[%s219 + $0xe8] sm:$0xff]
                  %252 = vst [vmem:[%s220 + $0x78] sm:$0xff] %v251
                $region60: #{attn_edge_conv.4} parent=54 // loop_footer
                  %s218 = sadd.s32 1, %s214
                $region61: #{attn_edge_conv.4} parent=54 // loop_footer_branch
                  %213 = sbr.rel target = $region57
                $region62: #{attn_edge_conv.4} parent=54 // loop_exit
                  _
              $region55: #{attn_edge_conv.4} parent=39 // pred_fallthru
                _
              // Predicated region
              $region63: #{attn_edge_conv.4} parent=39 // pred_check
                _
              $region64: #{attn_edge_conv.4} parent=39 // pred_check_branch
                %254 = sbr.rel target = $region66
              $region65: #{attn_edge_conv.4} parent=39 // pred_region
                _
              $region66: #{attn_edge_conv.4} parent=39 // pred_fallthru
                _
            $region40: #{attn_edge_conv.4} parent=35 // pred_fallthru
              _
            // Predicated region
            $region41: #{attn_edge_conv.4} parent=35 // pred_check
              _
            $region42: #{attn_edge_conv.4} parent=35 // pred_check_branch
              %168 = sbr.rel target = $region44
            $region43: #{attn_edge_conv.4} parent=35 // pred_region
              %s170 = ssub.s32 256, 1
              loop: start=0, step=1, limit=1
              $region45: #{attn_edge_conv.4} parent=43 // loop_pre_header
                _
              $region46: #{attn_edge_conv.4} parent=43 // loop_header
                %s172 = sphi 0, %s176
                %p173 = scmp.ge.s32.totalorder %s172, 1
                %s177 = sphi %s162, %s162
                %s178 = sphi %s159, %s159
              $region47: #{attn_edge_conv.4} parent=43 // loop_header_branch
                %175 = sbr.rel (%p173) target = $region51
              $region48: #{attn_edge_conv.4} parent=43 // loop_body
                %v179 = vld [vmem:[%s177] sm:%s170]
                %180 = vst [vmem:[%s178] sm:%s170] %v179
                %v181 = vld [vmem:[%s177 + $0x8] sm:%s170]
                %182 = vst [vmem:[%s178 + $0x8] sm:%s170] %v181
                %v183 = vld [vmem:[%s177 + $0x20] sm:%s170]
                %184 = vst [vmem:[%s178 + $0x10] sm:%s170] %v183
                %v185 = vld [vmem:[%s177 + $0x28] sm:%s170]
                %186 = vst [vmem:[%s178 + $0x18] sm:%s170] %v185
                %v187 = vld [vmem:[%s177 + $0x40] sm:%s170]
                %188 = vst [vmem:[%s178 + $0x20] sm:%s170] %v187
                %v189 = vld [vmem:[%s177 + $0x48] sm:%s170]
                %190 = vst [vmem:[%s178 + $0x28] sm:%s170] %v189
                %v191 = vld [vmem:[%s177 + $0x60] sm:%s170]
                %192 = vst [vmem:[%s178 + $0x30] sm:%s170] %v191
                %v193 = vld [vmem:[%s177 + $0x68] sm:%s170]
                %194 = vst [vmem:[%s178 + $0x38] sm:%s170] %v193
                %v195 = vld [vmem:[%s177 + $0x80] sm:%s170]
                %196 = vst [vmem:[%s178 + $0x40] sm:%s170] %v195
                %v197 = vld [vmem:[%s177 + $0x88] sm:%s170]
                %198 = vst [vmem:[%s178 + $0x48] sm:%s170] %v197
                %v199 = vld [vmem:[%s177 + $0xa0] sm:%s170]
                %200 = vst [vmem:[%s178 + $0x50] sm:%s170] %v199
                %v201 = vld [vmem:[%s177 + $0xa8] sm:%s170]
                %202 = vst [vmem:[%s178 + $0x58] sm:%s170] %v201
                %v203 = vld [vmem:[%s177 + $0xc0] sm:%s170]
                %204 = vst [vmem:[%s178 + $0x60] sm:%s170] %v203
                %v205 = vld [vmem:[%s177 + $0xc8] sm:%s170]
                %206 = vst [vmem:[%s178 + $0x68] sm:%s170] %v205
                %v207 = vld [vmem:[%s177 + $0xe0] sm:%s170]
                %208 = vst [vmem:[%s178 + $0x70] sm:%s170] %v207
                %v209 = vld [vmem:[%s177 + $0xe8] sm:%s170]
                %210 = vst [vmem:[%s178 + $0x78] sm:%s170] %v209
              $region49: #{attn_edge_conv.4} parent=43 // loop_footer
                %s176 = sadd.s32 1, %s172
              $region50: #{attn_edge_conv.4} parent=43 // loop_footer_branch
                %171 = sbr.rel target = $region46
              $region51: #{attn_edge_conv.4} parent=43 // loop_exit
                _
            $region44: #{attn_edge_conv.4} parent=35 // pred_fallthru
              _
          $region36: #{attn_edge_conv.4} parent=31 // pred_fallthru
            _
          %255 = vnop
        $region32: #{attn_edge_conv.4} parent=27 // pred_fallthru
          _
      $region28: #{attn_edge_conv.4} parent=5 // pred_fallthru
        _
      %p256 = scmp.le.s32.totalorder 1, %s10
      %p257 = scmp.lt.s32.totalorder %s10, 3
      %p258 = pnand %p256, %p257
      %p259 = pneg %p258
      // Predicated region
      $region67: #{attn_edge_conv.4} parent=5 // pred_check
        _
      $region68: #{attn_edge_conv.4} parent=5 // pred_check_branch
        %261 = sbr.rel (%p258) target = $region70
      $region69: #{attn_edge_conv.4} parent=5 // pred_region
        %s262 = ssub.s32 %s10, 1
        %s263 = sand.u32 %s23, 1
        %s264 = sand.u32 %s23, 1
        %s265 = smul.addr %s264, 128
        %s266 = scalar_lea.vmem [#allocation2], %s265
        // Predicated region
        $region71: #{attn_edge_conv.4} parent=69 // pred_check
          %p267 = pneg %p36
        $region72: #{attn_edge_conv.4} parent=69 // pred_check_branch
          %269 = sbr.rel (%p267) target = $region74
        $region73: #{attn_edge_conv.4} parent=69 // pred_region
          _
        $region74: #{attn_edge_conv.4} parent=69 // pred_fallthru
          _
        %s270 = sand.u32 %s23, 1
        %s271 = sand.u32 %s23, 1
        %s272 = smul.addr %s271, 128
        %s273 = scalar_lea.vmem [#allocation2], %s272
        %p274 = pneg %p36
        %p275 = pneg %p33
        %p276 = pneg %p57
        %p277 = pneg %p54
        %p278 = pneg %p78
        %p279 = pneg %p75
        %p280 = pneg %p99
        %p281 = pneg %p96
        %p282 = pneg %p125
        %p283 = pneg %p122
        %s284 = sand.u32 %s112, 1
        %s285 = sand.u32 %s112, 1
        %s286 = smul.addr %s285, 128
        %s287 = scalar_lea.vmem [#allocation3], %s286
        %s288 = smul.u32 2, %s15
        %s289 = smul.u32 2, %s15
        %v290 = vld [vmem:[%s1] sm:$0x1]
        %v291 = vld [vmem:[%s2] sm:$0x1]
        %v292 = vld [vmem:[%s3] sm:$0x1]
        %v293 = vld [vmem:[%s266] sm:$0xff]
        %v294 = vld [vmem:[%s266 + $0x8] sm:$0xff]
        %v296 = vlaneseq
        %v297 = vshrl.u32 %v296, 7
        %v298 = vsub.s32 0, %v297
        %v299 = vrot.slane %v290, %v298
        %v301 = vmul.f32 %v293, %v299
        %v302 = vmul.f32 %v294, %v299
        %v304 = vlaneseq
        %v305 = vshrl.u32 %v304, 7
        %v306 = vsub.s32 0, %v305
        %v307 = vrot.slane %v291, %v306
        %v309 = vadd.f32 %v301, %v307
        %v310 = vadd.f32 %v302, %v307
        %v311 = vxor.u32 %v309, 2147483648
        %v312 = vxor.u32 %v310, 2147483648
        %v313 = vmul.f32 %v311, 1.442695
        %v314 = vpow.pop %v313
        %v315 = vmul.f32 %v312, 1.442695
        %v316 = vpow.pop %v315
        %v317 = vadd.f32 %v314, 1.0
        %v318 = vadd.f32 %v316, 1.0
        %v319 = vrcp.pop %v317
        %v320 = vmul.f32 1.0, %v319
        %v321 = vrcp.pop %v318
        %v322 = vmul.f32 1.0, %v321
        %v323 = vmul.f32 %v309, %v320
        %v324 = vmul.f32 %v310, %v322
        %v326 = vlaneseq
        %v327 = vshrl.u32 %v326, 7
        %v328 = vsub.s32 0, %v327
        %v329 = vrot.slane %v292, %v328
        %v331 = vmul.f32 %v323, %v329
        %v332 = vmul.f32 %v324, %v329
        %vm333 = vcmask 261120
        %v334 = vsel %vm333, %v331, 0.0
        %335 = vadd.xlane.f32.xlu0 %v334
        %v336 = vpop.xlane.xlu0 %335
        %v337 = vsel %vm333, %v332, 0.0
        %338 = vadd.xlane.f32.xlu0 %v337
        %v339 = vpop.xlane.xlu0 %338
        %vm340 = vcmask 7168
        %341 = vst.msk [vmem:[%s287] sm:$0xff] %vm340, %v336
        %342 = vst.msk [vmem:[%s287 + $0x8] sm:$0xff] %vm340, %v339
        %s343 = scalar_lea.vmem %s266, 16 [#allocation2]
        %v344 = vld [vmem:[%s343] sm:$0xff]
        %v345 = vld [vmem:[%s343 + $0x8] sm:$0xff]
        %v346 = vmul.f32 %v344, %v299
        %v347 = vmul.f32 %v345, %v299
        %v348 = vadd.f32 %v346, %v307
        %v349 = vadd.f32 %v347, %v307
        %v350 = vxor.u32 %v348, 2147483648
        %v351 = vxor.u32 %v349, 2147483648
        %v352 = vmul.f32 %v350, 1.442695
        %v353 = vpow.pop %v352
        %v354 = vmul.f32 %v351, 1.442695
        %v355 = vpow.pop %v354
        %v356 = vadd.f32 %v353, 1.0
        %v357 = vadd.f32 %v355, 1.0
        %v358 = vrcp.pop %v356
        %v359 = vmul.f32 1.0, %v358
        %v360 = vrcp.pop %v357
        %v361 = vmul.f32 1.0, %v360
        %v362 = vmul.f32 %v348, %v359
        %v363 = vmul.f32 %v349, %v361
        %v364 = vmul.f32 %v362, %v329
        %v365 = vmul.f32 %v363, %v329
        %v366 = vsel %vm333, %v364, 0.0
        %367 = vadd.xlane.f32.xlu0 %v366
        %v368 = vpop.xlane.xlu0 %367
        %v369 = vsel %vm333, %v365, 0.0
        %370 = vadd.xlane.f32.xlu0 %v369
        %v371 = vpop.xlane.xlu0 %370
        %s372 = scalar_lea.vmem %s287, 16 [#allocation3]
        %373 = vst.msk [vmem:[%s372] sm:$0xff] %vm340, %v368
        %374 = vst.msk [vmem:[%s372 + $0x8] sm:$0xff] %vm340, %v371
        %s375 = scalar_lea.vmem %s266, 32 [#allocation2]
        %v376 = vld [vmem:[%s375] sm:$0xff]
        %v377 = vld [vmem:[%s375 + $0x8] sm:$0xff]
        %v378 = vmul.f32 %v376, %v299
        %v379 = vmul.f32 %v377, %v299
        %v380 = vadd.f32 %v378, %v307
        %v381 = vadd.f32 %v379, %v307
        %v382 = vxor.u32 %v380, 2147483648
        %v383 = vxor.u32 %v381, 2147483648
        %v384 = vmul.f32 %v382, 1.442695
        %v385 = vpow.pop %v384
        %v386 = vmul.f32 %v383, 1.442695
        %v387 = vpow.pop %v386
        %v388 = vadd.f32 %v385, 1.0
        %v389 = vadd.f32 %v387, 1.0
        %v390 = vrcp.pop %v388
        %v391 = vmul.f32 1.0, %v390
        %v392 = vrcp.pop %v389
        %v393 = vmul.f32 1.0, %v392
        %v394 = vmul.f32 %v380, %v391
        %v395 = vmul.f32 %v381, %v393
        %v396 = vmul.f32 %v394, %v329
        %v397 = vmul.f32 %v395, %v329
        %v398 = vsel %vm333, %v396, 0.0
        %399 = vadd.xlane.f32.xlu0 %v398
        %v400 = vpop.xlane.xlu0 %399
        %v401 = vsel %vm333, %v397, 0.0
        %402 = vadd.xlane.f32.xlu0 %v401
        %v403 = vpop.xlane.xlu0 %402
        %s404 = scalar_lea.vmem %s287, 32 [#allocation3]
        %405 = vst.msk [vmem:[%s404] sm:$0xff] %vm340, %v400
        %406 = vst.msk [vmem:[%s404 + $0x8] sm:$0xff] %vm340, %v403
        %s407 = scalar_lea.vmem %s266, 48 [#allocation2]
        %v408 = vld [vmem:[%s407] sm:$0xff]
        %v409 = vld [vmem:[%s407 + $0x8] sm:$0xff]
        %v410 = vmul.f32 %v408, %v299
        %v411 = vmul.f32 %v409, %v299
        %v412 = vadd.f32 %v410, %v307
        %v413 = vadd.f32 %v411, %v307
        %v414 = vxor.u32 %v412, 2147483648
        %v415 = vxor.u32 %v413, 2147483648
        %v416 = vmul.f32 %v414, 1.442695
        %v417 = vpow.pop %v416
        %v418 = vmul.f32 %v415, 1.442695
        %v419 = vpow.pop %v418
        %v420 = vadd.f32 %v417, 1.0
        %v421 = vadd.f32 %v419, 1.0
        %v422 = vrcp.pop %v420
        %v423 = vmul.f32 1.0, %v422
        %v424 = vrcp.pop %v421
        %v425 = vmul.f32 1.0, %v424
        %v426 = vmul.f32 %v412, %v423
        %v427 = vmul.f32 %v413, %v425
        %v428 = vmul.f32 %v426, %v329
        %v429 = vmul.f32 %v427, %v329
        %v430 = vsel %vm333, %v428, 0.0
        %431 = vadd.xlane.f32.xlu0 %v430
        %v432 = vpop.xlane.xlu0 %431
        %v433 = vsel %vm333, %v429, 0.0
        %434 = vadd.xlane.f32.xlu0 %v433
        %v435 = vpop.xlane.xlu0 %434
        %s436 = scalar_lea.vmem %s287, 48 [#allocation3]
        %437 = vst.msk [vmem:[%s436] sm:$0xff] %vm340, %v432
        %438 = vst.msk [vmem:[%s436 + $0x8] sm:$0xff] %vm340, %v435
        %s439 = scalar_lea.vmem %s266, 64 [#allocation2]
        %v440 = vld [vmem:[%s439] sm:$0xff]
        %v441 = vld [vmem:[%s439 + $0x8] sm:$0xff]
        %v442 = vmul.f32 %v440, %v299
        %v443 = vmul.f32 %v441, %v299
        %v444 = vadd.f32 %v442, %v307
        %v445 = vadd.f32 %v443, %v307
        %v446 = vxor.u32 %v444, 2147483648
        %v447 = vxor.u32 %v445, 2147483648
        %v448 = vmul.f32 %v446, 1.442695
        %v449 = vpow.pop %v448
        %v450 = vmul.f32 %v447, 1.442695
        %v451 = vpow.pop %v450
        %v452 = vadd.f32 %v449, 1.0
        %v453 = vadd.f32 %v451, 1.0
        %v454 = vrcp.pop %v452
        %v455 = vmul.f32 1.0, %v454
        %v456 = vrcp.pop %v453
        %v457 = vmul.f32 1.0, %v456
        %v458 = vmul.f32 %v444, %v455
        %v459 = vmul.f32 %v445, %v457
        %v460 = vmul.f32 %v458, %v329
        %v461 = vmul.f32 %v459, %v329
        %v462 = vsel %vm333, %v460, 0.0
        %463 = vadd.xlane.f32.xlu0 %v462
        %v464 = vpop.xlane.xlu0 %463
        %v465 = vsel %vm333, %v461, 0.0
        %466 = vadd.xlane.f32.xlu0 %v465
        %v467 = vpop.xlane.xlu0 %466
        %s468 = scalar_lea.vmem %s287, 64 [#allocation3]
        %469 = vst.msk [vmem:[%s468] sm:$0xff] %vm340, %v464
        %470 = vst.msk [vmem:[%s468 + $0x8] sm:$0xff] %vm340, %v467
        %s471 = scalar_lea.vmem %s266, 80 [#allocation2]
        %v472 = vld [vmem:[%s471] sm:$0xff]
        %v473 = vld [vmem:[%s471 + $0x8] sm:$0xff]
        %v474 = vmul.f32 %v472, %v299
        %v475 = vmul.f32 %v473, %v299
        %v476 = vadd.f32 %v474, %v307
        %v477 = vadd.f32 %v475, %v307
        %v478 = vxor.u32 %v476, 2147483648
        %v479 = vxor.u32 %v477, 2147483648
        %v480 = vmul.f32 %v478, 1.442695
        %v481 = vpow.pop %v480
        %v482 = vmul.f32 %v479, 1.442695
        %v483 = vpow.pop %v482
        %v484 = vadd.f32 %v481, 1.0
        %v485 = vadd.f32 %v483, 1.0
        %v486 = vrcp.pop %v484
        %v487 = vmul.f32 1.0, %v486
        %v488 = vrcp.pop %v485
        %v489 = vmul.f32 1.0, %v488
        %v490 = vmul.f32 %v476, %v487
        %v491 = vmul.f32 %v477, %v489
        %v492 = vmul.f32 %v490, %v329
        %v493 = vmul.f32 %v491, %v329
        %v494 = vsel %vm333, %v492, 0.0
        %495 = vadd.xlane.f32.xlu0 %v494
        %v496 = vpop.xlane.xlu0 %495
        %v497 = vsel %vm333, %v493, 0.0
        %498 = vadd.xlane.f32.xlu0 %v497
        %v499 = vpop.xlane.xlu0 %498
        %s500 = scalar_lea.vmem %s287, 80 [#allocation3]
        %501 = vst.msk [vmem:[%s500] sm:$0xff] %vm340, %v496
        %502 = vst.msk [vmem:[%s500 + $0x8] sm:$0xff] %vm340, %v499
        %s503 = scalar_lea.vmem %s266, 96 [#allocation2]
        %v504 = vld [vmem:[%s503] sm:$0xff]
        %v505 = vld [vmem:[%s503 + $0x8] sm:$0xff]
        %v506 = vmul.f32 %v504, %v299
        %v507 = vmul.f32 %v505, %v299
        %v508 = vadd.f32 %v506, %v307
        %v509 = vadd.f32 %v507, %v307
        %v510 = vxor.u32 %v508, 2147483648
        %v511 = vxor.u32 %v509, 2147483648
        %v512 = vmul.f32 %v510, 1.442695
        %v513 = vpow.pop %v512
        %v514 = vmul.f32 %v511, 1.442695
        %v515 = vpow.pop %v514
        %v516 = vadd.f32 %v513, 1.0
        %v517 = vadd.f32 %v515, 1.0
        %v518 = vrcp.pop %v516
        %v519 = vmul.f32 1.0, %v518
        %v520 = vrcp.pop %v517
        %v521 = vmul.f32 1.0, %v520
        %v522 = vmul.f32 %v508, %v519
        %v523 = vmul.f32 %v509, %v521
        %v524 = vmul.f32 %v522, %v329
        %v525 = vmul.f32 %v523, %v329
        %v526 = vsel %vm333, %v524, 0.0
        %527 = vadd.xlane.f32.xlu0 %v526
        %v528 = vpop.xlane.xlu0 %527
        %v529 = vsel %vm333, %v525, 0.0
        %530 = vadd.xlane.f32.xlu0 %v529
        %v531 = vpop.xlane.xlu0 %530
        %s532 = scalar_lea.vmem %s287, 96 [#allocation3]
        %533 = vst.msk [vmem:[%s532] sm:$0xff] %vm340, %v528
        %534 = vst.msk [vmem:[%s532 + $0x8] sm:$0xff] %vm340, %v531
        %s535 = scalar_lea.vmem %s266, 112 [#allocation2]
        %v536 = vld [vmem:[%s535] sm:$0xff]
        %v537 = vld [vmem:[%s535 + $0x8] sm:$0xff]
        %v538 = vmul.f32 %v536, %v299
        %v539 = vmul.f32 %v537, %v299
        %v540 = vadd.f32 %v538, %v307
        %v541 = vadd.f32 %v539, %v307
        %v542 = vxor.u32 %v540, 2147483648
        %v543 = vxor.u32 %v541, 2147483648
        %v544 = vmul.f32 %v542, 1.442695
        %v545 = vpow.pop %v544
        %v546 = vmul.f32 %v543, 1.442695
        %v547 = vpow.pop %v546
        %v548 = vadd.f32 %v545, 1.0
        %v549 = vadd.f32 %v547, 1.0
        %v550 = vrcp.pop %v548
        %v551 = vmul.f32 1.0, %v550
        %v552 = vrcp.pop %v549
        %v553 = vmul.f32 1.0, %v552
        %v554 = vmul.f32 %v540, %v551
        %v555 = vmul.f32 %v541, %v553
        %v556 = vmul.f32 %v554, %v329
        %v557 = vmul.f32 %v555, %v329
        %v558 = vsel %vm333, %v556, 0.0
        %559 = vadd.xlane.f32.xlu0 %v558
        %v560 = vpop.xlane.xlu0 %559
        %v561 = vsel %vm333, %v557, 0.0
        %562 = vadd.xlane.f32.xlu0 %v561
        %v563 = vpop.xlane.xlu0 %562
        %s564 = scalar_lea.vmem %s287, 112 [#allocation3]
        %565 = vst.msk [vmem:[%s564] sm:$0xff] %vm340, %v560
        %566 = vst.msk [vmem:[%s564 + $0x8] sm:$0xff] %vm340, %v563
        %s567 = sand.u32 %s112, 1
        %s568 = sand.u32 %s112, 1
        %s569 = smul.addr %s568, 128
        %s570 = scalar_lea.vmem [#allocation3], %s569
        // Predicated region
        $region75: #{attn_edge_conv.4} parent=69 // pred_check
          %p571 = pneg %p122
        $region76: #{attn_edge_conv.4} parent=69 // pred_check_branch
          %573 = sbr.rel (%p571) target = $region78
        $region77: #{attn_edge_conv.4} parent=69 // pred_region
          %s574 = smul.u32 2, %s15
          %s575 = smul.addr %s574, 8
          %s576 = scalar_lea.vmem %s4, %s575
          // Predicated region
          $region79: #{attn_edge_conv.4} parent=77 // pred_check
            _
          $region80: #{attn_edge_conv.4} parent=77 // pred_check_branch
            %578 = sbr.rel (0) target = $region82
          $region81: #{attn_edge_conv.4} parent=77 // pred_region
            // Predicated region
            $region83: #{attn_edge_conv.4} parent=81 // pred_check
              _
            $region84: #{attn_edge_conv.4} parent=81 // pred_check_branch
              %580 = sbr.rel (0) target = $region86
            $region85: #{attn_edge_conv.4} parent=81 // pred_region
              // Predicated region
              $region98: #{attn_edge_conv.4} parent=85 // pred_check
                _
              $region99: #{attn_edge_conv.4} parent=85 // pred_check_branch
                %626 = sbr.rel (0) target = $region101
              $region100: #{attn_edge_conv.4} parent=85 // pred_region
                loop: start=0, step=1, limit=1
                $region102: #{attn_edge_conv.4} parent=100 // loop_pre_header
                  _
                $region103: #{attn_edge_conv.4} parent=100 // loop_header
                  %s628 = sphi 0, %s632
                  %p629 = scmp.ge.s32.totalorder %s628, 1
                  %s633 = sphi %s570, %s570
                  %s634 = sphi %s576, %s576
                $region104: #{attn_edge_conv.4} parent=100 // loop_header_branch
                  %631 = sbr.rel (%p629) target = $region108
                $region105: #{attn_edge_conv.4} parent=100 // loop_body
                  %v635 = vld [vmem:[%s633] sm:$0xff]
                  %636 = vst [vmem:[%s634] sm:$0xff] %v635
                  %v637 = vld [vmem:[%s633 + $0x8] sm:$0xff]
                  %638 = vst [vmem:[%s634 + $0x8] sm:$0xff] %v637
                  %v639 = vld [vmem:[%s633 + $0x10] sm:$0xff]
                  %640 = vst [vmem:[%s634 + $0x20] sm:$0xff] %v639
                  %v641 = vld [vmem:[%s633 + $0x18] sm:$0xff]
                  %642 = vst [vmem:[%s634 + $0x28] sm:$0xff] %v641
                  %v643 = vld [vmem:[%s633 + $0x20] sm:$0xff]
                  %644 = vst [vmem:[%s634 + $0x40] sm:$0xff] %v643
                  %v645 = vld [vmem:[%s633 + $0x28] sm:$0xff]
                  %646 = vst [vmem:[%s634 + $0x48] sm:$0xff] %v645
                  %v647 = vld [vmem:[%s633 + $0x30] sm:$0xff]
                  %648 = vst [vmem:[%s634 + $0x60] sm:$0xff] %v647
                  %v649 = vld [vmem:[%s633 + $0x38] sm:$0xff]
                  %650 = vst [vmem:[%s634 + $0x68] sm:$0xff] %v649
                  %v651 = vld [vmem:[%s633 + $0x40] sm:$0xff]
                  %652 = vst [vmem:[%s634 + $0x80] sm:$0xff] %v651
                  %v653 = vld [vmem:[%s633 + $0x48] sm:$0xff]
                  %654 = vst [vmem:[%s634 + $0x88] sm:$0xff] %v653
                  %v655 = vld [vmem:[%s633 + $0x50] sm:$0xff]
                  %656 = vst [vmem:[%s634 + $0xa0] sm:$0xff] %v655
                  %v657 = vld [vmem:[%s633 + $0x58] sm:$0xff]
                  %658 = vst [vmem:[%s634 + $0xa8] sm:$0xff] %v657
                  %v659 = vld [vmem:[%s633 + $0x60] sm:$0xff]
                  %660 = vst [vmem:[%s634 + $0xc0] sm:$0xff] %v659
                  %v661 = vld [vmem:[%s633 + $0x68] sm:$0xff]
                  %662 = vst [vmem:[%s634 + $0xc8] sm:$0xff] %v661
                  %v663 = vld [vmem:[%s633 + $0x70] sm:$0xff]
                  %664 = vst [vmem:[%s634 + $0xe0] sm:$0xff] %v663
                  %v665 = vld [vmem:[%s633 + $0x78] sm:$0xff]
                  %666 = vst [vmem:[%s634 + $0xe8] sm:$0xff] %v665
                $region106: #{attn_edge_conv.4} parent=100 // loop_footer
                  %s632 = sadd.s32 1, %s628
                $region107: #{attn_edge_conv.4} parent=100 // loop_footer_branch
                  %627 = sbr.rel target = $region103
                $region108: #{attn_edge_conv.4} parent=100 // loop_exit
                  _
              $region101: #{attn_edge_conv.4} parent=85 // pred_fallthru
                _
              // Predicated region
              $region109: #{attn_edge_conv.4} parent=85 // pred_check
                _
              $region110: #{attn_edge_conv.4} parent=85 // pred_check_branch
                %668 = sbr.rel target = $region112
              $region111: #{attn_edge_conv.4} parent=85 // pred_region
                _
              $region112: #{attn_edge_conv.4} parent=85 // pred_fallthru
                _
            $region86: #{attn_edge_conv.4} parent=81 // pred_fallthru
              _
            // Predicated region
            $region87: #{attn_edge_conv.4} parent=81 // pred_check
              _
            $region88: #{attn_edge_conv.4} parent=81 // pred_check_branch
              %582 = sbr.rel target = $region90
            $region89: #{attn_edge_conv.4} parent=81 // pred_region
              %s584 = ssub.s32 256, 1
              loop: start=0, step=1, limit=1
              $region91: #{attn_edge_conv.4} parent=89 // loop_pre_header
                _
              $region92: #{attn_edge_conv.4} parent=89 // loop_header
                %s586 = sphi 0, %s590
                %p587 = scmp.ge.s32.totalorder %s586, 1
                %s591 = sphi %s570, %s570
                %s592 = sphi %s576, %s576
              $region93: #{attn_edge_conv.4} parent=89 // loop_header_branch
                %589 = sbr.rel (%p587) target = $region97
              $region94: #{attn_edge_conv.4} parent=89 // loop_body
                %v593 = vld [vmem:[%s591] sm:%s584]
                %594 = vst [vmem:[%s592] sm:%s584] %v593
                %v595 = vld [vmem:[%s591 + $0x8] sm:%s584]
                %596 = vst [vmem:[%s592 + $0x8] sm:%s584] %v595
                %v597 = vld [vmem:[%s591 + $0x10] sm:%s584]
                %598 = vst [vmem:[%s592 + $0x20] sm:%s584] %v597
                %v599 = vld [vmem:[%s591 + $0x18] sm:%s584]
                %600 = vst [vmem:[%s592 + $0x28] sm:%s584] %v599
                %v601 = vld [vmem:[%s591 + $0x20] sm:%s584]
                %602 = vst [vmem:[%s592 + $0x40] sm:%s584] %v601
                %v603 = vld [vmem:[%s591 + $0x28] sm:%s584]
                %604 = vst [vmem:[%s592 + $0x48] sm:%s584] %v603
                %v605 = vld [vmem:[%s591 + $0x30] sm:%s584]
                %606 = vst [vmem:[%s592 + $0x60] sm:%s584] %v605
                %v607 = vld [vmem:[%s591 + $0x38] sm:%s584]
                %608 = vst [vmem:[%s592 + $0x68] sm:%s584] %v607
                %v609 = vld [vmem:[%s591 + $0x40] sm:%s584]
                %610 = vst [vmem:[%s592 + $0x80] sm:%s584] %v609
                %v611 = vld [vmem:[%s591 + $0x48] sm:%s584]
                %612 = vst [vmem:[%s592 + $0x88] sm:%s584] %v611
                %v613 = vld [vmem:[%s591 + $0x50] sm:%s584]
                %614 = vst [vmem:[%s592 + $0xa0] sm:%s584] %v613
                %v615 = vld [vmem:[%s591 + $0x58] sm:%s584]
                %616 = vst [vmem:[%s592 + $0xa8] sm:%s584] %v615
                %v617 = vld [vmem:[%s591 + $0x60] sm:%s584]
                %618 = vst [vmem:[%s592 + $0xc0] sm:%s584] %v617
                %v619 = vld [vmem:[%s591 + $0x68] sm:%s584]
                %620 = vst [vmem:[%s592 + $0xc8] sm:%s584] %v619
                %v621 = vld [vmem:[%s591 + $0x70] sm:%s584]
                %622 = vst [vmem:[%s592 + $0xe0] sm:%s584] %v621
                %v623 = vld [vmem:[%s591 + $0x78] sm:%s584]
                %624 = vst [vmem:[%s592 + $0xe8] sm:%s584] %v623
              $region95: #{attn_edge_conv.4} parent=89 // loop_footer
                %s590 = sadd.s32 1, %s586
              $region96: #{attn_edge_conv.4} parent=89 // loop_footer_branch
                %585 = sbr.rel target = $region92
              $region97: #{attn_edge_conv.4} parent=89 // loop_exit
                _
            $region90: #{attn_edge_conv.4} parent=81 // pred_fallthru
              _
          $region82: #{attn_edge_conv.4} parent=77 // pred_fallthru
            _
          %669 = vnop
        $region78: #{attn_edge_conv.4} parent=69 // pred_fallthru
          _
      $region70: #{attn_edge_conv.4} parent=5 // pred_fallthru
        _
      %p670 = scmp.le.s32.totalorder 2, %s10
      // Predicated region
      $region113: #{attn_edge_conv.4} parent=5 // pred_check
        %p671 = pneg %p670
      $region114: #{attn_edge_conv.4} parent=5 // pred_check_branch
        %673 = sbr.rel (%p671) target = $region116
      $region115: #{attn_edge_conv.4} parent=5 // pred_region
        %s674 = ssub.s32 %s10, 2
        // Predicated region
        $region117: #{attn_edge_conv.4} parent=115 // pred_check
          %p675 = pneg %p128
        $region118: #{attn_edge_conv.4} parent=115 // pred_check_branch
          %677 = sbr.rel (%p675) target = $region120
        $region119: #{attn_edge_conv.4} parent=115 // pred_region
          %s678 = sand.u32 %s113, 1
          %s679 = sand.u32 %s113, 1
          %s680 = smul.addr %s679, 128
          %s681 = scalar_lea.vmem [#allocation3], %s680
        $region120: #{attn_edge_conv.4} parent=115 // pred_fallthru
          _
      $region116: #{attn_edge_conv.4} parent=5 // pred_fallthru
        _
    $region6: #{attn_edge_conv.4} parent=1 // loop_footer
      %s14 = sadd.s32 1, %s10
    $region7: #{attn_edge_conv.4} parent=1 // loop_footer_branch
      %9 = sbr.rel target = $region3
    $region8: #{attn_edge_conv.4} parent=1 // loop_exit
      _

// kernel: attn_edge_conv.3
$region0: #{attn_edge_conv.3}
  #allocation0 [shape = 'u32[]', space=smem, size = 0x4, offset = 0x4, fixed_abs, tag = 'smem constant byte address 0x4 - core index']
  #allocation1 [shape = 'u32[144,128]{1,0:T(1,128)}', space=vmem, size = 0x12000, scoped, tag = 'internal scratch']
  %s0 = inlined_call_operand.vmem [shape: f32[32,4], index: 0, kind: input, shape index: {}, may-alias: {0,1}]
  %s1 = inlined_call_operand.vmem [shape: f32[32,4], index: 1, kind: input, shape index: {}, may-alias: {0,1}]
  %s2 = inlined_call_operand.vmem [shape: s32[32,1], index: 2, kind: input, shape index: {}]
  %s3 = inlined_call_operand.vmem [shape: s32[1,32], index: 3, kind: input, shape index: {}]
  %s4 = inlined_call_operand.vmem [shape: f32[4,32], index: 4, kind: input, shape index: {}]
  %s5 = inlined_call_operand.vmem [shape: f32[4,32], index: 5, kind: input, shape index: {}]
  %s6 = inlined_call_operand.vmem [shape: f32[1,32], index: 6, kind: input, shape index: {}]
  %s7 = inlined_call_operand.vmem [shape: f32[8,32,32], index: 7, kind: output, shape index: {0}]
  %s8 = inlined_call_operand.vmem [shape: f32[2,1,32], index: 8, kind: output, shape index: {1}]
  %s9 = inlined_call_operand.vmem [shape: f32[2,1,32], index: 9, kind: output, shape index: {2}]
  %10 = xla_tuple %s7, %s8, %s9
  %s11 = sld [smem:[#allocation0]]
  $region118: #{attn_edge_conv.3} parent=0
    _
  %s13 = ssub.s32 1, %s11
  %s14 = scalar_select 0, %s13, %s11
  $region1: #{attn_edge_conv.3} parent=0
    #allocation2 [shape = 'u8[131072]{0}', space=vmem, size = 0x20000, scoped, tag = 'output window, operand 0']
    loop: start=0, step=1, limit=4
    $region2: #{attn_edge_conv.3} parent=1 // loop_pre_header
      _
    $region3: #{attn_edge_conv.3} parent=1 // loop_header
      %s16 = sphi 0, %s20
      %p17 = scmp.ge.s32.totalorder %s16, 4
      %s24 = sphi 0, %s24
      %s26 = sphi 0, %s24
      %s27 = sphi 0, %s26
      %s41 = sphi 0, %s27
      %s47 = sphi 0, %s49
      %s50 = sphi 0, %s47
      %s51 = sphi 0, %s50
      %s67 = sphi 0, %s51
      %s73 = sphi 0, %s75
      %s76 = sphi 0, %s73
      %s77 = sphi 0, %s76
      %s93 = sphi 0, %s77
      %s97 = sphi 0, %s97
      %s99 = sphi 0, %s97
      %s100 = sphi 0, %s99
      %s114 = sphi 0, %s100
      %s118 = sphi 0, %s118
      %s120 = sphi 0, %s118
      %s121 = sphi 0, %s120
      %s135 = sphi 0, %s121
      %s139 = sphi 0, %s139
      %s141 = sphi 0, %s139
      %s142 = sphi 0, %s141
      %s156 = sphi 0, %s142
      %s160 = sphi 0, %s160
      %s162 = sphi 0, %s160
      %s163 = sphi 0, %s162
      %s177 = sphi 0, %s163
      %s183 = sphi 0, %s185
      %s186 = sphi 0, %s183
      %s187 = sphi 0, %s186
      %s203 = sphi 0, %s187
      %s209 = sphi 0, %s211
      %s212 = sphi 0, %s209
      %s213 = sphi 0, %s212
      %s229 = sphi 0, %s213
      %s235 = sphi 0, %s237
      %s238 = sphi 0, %s235
      %s239 = sphi 0, %s238
      %s255 = sphi 0, %s239
    $region4: #{attn_edge_conv.3} parent=1 // loop_header_branch
      %19 = sbr.rel (%p17) target = $region8
    $region5: #{attn_edge_conv.3} parent=1 // loop_body
      %s21 = ssub.s32 %s16, 1
      %s22 = ssub.s32 %s16, 2
      %s23 = sadd.s32 %s16, 1
      %s25 = sadd.s32 %s24, 1
      %p28 = scmp.eq.s32.totalorder %s16, 1
      %p29 = scmp.ne.s32.totalorder %s24, %s26
      %p30 = scmp.eq.s32.totalorder %s16, 0
      %p31 = por %p29, %p30
      %p32 = scmp.ne.s32.totalorder %s24, %s26
      %p33 = scmp.eq.s32.totalorder %s21, 1
      %p34 = por %p32, %p33
      %p35 = scmp.ne.s32.totalorder %s26, %s27
      %p36 = scmp.eq.s32.totalorder %s21, 0
      %p37 = por %p35, %p36
      %p38 = scmp.ne.s32.totalorder %s26, %s27
      %p39 = scmp.eq.s32.totalorder %s22, 1
      %p40 = por %p38, %p39
      %p42 = scmp.ne.s32.totalorder %s27, %s41
      %p43 = scmp.eq.s32.totalorder %s22, 0
      %p44 = por %p42, %p43
      %s45 = ssub.s32 %s16, %s23
      %p46 = scmp.eq.s32.totalorder %s45, 0
      %s48 = sadd.s32 %s47, 1
      %s49 = scalar_select %p46, %s47, %s48
      %p52 = pneg %p46
      %p53 = scmp.eq.s32.totalorder %s16, 1
      %p54 = por %p52, %p53
      %p55 = scmp.ne.s32.totalorder %s47, %s50
      %p56 = scmp.eq.s32.totalorder %s16, 0
      %p57 = por %p55, %p56
      %p58 = scmp.ne.s32.totalorder %s47, %s50
      %p59 = scmp.eq.s32.totalorder %s21, 1
      %p60 = por %p58, %p59
      %p61 = scmp.ne.s32.totalorder %s50, %s51
      %p62 = scmp.eq.s32.totalorder %s21, 0
      %p63 = por %p61, %p62
      %p64 = scmp.ne.s32.totalorder %s50, %s51
      %p65 = scmp.eq.s32.totalorder %s22, 1
      %p66 = por %p64, %p65
      %p68 = scmp.ne.s32.totalorder %s51, %s67
      %p69 = scmp.eq.s32.totalorder %s22, 0
      %p70 = por %p68, %p69
      %s71 = ssub.s32 %s16, %s23
      %p72 = scmp.eq.s32.totalorder %s71, 0
      %s74 = sadd.s32 %s73, 1
      %s75 = scalar_select %p72, %s73, %s74
      %p78 = pneg %p72
      %p79 = scmp.eq.s32.totalorder %s16, 1
      %p80 = por %p78, %p79
      %p81 = scmp.ne.s32.totalorder %s73, %s76
      %p82 = scmp.eq.s32.totalorder %s16, 0
      %p83 = por %p81, %p82
      %p84 = scmp.ne.s32.totalorder %s73, %s76
      %p85 = scmp.eq.s32.totalorder %s21, 1
      %p86 = por %p84, %p85
      %p87 = scmp.ne.s32.totalorder %s76, %s77
      %p88 = scmp.eq.s32.totalorder %s21, 0
      %p89 = por %p87, %p88
      %p90 = scmp.ne.s32.totalorder %s76, %s77
      %p91 = scmp.eq.s32.totalorder %s22, 1
      %p92 = por %p90, %p91
      %p94 = scmp.ne.s32.totalorder %s77, %s93
      %p95 = scmp.eq.s32.totalorder %s22, 0
      %p96 = por %p94, %p95
      %s98 = sadd.s32 %s97, 1
      %p101 = scmp.eq.s32.totalorder %s16, 1
      %p102 = scmp.ne.s32.totalorder %s97, %s99
      %p103 = scmp.eq.s32.totalorder %s16, 0
      %p104 = por %p102, %p103
      %p105 = scmp.ne.s32.totalorder %s97, %s99
      %p106 = scmp.eq.s32.totalorder %s21, 1
      %p107 = por %p105, %p106
      %p108 = scmp.ne.s32.totalorder %s99, %s100
      %p109 = scmp.eq.s32.totalorder %s21, 0
      %p110 = por %p108, %p109
      %p111 = scmp.ne.s32.totalorder %s99, %s100
      %p112 = scmp.eq.s32.totalorder %s22, 1
      %p113 = por %p111, %p112
      %p115 = scmp.ne.s32.totalorder %s100, %s114
      %p116 = scmp.eq.s32.totalorder %s22, 0
      %p117 = por %p115, %p116
      %s119 = sadd.s32 %s118, 1
      %p122 = scmp.eq.s32.totalorder %s16, 1
      %p123 = scmp.ne.s32.totalorder %s118, %s120
      %p124 = scmp.eq.s32.totalorder %s16, 0
      %p125 = por %p123, %p124
      %p126 = scmp.ne.s32.totalorder %s118, %s120
      %p127 = scmp.eq.s32.totalorder %s21, 1
      %p128 = por %p126, %p127
      %p129 = scmp.ne.s32.totalorder %s120, %s121
      %p130 = scmp.eq.s32.totalorder %s21, 0
      %p131 = por %p129, %p130
      %p132 = scmp.ne.s32.totalorder %s120, %s121
      %p133 = scmp.eq.s32.totalorder %s22, 1
      %p134 = por %p132, %p133
      %p136 = scmp.ne.s32.totalorder %s121, %s135
      %p137 = scmp.eq.s32.totalorder %s22, 0
      %p138 = por %p136, %p137
      %s140 = sadd.s32 %s139, 1
      %p143 = scmp.eq.s32.totalorder %s16, 1
      %p144 = scmp.ne.s32.totalorder %s139, %s141
      %p145 = scmp.eq.s32.totalorder %s16, 0
      %p146 = por %p144, %p145
      %p147 = scmp.ne.s32.totalorder %s139, %s141
      %p148 = scmp.eq.s32.totalorder %s21, 1
      %p149 = por %p147, %p148
      %p150 = scmp.ne.s32.totalorder %s141, %s142
      %p151 = scmp.eq.s32.totalorder %s21, 0
      %p152 = por %p150, %p151
      %p153 = scmp.ne.s32.totalorder %s141, %s142
      %p154 = scmp.eq.s32.totalorder %s22, 1
      %p155 = por %p153, %p154
      %p157 = scmp.ne.s32.totalorder %s142, %s156
      %p158 = scmp.eq.s32.totalorder %s22, 0
      %p159 = por %p157, %p158
      %s161 = sadd.s32 %s160, 1
      %p164 = scmp.eq.s32.totalorder %s16, 1
      %p165 = scmp.ne.s32.totalorder %s160, %s162
      %p166 = scmp.eq.s32.totalorder %s16, 0
      %p167 = por %p165, %p166
      %p168 = scmp.ne.s32.totalorder %s160, %s162
      %p169 = scmp.eq.s32.totalorder %s21, 1
      %p170 = por %p168, %p169
      %p171 = scmp.ne.s32.totalorder %s162, %s163
      %p172 = scmp.eq.s32.totalorder %s21, 0
      %p173 = por %p171, %p172
      %p174 = scmp.ne.s32.totalorder %s162, %s163
      %p175 = scmp.eq.s32.totalorder %s22, 1
      %p176 = por %p174, %p175
      %p178 = scmp.ne.s32.totalorder %s163, %s177
      %p179 = scmp.eq.s32.totalorder %s22, 0
      %p180 = por %p178, %p179
      %s181 = ssub.s32 %s16, %s23
      %p182 = scmp.eq.s32.totalorder %s181, 0
      %s184 = sadd.s32 %s183, 1
      %s185 = scalar_select %p182, %s183, %s184
      %p188 = pneg %p182
      %p189 = scmp.eq.s32.totalorder %s16, 1
      %p190 = por %p188, %p189
      %p191 = scmp.ne.s32.totalorder %s183, %s186
      %p192 = scmp.eq.s32.totalorder %s16, 0
      %p193 = por %p191, %p192
      %p194 = scmp.ne.s32.totalorder %s183, %s186
      %p195 = scmp.eq.s32.totalorder %s21, 1
      %p196 = por %p194, %p195
      %p197 = scmp.ne.s32.totalorder %s186, %s187
      %p198 = scmp.eq.s32.totalorder %s21, 0
      %p199 = por %p197, %p198
      %p200 = scmp.ne.s32.totalorder %s186, %s187
      %p201 = scmp.eq.s32.totalorder %s22, 1
      %p202 = por %p200, %p201
      %p204 = scmp.ne.s32.totalorder %s187, %s203
      %p205 = scmp.eq.s32.totalorder %s22, 0
      %p206 = por %p204, %p205
      %s207 = ssub.s32 %s16, %s23
      %p208 = scmp.eq.s32.totalorder %s207, 0
      %s210 = sadd.s32 %s209, 1
      %s211 = scalar_select %p208, %s209, %s210
      %p214 = pneg %p208
      %p215 = scmp.eq.s32.totalorder %s16, 1
      %p216 = por %p214, %p215
      %p217 = scmp.ne.s32.totalorder %s209, %s212
      %p218 = scmp.eq.s32.totalorder %s16, 0
      %p219 = por %p217, %p218
      %p220 = scmp.ne.s32.totalorder %s209, %s212
      %p221 = scmp.eq.s32.totalorder %s21, 1
      %p222 = por %p220, %p221
      %p223 = scmp.ne.s32.totalorder %s212, %s213
      %p224 = scmp.eq.s32.totalorder %s21, 0
      %p225 = por %p223, %p224
      %p226 = scmp.ne.s32.totalorder %s212, %s213
      %p227 = scmp.eq.s32.totalorder %s22, 1
      %p228 = por %p226, %p227
      %p230 = scmp.ne.s32.totalorder %s213, %s229
      %p231 = scmp.eq.s32.totalorder %s22, 0
      %p232 = por %p230, %p231
      %s233 = ssub.s32 %s16, %s23
      %p234 = scmp.eq.s32.totalorder %s233, 0
      %s236 = sadd.s32 %s235, 1
      %s237 = scalar_select %p234, %s235, %s236
      %p240 = pneg %p234
      %p241 = scmp.eq.s32.totalorder %s16, 1
      %p242 = por %p240, %p241
      %p243 = scmp.ne.s32.totalorder %s235, %s238
      %p244 = scmp.eq.s32.totalorder %s16, 0
      %p245 = por %p243, %p244
      %p246 = scmp.ne.s32.totalorder %s235, %s238
      %p247 = scmp.eq.s32.totalorder %s21, 1
      %p248 = por %p246, %p247
      %p249 = scmp.ne.s32.totalorder %s238, %s239
      %p250 = scmp.eq.s32.totalorder %s21, 0
      %p251 = por %p249, %p250
      %p252 = scmp.ne.s32.totalorder %s238, %s239
      %p253 = scmp.eq.s32.totalorder %s22, 1
      %p254 = por %p252, %p253
      %p256 = scmp.ne.s32.totalorder %s239, %s255
      %p257 = scmp.eq.s32.totalorder %s22, 0
      %p258 = por %p256, %p257
      %p259 = scmp.le.s32.totalorder 1, %s16
      %p260 = scmp.lt.s32.totalorder %s16, 3
      %p261 = pnand %p259, %p260
      %p262 = pneg %p261
      // Predicated region
      $region9: #{attn_edge_conv.3} parent=5 // pred_check
        _
      $region10: #{attn_edge_conv.3} parent=5 // pred_check_branch
        %264 = sbr.rel (%p261) target = $region12
      $region11: #{attn_edge_conv.3} parent=5 // pred_region
        %s265 = ssub.s32 %s16, 1
        // Predicated region
        $region13: #{attn_edge_conv.3} parent=11 // pred_check
          %p266 = pneg %p37
        $region14: #{attn_edge_conv.3} parent=11 // pred_check_branch
          %268 = sbr.rel (%p266) target = $region16
        $region15: #{attn_edge_conv.3} parent=11 // pred_region
          _
        $region16: #{attn_edge_conv.3} parent=11 // pred_fallthru
          _
        // Predicated region
        $region17: #{attn_edge_conv.3} parent=11 // pred_check
          %p269 = pneg %p110
        $region18: #{attn_edge_conv.3} parent=11 // pred_check_branch
          %271 = sbr.rel (%p269) target = $region20
        $region19: #{attn_edge_conv.3} parent=11 // pred_region
          _
        $region20: #{attn_edge_conv.3} parent=11 // pred_fallthru
          _
        // Predicated region
        $region21: #{attn_edge_conv.3} parent=11 // pred_check
          %p272 = pneg %p131
        $region22: #{attn_edge_conv.3} parent=11 // pred_check_branch
          %274 = sbr.rel (%p272) target = $region24
        $region23: #{attn_edge_conv.3} parent=11 // pred_region
          _
        $region24: #{attn_edge_conv.3} parent=11 // pred_fallthru
          _
        // Predicated region
        $region25: #{attn_edge_conv.3} parent=11 // pred_check
          %p275 = pneg %p152
        $region26: #{attn_edge_conv.3} parent=11 // pred_check_branch
          %277 = sbr.rel (%p275) target = $region28
        $region27: #{attn_edge_conv.3} parent=11 // pred_region
          _
        $region28: #{attn_edge_conv.3} parent=11 // pred_fallthru
          _
        // Predicated region
        $region29: #{attn_edge_conv.3} parent=11 // pred_check
          %p278 = pneg %p173
        $region30: #{attn_edge_conv.3} parent=11 // pred_check_branch
          %280 = sbr.rel (%p278) target = $region32
        $region31: #{attn_edge_conv.3} parent=11 // pred_region
          _
        $region32: #{attn_edge_conv.3} parent=11 // pred_fallthru
          _
      $region12: #{attn_edge_conv.3} parent=5 // pred_fallthru
        _
      %p281 = scmp.lt.s32.totalorder %s16, 2
      // Predicated region
      $region33: #{attn_edge_conv.3} parent=5 // pred_check
        %p282 = pneg %p281
      $region34: #{attn_edge_conv.3} parent=5 // pred_check_branch
        %284 = sbr.rel (%p282) target = $region36
      $region35: #{attn_edge_conv.3} parent=5 // pred_region
        // Predicated region
        $region37: #{attn_edge_conv.3} parent=35 // pred_check
          %p285 = pneg %p57
        $region38: #{attn_edge_conv.3} parent=35 // pred_check_branch
          %287 = sbr.rel (%p285) target = $region40
        $region39: #{attn_edge_conv.3} parent=35 // pred_region
          %s288 = smul.u32 2, %s16
          %p289 = scmp.lt.s32.totalorder %s288, 3
          %s290 = scalar_select %p289, %s288, 3
          %s291 = smul.addr %s290, 8
          %s292 = scalar_lea.vmem %s1, %s291
          %s293 = smul.u32 2, %s16
        $region40: #{attn_edge_conv.3} parent=35 // pred_fallthru
          _
        // Predicated region
        $region41: #{attn_edge_conv.3} parent=35 // pred_check
          %p294 = pneg %p83
        $region42: #{attn_edge_conv.3} parent=35 // pred_check_branch
          %296 = sbr.rel (%p294) target = $region44
        $region43: #{attn_edge_conv.3} parent=35 // pred_region
          %s297 = smul.u32 2, %s16
          %p298 = scmp.lt.s32.totalorder %s297, 3
          %s299 = scalar_select %p298, %s297, 3
          %s300 = smul.addr %s299, 8
          %s301 = scalar_lea.vmem %s2, %s300
          %s302 = smul.u32 2, %s16
        $region44: #{attn_edge_conv.3} parent=35 // pred_fallthru
          _
      $region36: #{attn_edge_conv.3} parent=5 // pred_fallthru
        _
      %p303 = scmp.le.s32.totalorder 1, %s16
      %p304 = scmp.lt.s32.totalorder %s16, 3
      %p305 = pnand %p303, %p304
      %p306 = pneg %p305
      // Predicated region
      $region45: #{attn_edge_conv.3} parent=5 // pred_check
        _
      $region46: #{attn_edge_conv.3} parent=5 // pred_check_branch
        %308 = sbr.rel (%p305) target = $region48
      $region47: #{attn_edge_conv.3} parent=5 // pred_region
        %s309 = ssub.s32 %s16, 1
        %p310 = pneg %p37
        %p311 = pneg %p34
        %s312 = smul.u32 2, %s21
        %p313 = scmp.lt.s32.totalorder %s312, 3
        %s314 = scalar_select %p313, %s312, 3
        %s315 = smul.addr %s314, 8
        %s316 = scalar_lea.vmem %s1, %s315
        %p317 = pneg %p63
        %p318 = pneg %p60
        %s319 = smul.u32 2, %s21
        %p320 = scmp.lt.s32.totalorder %s319, 3
        %s321 = scalar_select %p320, %s319, 3
        %s322 = smul.addr %s321, 8
        %s323 = scalar_lea.vmem %s2, %s322
        %p324 = pneg %p89
        %p325 = pneg %p86
        %p326 = pneg %p110
        %p327 = pneg %p107
        %p328 = pneg %p131
        %p329 = pneg %p128
        %p330 = pneg %p152
        %p331 = pneg %p149
        %p332 = pneg %p173
        %p333 = pneg %p170
        %p334 = pneg %p199
        %p335 = pneg %p196
        %s336 = sand.u32 %s186, 1
        %s337 = sand.u32 %s186, 1
        %s338 = smul.addr %s337, 128
        %s339 = scalar_lea.vmem [#allocation2], %s338
        %p340 = pneg %p225
        %p341 = pneg %p222
        %p342 = scmp.lt.s32.totalorder %s21, 1
        %s343 = scalar_select %p342, %s21, 1
        %s344 = scalar_lea.vmem %s8, %s343
        %p345 = pneg %p251
        %p346 = pneg %p248
        %p347 = scmp.lt.s32.totalorder %s21, 1
        %s348 = scalar_select %p347, %s21, 1
        %s349 = scalar_lea.vmem %s9, %s348
        %s350 = smul.u32 2, %s21
        %p351 = scmp.lt.s32.totalorder %s350, 3
        %s352 = scalar_select %p351, %s350, 3
        %s353 = smul.addr %s352, 8
        %s354 = scalar_lea.vmem %s1, %s353
        %s355 = smul.u32 2, %s21
        %s356 = smul.u32 2, %s21
        %p357 = scmp.lt.s32.totalorder %s356, 3
        %s358 = scalar_select %p357, %s356, 3
        %s359 = smul.addr %s358, 8
        %s360 = scalar_lea.vmem %s2, %s359
        %s361 = smul.u32 2, %s21
        %s362 = smul.u32 2, %s21
        %p363 = scmp.lt.s32.totalorder %s21, 1
        %s364 = scalar_select %p363, %s21, 1
        %s365 = scalar_lea.vmem %s8, %s364
        %p366 = scmp.lt.s32.totalorder %s21, 1
        %s367 = scalar_select %p366, %s21, 1
        %s368 = scalar_lea.vmem %s9, %s367
        %v370 = vld [vmem:[%s0] sm:$0xff]
        %v371 = vld [vmem:[%s0 + $0x8] sm:$0xff]
        %v372 = vld [vmem:[%s0 + $0x10] sm:$0xff]
        %v373 = vld [vmem:[%s0 + $0x18] sm:$0xff]
        %v374 = vld [vmem:[%s354] sm:$0xff]
        %v375 = vld [vmem:[%s354 + $0x8] sm:$0xff]
        %vm376 = vcmask 31744
        %v378 = vsel %vm376, %v374, 0
        %v381 = vsel %vm376, %v375, 0
        %v384 = vsel %vm376, %v370, 0
        %v387 = vsel %vm376, %v371, 0
        %v390 = vsel %vm376, %v372, 0
        %v393 = vsel %vm376, %v373, 0
        %395 = vmatprep.subr.mxu0 0.0
        %396 = vmatpush1.xpose.msra.mxu0 0.0
        %397 = vmatprep.subr.mxu0 0.0
        %398 = vmatpush1.xpose.msra.mxu0 0.0
        %399 = vmatprep.subr.mxu0 0.0
        %400 = vmatpush1.xpose.msra.mxu0 0.0
        %401 = vmatprep.subr.mxu0 0.0
        %402 = vmatpush1.xpose.msra.mxu0 0.0
        %403 = vmatprep.subr.mxu0 0.0
        %404 = vmatpush1.xpose.msra.mxu0 0.0
        %405 = vmatprep.subr.mxu0 0.0
        %406 = vmatpush1.xpose.msra.mxu0 0.0
        %407 = vmatprep.subr.mxu0 0.0
        %408 = vmatpush1.xpose.msra.mxu0 0.0
        %409 = vmatprep.subr.mxu0 0.0
        %410 = vmatpush1.xpose.msra.mxu0 0.0
        %411 = vmatprep.subr.mxu0 0.0
        %412 = vmatpush1.xpose.msra.mxu0 0.0
        %413 = vmatprep.subr.mxu0 0.0
        %414 = vmatpush1.xpose.msra.mxu0 0.0
        %415 = vmatprep.subr.mxu0 0.0
        %416 = vmatpush1.xpose.msra.mxu0 0.0
        %417 = vmatprep.subr.mxu0 0.0
        %418 = vmatpush1.xpose.msra.mxu0 0.0
        %419 = vmatprep.subr.mxu0 0.0
        %420 = vmatpush1.xpose.msra.mxu0 %v393
        %421 = vmatprep.subr.mxu0 0.0
        %422 = vmatpush1.xpose.msra.mxu0 %v390
        %423 = vmatprep.subr.mxu0 0.0
        %424 = vmatpush1.xpose.msra.mxu0 %v387
        %425 = vmatprep.subr.mxu0 0.0
        %426 = vmatpush1.xpose.msra.mxu0 %v384
        %427 = vmatprep.subr.mxu0 0.0
        %428 = vmatpush2.xpose.msra.mxu0 0.0
        %429 = vmatprep.subr.mxu0 0.0
        %430 = vmatpush2.xpose.msra.mxu0 0.0
        %431 = vmatprep.subr.mxu0 0.0
        %432 = vmatpush2.xpose.msra.mxu0 0.0
        %433 = vmatprep.subr.mxu0 0.0
        %434 = vmatpush2.xpose.msra.mxu0 0.0
        %435 = vmatprep.subr.mxu0 0.0
        %436 = vmatpush2.xpose.msra.mxu0 0.0
        %437 = vmatprep.subr.mxu0 0.0
        %438 = vmatpush2.xpose.msra.mxu0 0.0
        %439 = vmatprep.subr.mxu0 0.0
        %440 = vmatpush2.xpose.msra.mxu0 0.0
        %441 = vmatprep.subr.mxu0 0.0
        %442 = vmatpush2.xpose.msra.mxu0 0.0
        %443 = vmatprep.subr.mxu0 0.0
        %444 = vmatpush2.xpose.msra.mxu0 0.0
        %445 = vmatprep.subr.mxu0 0.0
        %446 = vmatpush2.xpose.msra.mxu0 0.0
        %447 = vmatprep.subr.mxu0 0.0
        %448 = vmatpush2.xpose.msra.mxu0 0.0
        %449 = vmatprep.subr.mxu0 0.0
        %450 = vmatpush2.xpose.msra.mxu0 0.0
        %451 = vmatprep.subr.mxu0 0.0
        %452 = vmatpush2.xpose.msra.mxu0 0.0
        %453 = vmatprep.subr.mxu0 0.0
        %454 = vmatpush2.xpose.msra.mxu0 0.0
        %455 = vmatprep.subr.mxu0 0.0
        %456 = vmatpush2.xpose.msra.mxu0 0.0
        %457 = vmatprep.subr.mxu0 0.0
        %458 = vmatpush2.xpose.msra.mxu0 0.0
        %459 = vmatprep.mubr.f32.mxu0 0.0
        %460 = vmatmul.mubr.f32.gmra.mxu0 %v378
        %v461 = vpop.f32.mrf.mxu0
        %v462 = vadd.f32 0.0, %v461
        %v463 = vpop.f32.mrf.mxu0
        %464 = vmatprep.mubr.f32.mxu0 0.0
        %465 = vmatmul.mubr.f32.gmra.mxu0 %v381
        %v466 = vpop.f32.mrf.mxu0
        %v467 = vadd.f32 0.0, %v466
        %v468 = vpop.f32.mrf.mxu0
        %469 = vdwg.mxu0
        %v470 = vmul.f32 %v370, %v370
        %v471 = vmul.f32 %v371, %v371
        %v472 = vmul.f32 %v372, %v372
        %v473 = vmul.f32 %v373, %v373
        %v475 = vsel %vm376, 1.0, 0
        %v478 = vsel %vm376, %v470, 0
        %v481 = vsel %vm376, %v471, 0
        %v484 = vsel %vm376, %v472, 0
        %v487 = vsel %vm376, %v473, 0
        %489 = vmatprep.subr.mxu0 0.0
        %490 = vmatpush1.xpose.msra.mxu0 0.0
        %491 = vmatprep.subr.mxu0 0.0
        %492 = vmatpush1.xpose.msra.mxu0 0.0
        %493 = vmatprep.subr.mxu0 0.0
        %494 = vmatpush1.xpose.msra.mxu0 0.0
        %495 = vmatprep.subr.mxu0 0.0
        %496 = vmatpush1.xpose.msra.mxu0 0.0
        %497 = vmatprep.subr.mxu0 0.0
        %498 = vmatpush1.xpose.msra.mxu0 0.0
        %499 = vmatprep.subr.mxu0 0.0
        %500 = vmatpush1.xpose.msra.mxu0 0.0
        %501 = vmatprep.subr.mxu0 0.0
        %502 = vmatpush1.xpose.msra.mxu0 0.0
        %503 = vmatprep.subr.mxu0 0.0
        %504 = vmatpush1.xpose.msra.mxu0 0.0
        %505 = vmatprep.subr.mxu0 0.0
        %506 = vmatpush1.xpose.msra.mxu0 0.0
        %507 = vmatprep.subr.mxu0 0.0
        %508 = vmatpush1.xpose.msra.mxu0 0.0
        %509 = vmatprep.subr.mxu0 0.0
        %510 = vmatpush1.xpose.msra.mxu0 0.0
        %511 = vmatprep.subr.mxu0 0.0
        %512 = vmatpush1.xpose.msra.mxu0 0.0
        %513 = vmatprep.subr.mxu0 0.0
        %514 = vmatpush1.xpose.msra.mxu0 %v487
        %515 = vmatprep.subr.mxu0 0.0
        %516 = vmatpush1.xpose.msra.mxu0 %v484
        %517 = vmatprep.subr.mxu0 0.0
        %518 = vmatpush1.xpose.msra.mxu0 %v481
        %519 = vmatprep.subr.mxu0 0.0
        %520 = vmatpush1.xpose.msra.mxu0 %v478
        %521 = vmatprep.subr.mxu0 0.0
        %522 = vmatpush2.xpose.msra.mxu0 0.0
        %523 = vmatprep.subr.mxu0 0.0
        %524 = vmatpush2.xpose.msra.mxu0 0.0
        %525 = vmatprep.subr.mxu0 0.0
        %526 = vmatpush2.xpose.msra.mxu0 0.0
        %527 = vmatprep.subr.mxu0 0.0
        %528 = vmatpush2.xpose.msra.mxu0 0.0
        %529 = vmatprep.subr.mxu0 0.0
        %530 = vmatpush2.xpose.msra.mxu0 0.0
        %531 = vmatprep.subr.mxu0 0.0
        %532 = vmatpush2.xpose.msra.mxu0 0.0
        %533 = vmatprep.subr.mxu0 0.0
        %534 = vmatpush2.xpose.msra.mxu0 0.0
        %535 = vmatprep.subr.mxu0 0.0
        %536 = vmatpush2.xpose.msra.mxu0 0.0
        %537 = vmatprep.subr.mxu0 0.0
        %538 = vmatpush2.xpose.msra.mxu0 0.0
        %539 = vmatprep.subr.mxu0 0.0
        %540 = vmatpush2.xpose.msra.mxu0 0.0
        %541 = vmatprep.subr.mxu0 0.0
        %542 = vmatpush2.xpose.msra.mxu0 0.0
        %543 = vmatprep.subr.mxu0 0.0
        %544 = vmatpush2.xpose.msra.mxu0 0.0
        %545 = vmatprep.subr.mxu0 0.0
        %546 = vmatpush2.xpose.msra.mxu0 0.0
        %547 = vmatprep.subr.mxu0 0.0
        %548 = vmatpush2.xpose.msra.mxu0 0.0
        %549 = vmatprep.subr.mxu0 0.0
        %550 = vmatpush2.xpose.msra.mxu0 0.0
        %551 = vmatprep.subr.mxu0 0.0
        %552 = vmatpush2.xpose.msra.mxu0 0.0
        %553 = vmatprep.mubr.f32.mxu0 0.0
        %554 = vmatmul.mubr.f32.gmra.mxu0 %v475
        %v555 = vpop.f32.mrf.mxu0
        %v556 = vadd.f32 0.0, %v555
        %v557 = vpop.f32.mrf.mxu0
        %558 = vdwg.mxu0
        %v559 = vmul.f32 %v374, %v374
        %v560 = vmul.f32 %v375, %v375
        %v561 = vsel %vm376, %v559, 0.0
        %562 = vadd.xlane.f32.xlu0 %v561
        %v563 = vpop.xlane.xlu0 %562
        %v564 = vsel %vm376, %v560, 0.0
        %565 = vadd.xlane.f32.xlu0 %v564
        %v566 = vpop.xlane.xlu0 %565
        %v567 = vmul.f32 %v462, 2.0
        %v568 = vmul.f32 %v467, 2.0
        %v569 = vlaneseq
        %v570 = vshrl.u32 %v569, 7
        %v571 = vsub.s32 0, %v570
        %v572 = vrot.slane %v556, %v571
        %v573 = vsub.f32 %v572, %v567
        %v574 = vsub.f32 %v572, %v568
        %v575 = vadd.f32 %v563, %v573
        %v576 = vadd.f32 %v566, %v574
        %v577 = vld [vmem:[%s360] sm:$0xff]
        %v578 = vld [vmem:[%s360 + $0x8] sm:$0xff]
        %v579 = vld [vmem:[%s3] sm:$0x1]
        %580 = vset.pattern.permute.xlu0 0
        %581 = vperm.xlu0 %580, %v577
        %v582 = vpop.permute.xlu0 %581
        %583 = vset.pattern.permute.xlu0 0
        %584 = vperm.xlu0 %583, %v578
        %v585 = vpop.permute.xlu0 %584
        %v586 = vlaneseq
        %v587 = vshrl.u32 %v586, 7
        %v588 = vsub.s32 0, %v587
        %v589 = vrot.slane %v579, %v588
        %vm590 = vcmp.eq.s32.totalorder %v582, %v589
        %vm591 = vcmp.eq.s32.totalorder %v585, %v589
        %v592 = vsel %vm590, %v575, 1e+30
        %v593 = vsel %vm591, %v576, 1e+30
        %v594 = vld [vmem:[%s4] sm:$0xf]
        %v595 = vld [vmem:[%s5] sm:$0xf]
        %v596 = vld [vmem:[%s6] sm:$0x1]
        %vm597 = vcmask 1043456
        %v599 = vsel %vm597, %v594, 0
        %601 = vmatprep.subr.mxu0 0.0
        %602 = vmatpush1.msra.mxu0 0.0
        %603 = vmatprep.subr.mxu0 0.0
        %604 = vmatpush1.msra.mxu0 0.0
        %605 = vmatprep.subr.mxu0 0.0
        %606 = vmatpush1.msra.mxu0 0.0
        %607 = vmatprep.subr.mxu0 0.0
        %608 = vmatpush1.msra.mxu0 0.0
        %609 = vmatprep.subr.mxu0 0.0
        %610 = vmatpush1.msra.mxu0 0.0
        %611 = vmatprep.subr.mxu0 0.0
        %612 = vmatpush1.msra.mxu0 0.0
        %613 = vmatprep.subr.mxu0 0.0
        %614 = vmatpush1.msra.mxu0 0.0
        %615 = vmatprep.subr.mxu0 0.0
        %616 = vmatpush1.msra.mxu0 0.0
        %617 = vmatprep.subr.mxu0 0.0
        %618 = vmatpush1.msra.mxu0 0.0
        %619 = vmatprep.subr.mxu0 0.0
        %620 = vmatpush1.msra.mxu0 0.0
        %621 = vmatprep.subr.mxu0 0.0
        %622 = vmatpush1.msra.mxu0 0.0
        %623 = vmatprep.subr.mxu0 0.0
        %624 = vmatpush1.msra.mxu0 0.0
        %625 = vmatprep.subr.mxu0 0.0
        %626 = vmatpush1.msra.mxu0 0.0
        %627 = vmatprep.subr.mxu0 0.0
        %628 = vmatpush1.msra.mxu0 0.0
        %629 = vmatprep.subr.mxu0 0.0
        %630 = vmatpush1.msra.mxu0 0.0
        %631 = vmatprep.subr.mxu0 0.0
        %632 = vmatpush1.msra.mxu0 %v599
        %633 = vmatprep.subr.mxu0 0.0
        %634 = vmatpush2.msra.mxu0 0.0
        %635 = vmatprep.subr.mxu0 0.0
        %636 = vmatpush2.msra.mxu0 0.0
        %637 = vmatprep.subr.mxu0 0.0
        %638 = vmatpush2.msra.mxu0 0.0
        %639 = vmatprep.subr.mxu0 0.0
        %640 = vmatpush2.msra.mxu0 0.0
        %641 = vmatprep.subr.mxu0 0.0
        %642 = vmatpush2.msra.mxu0 0.0
        %643 = vmatprep.subr.mxu0 0.0
        %644 = vmatpush2.msra.mxu0 0.0
        %645 = vmatprep.subr.mxu0 0.0
        %646 = vmatpush2.msra.mxu0 0.0
        %647 = vmatprep.subr.mxu0 0.0
        %648 = vmatpush2.msra.mxu0 0.0
        %649 = vmatprep.subr.mxu0 0.0
        %650 = vmatpush2.msra.mxu0 0.0
        %651 = vmatprep.subr.mxu0 0.0
        %652 = vmatpush2.msra.mxu0 0.0
        %653 = vmatprep.subr.mxu0 0.0
        %654 = vmatpush2.msra.mxu0 0.0
        %655 = vmatprep.subr.mxu0 0.0
        %656 = vmatpush2.msra.mxu0 0.0
        %657 = vmatprep.subr.mxu0 0.0
        %658 = vmatpush2.msra.mxu0 0.0
        %659 = vmatprep.subr.mxu0 0.0
        %660 = vmatpush2.msra.mxu0 0.0
        %661 = vmatprep.subr.mxu0 0.0
        %662 = vmatpush2.msra.mxu0 0.0
        %663 = vmatprep.subr.mxu0 0.0
        %664 = vmatpush2.msra.mxu0 0.0
        %665 = vmatprep.mubr.f32.mxu0 0.0
        %666 = vmatmul.mubr.f32.gmra.mxu0 %v378
        %v667 = vpop.f32.mrf.mxu0
        %v668 = vadd.f32 0.0, %v667
        %v669 = vpop.f32.mrf.mxu0
        %670 = vmatprep.mubr.f32.mxu0 0.0
        %671 = vmatmul.mubr.f32.gmra.mxu0 %v381
        %v672 = vpop.f32.mrf.mxu0
        %v673 = vadd.f32 0.0, %v672
        %v674 = vpop.f32.mrf.mxu0
        %675 = vdwg.mxu0
        %v677 = vsel %vm597, %v595, 0
        %679 = vmatprep.subr.mxu0 0.0
        %680 = vmatpush1.msra.mxu0 0.0
        %681 = vmatprep.subr.mxu0 0.0
        %682 = vmatpush1.msra.mxu0 0.0
        %683 = vmatprep.subr.mxu0 0.0
        %684 = vmatpush1.msra.mxu0 0.0
        %685 = vmatprep.subr.mxu0 0.0
        %686 = vmatpush1.msra.mxu0 0.0
        %687 = vmatprep.subr.mxu0 0.0
        %688 = vmatpush1.msra.mxu0 0.0
        %689 = vmatprep.subr.mxu0 0.0
        %690 = vmatpush1.msra.mxu0 0.0
        %691 = vmatprep.subr.mxu0 0.0
        %692 = vmatpush1.msra.mxu0 0.0
        %693 = vmatprep.subr.mxu0 0.0
        %694 = vmatpush1.msra.mxu0 0.0
        %695 = vmatprep.subr.mxu0 0.0
        %696 = vmatpush1.msra.mxu0 0.0
        %697 = vmatprep.subr.mxu0 0.0
        %698 = vmatpush1.msra.mxu0 0.0
        %699 = vmatprep.subr.mxu0 0.0
        %700 = vmatpush1.msra.mxu0 0.0
        %701 = vmatprep.subr.mxu0 0.0
        %702 = vmatpush1.msra.mxu0 0.0
        %703 = vmatprep.subr.mxu0 0.0
        %704 = vmatpush1.msra.mxu0 0.0
        %705 = vmatprep.subr.mxu0 0.0
        %706 = vmatpush1.msra.mxu0 0.0
        %707 = vmatprep.subr.mxu0 0.0
        %708 = vmatpush1.msra.mxu0 0.0
        %709 = vmatprep.subr.mxu0 0.0
        %710 = vmatpush1.msra.mxu0 %v677
        %711 = vmatprep.subr.mxu0 0.0
        %712 = vmatpush2.msra.mxu0 0.0
        %713 = vmatprep.subr.mxu0 0.0
        %714 = vmatpush2.msra.mxu0 0.0
        %715 = vmatprep.subr.mxu0 0.0
        %716 = vmatpush2.msra.mxu0 0.0
        %717 = vmatprep.subr.mxu0 0.0
        %718 = vmatpush2.msra.mxu0 0.0
        %719 = vmatprep.subr.mxu0 0.0
        %720 = vmatpush2.msra.mxu0 0.0
        %721 = vmatprep.subr.mxu0 0.0
        %722 = vmatpush2.msra.mxu0 0.0
        %723 = vmatprep.subr.mxu0 0.0
        %724 = vmatpush2.msra.mxu0 0.0
        %725 = vmatprep.subr.mxu0 0.0
        %726 = vmatpush2.msra.mxu0 0.0
        %727 = vmatprep.subr.mxu0 0.0
        %728 = vmatpush2.msra.mxu0 0.0
        %729 = vmatprep.subr.mxu0 0.0
        %730 = vmatpush2.msra.mxu0 0.0
        %731 = vmatprep.subr.mxu0 0.0
        %732 = vmatpush2.msra.mxu0 0.0
        %733 = vmatprep.subr.mxu0 0.0
        %734 = vmatpush2.msra.mxu0 0.0
        %735 = vmatprep.subr.mxu0 0.0
        %736 = vmatpush2.msra.mxu0 0.0
        %737 = vmatprep.subr.mxu0 0.0
        %738 = vmatpush2.msra.mxu0 0.0
        %739 = vmatprep.subr.mxu0 0.0
        %740 = vmatpush2.msra.mxu0 0.0
        %741 = vmatprep.subr.mxu0 0.0
        %742 = vmatpush2.msra.mxu0 0.0
        %743 = vmatprep.mubr.f32.mxu0 0.0
        %744 = vmatmul.mubr.f32.gmra.mxu0 %v378
        %v745 = vpop.f32.mrf.mxu0
        %v746 = vadd.f32 0.0, %v745
        %v747 = vpop.f32.mrf.mxu0
        %748 = vmatprep.mubr.f32.mxu0 0.0
        %749 = vmatmul.mubr.f32.gmra.mxu0 %v381
        %v750 = vpop.f32.mrf.mxu0
        %v751 = vadd.f32 0.0, %v750
        %v752 = vpop.f32.mrf.mxu0
        %753 = vdwg.mxu0
        %v754 = vsub.f32 %v668, %v746
        %v755 = vsub.f32 %v673, %v751
        %v757 = vlaneseq
        %v758 = vshrl.u32 %v757, 7
        %v759 = vsub.s32 0, %v758
        %v760 = vrot.slane %v596, %v759
        %v762 = vadd.f32 %v754, %v760
        %v763 = vadd.f32 %v755, %v760
        %764 = vmatprep.subr.mxu0 0.0
        %765 = vmatpush1.msra.mxu0 0.0
        %766 = vmatprep.subr.mxu0 0.0
        %767 = vmatpush1.msra.mxu0 0.0
        %768 = vmatprep.subr.mxu0 0.0
        %769 = vmatpush1.msra.mxu0 0.0
        %770 = vmatprep.subr.mxu0 0.0
        %771 = vmatpush1.msra.mxu0 0.0
        %772 = vmatprep.subr.mxu0 0.0
        %773 = vmatpush1.msra.mxu0 0.0
        %774 = vmatprep.subr.mxu0 0.0
        %775 = vmatpush1.msra.mxu0 0.0
        %776 = vmatprep.subr.mxu0 0.0
        %777 = vmatpush1.msra.mxu0 0.0
        %778 = vmatprep.subr.mxu0 0.0
        %779 = vmatpush1.msra.mxu0 0.0
        %780 = vmatprep.subr.mxu0 0.0
        %781 = vmatpush1.msra.mxu0 0.0
        %782 = vmatprep.subr.mxu0 0.0
        %783 = vmatpush1.msra.mxu0 0.0
        %784 = vmatprep.subr.mxu0 0.0
        %785 = vmatpush1.msra.mxu0 0.0
        %786 = vmatprep.subr.mxu0 0.0
        %787 = vmatpush1.msra.mxu0 0.0
        %788 = vmatprep.subr.mxu0 0.0
        %789 = vmatpush1.msra.mxu0 0.0
        %790 = vmatprep.subr.mxu0 0.0
        %791 = vmatpush1.msra.mxu0 0.0
        %792 = vmatprep.subr.mxu0 0.0
        %793 = vmatpush1.msra.mxu0 0.0
        %794 = vmatprep.subr.mxu0 0.0
        %795 = vmatpush1.msra.mxu0 %v677
        %796 = vmatprep.subr.mxu0 0.0
        %797 = vmatpush2.msra.mxu0 0.0
        %798 = vmatprep.subr.mxu0 0.0
        %799 = vmatpush2.msra.mxu0 0.0
        %800 = vmatprep.subr.mxu0 0.0
        %801 = vmatpush2.msra.mxu0 0.0
        %802 = vmatprep.subr.mxu0 0.0
        %803 = vmatpush2.msra.mxu0 0.0
        %804 = vmatprep.subr.mxu0 0.0
        %805 = vmatpush2.msra.mxu0 0.0
        %806 = vmatprep.subr.mxu0 0.0
        %807 = vmatpush2.msra.mxu0 0.0
        %808 = vmatprep.subr.mxu0 0.0
        %809 = vmatpush2.msra.mxu0 0.0
        %810 = vmatprep.subr.mxu0 0.0
        %811 = vmatpush2.msra.mxu0 0.0
        %812 = vmatprep.subr.mxu0 0.0
        %813 = vmatpush2.msra.mxu0 0.0
        %814 = vmatprep.subr.mxu0 0.0
        %815 = vmatpush2.msra.mxu0 0.0
        %816 = vmatprep.subr.mxu0 0.0
        %817 = vmatpush2.msra.mxu0 0.0
        %818 = vmatprep.subr.mxu0 0.0
        %819 = vmatpush2.msra.mxu0 0.0
        %820 = vmatprep.subr.mxu0 0.0
        %821 = vmatpush2.msra.mxu0 0.0
        %822 = vmatprep.subr.mxu0 0.0
        %823 = vmatpush2.msra.mxu0 0.0
        %824 = vmatprep.subr.mxu0 0.0
        %825 = vmatpush2.msra.mxu0 0.0
        %826 = vmatprep.subr.mxu0 0.0
        %827 = vmatpush2.msra.mxu0 0.0
        %828 = vmatprep.mubr.f32.mxu0 0.0
        %829 = vmatmul.mubr.f32.gmra.mxu0 %v384
        %v830 = vpop.f32.mrf.mxu0
        %v831 = vadd.f32 0.0, %v830
        %v832 = vpop.f32.mrf.mxu0
        %833 = vmatprep.mubr.f32.mxu0 0.0
        %834 = vmatmul.mubr.f32.gmra.mxu0 %v387
        %v835 = vpop.f32.mrf.mxu0
        %v836 = vadd.f32 0.0, %v835
        %v837 = vpop.f32.mrf.mxu0
        %838 = vmatprep.mubr.f32.mxu0 0.0
        %839 = vmatmul.mubr.f32.gmra.mxu0 %v390
        %v840 = vpop.f32.mrf.mxu0
        %v841 = vadd.f32 0.0, %v840
        %v842 = vpop.f32.mrf.mxu0
        %843 = vmatprep.mubr.f32.mxu0 0.0
        %844 = vmatmul.mubr.f32.gmra.mxu0 %v393
        %v845 = vpop.f32.mrf.mxu0
        %v846 = vadd.f32 0.0, %v845
        %v847 = vpop.f32.mrf.mxu0
        %848 = vdwg.mxu0
        %v849 = vpack.c.bf16 %v836, %v831
        %v850 = vpack.c.bf16 %v846, %v841
        %v851 = vunpack.c.l.bf16 %v849
        %v852 = vunpack.c.h.bf16 %v849
        %v853 = vunpack.c.l.bf16 %v850
        %v854 = vunpack.c.h.bf16 %v850
        %v855 = vsub.f32 %v831, %v851
        %v856 = vsub.f32 %v836, %v852
        %v857 = vsub.f32 %v841, %v853
        %v858 = vsub.f32 %v846, %v854
        %v859 = vpack.c.bf16 %v856, %v855
        %v860 = vpack.c.bf16 %v858, %v857
        loop: start=0, step=1, limit=8
        $region49: #{attn_edge_conv.3} parent=47 // loop_pre_header
          _
        $region50: #{attn_edge_conv.3} parent=47 // loop_header
          %s862 = sphi 0, %s866
          %p863 = scmp.ge.s32.totalorder %s862, 8
          %v867 = vphi %v592, %v1036
          %v868 = vphi %v593, %v1037
          %v869 = vphi 0.0, %v1023
          %v870 = vphi 0.0, %v1035
        $region51: #{attn_edge_conv.3} parent=47 // loop_header_branch
          %865 = sbr.rel (%p863) target = $region55
        $region52: #{attn_edge_conv.3} parent=47 // loop_body
          %v871 = vlaneseq
          %v872 = vand.u32 %v871, 127
          %vm873 = vcmask 261120
          %v874 = vsel %vm873, %v867, inf
          %875 = vmin.xlane.f32.xlu0 %v874
          %v876 = vpop.xlane.xlu0 %875
          %v877 = vsel %vm873, %v868, inf
          %878 = vmin.xlane.f32.xlu0 %v877
          %v879 = vpop.xlane.xlu0 %878
          %vm880 = vcmp.le.f32.partialorder %v867, %v876
          %vm881 = vcmp.le.f32.partialorder %v868, %v879
          %v882 = vsel %vm880, %v872, 32
          %v883 = vsel %vm881, %v872, 32
          %v884 = vsel %vm873, %v882, 2147483647
          %v885 = vand.u32 %v884, 65535
          %v886 = vshra.s32 %v884, 16
          %v887 = vcvt.s32.f32 %v885
          %v888 = vcvt.s32.f32 %v886
          %889 = vmin.xlane.f32.xlu0 %v888
          %v890 = vpop.xlane.xlu0 %889
          %vm891 = vcmp.eq.f32.partialorder %v888, %v890
          %v892 = vsel %vm891, %v887, inf
          %893 = vmin.xlane.f32.xlu0 %v892
          %v894 = vpop.xlane.xlu0 %893
          %v895 = vcvt.f32.s32 %v894
          %v896 = vcvt.f32.s32 %v890
          %v897 = vshll.u32 %v896, 16
          %v898 = vadd.s32 %v897, %v895
          %v899 = vsel %vm873, %v883, 2147483647
          %v900 = vand.u32 %v899, 65535
          %v901 = vshra.s32 %v899, 16
          %v902 = vcvt.s32.f32 %v900
          %v903 = vcvt.s32.f32 %v901
          %904 = vmin.xlane.f32.xlu0 %v903
          %v905 = vpop.xlane.xlu0 %904
          %vm906 = vcmp.eq.f32.partialorder %v903, %v905
          %v907 = vsel %vm906, %v902, inf
          %908 = vmin.xlane.f32.xlu0 %v907
          %v909 = vpop.xlane.xlu0 %908
          %v910 = vcvt.f32.s32 %v909
          %v911 = vcvt.f32.s32 %v905
          %v912 = vshll.u32 %v911, 16
          %v913 = vadd.s32 %v912, %v910
          %vm914 = vcmp.eq.s32.totalorder %v872, %v898
          %vm915 = vcmp.eq.s32.totalorder %v872, %v913
          %v916 = vsel %vm914, 1, 0
          %v917 = vsel %vm915, 1, 0
          %v918 = vcvt.s32.f32 %v916
          %v919 = vcvt.s32.f32 %v917
          %v920 = vpack.c.bf16 %v919, %v918
          %v922 = vsel %vm873, %v920, 0
          %924 = vmatprep.subr.bf16.mxu0 0
          %925 = vmatpush1.bf16.msra.mxu0 0
          %926 = vmatprep.subr.bf16.mxu0 0
          %927 = vmatpush1.bf16.msra.mxu0 0
          %928 = vmatprep.subr.bf16.mxu0 0
          %929 = vmatpush1.bf16.msra.mxu0 0
          %930 = vmatprep.subr.bf16.mxu0 0
          %931 = vmatpush1.bf16.msra.mxu0 0
          %932 = vmatprep.subr.bf16.mxu0 0
          %933 = vmatpush1.bf16.msra.mxu0 0
          %934 = vmatprep.subr.bf16.mxu0 0
          %935 = vmatpush1.bf16.msra.mxu0 0
          %936 = vmatprep.subr.bf16.mxu0 0
          %937 = vmatpush1.bf16.msra.mxu0 %v860
          %938 = vmatprep.subr.bf16.mxu0 0
          %939 = vmatpush1.bf16.msra.mxu0 %v859
          %940 = vmatprep.subr.bf16.mxu0 0
          %941 = vmatpush2.bf16.msra.mxu0 0
          %942 = vmatprep.subr.bf16.mxu0 0
          %943 = vmatpush2.bf16.msra.mxu0 0
          %944 = vmatprep.subr.bf16.mxu0 0
          %945 = vmatpush2.bf16.msra.mxu0 0
          %946 = vmatprep.subr.bf16.mxu0 0
          %947 = vmatpush2.bf16.msra.mxu0 0
          %948 = vmatprep.subr.bf16.mxu0 0
          %949 = vmatpush2.bf16.msra.mxu0 0
          %950 = vmatprep.subr.bf16.mxu0 0
          %951 = vmatpush2.bf16.msra.mxu0 0
          %952 = vmatprep.subr.bf16.mxu0 0
          %953 = vmatpush2.bf16.msra.mxu0 0
          %954 = vmatprep.subr.bf16.mxu0 0
          %955 = vmatpush2.bf16.msra.mxu0 0
          %956 = vmatprep.mubr.bf16.mxu0 0
          %957 = vmatmul.mubr.bf16.gmra.mxu0 %v922
          %v958 = vpop.f32.mrf.mxu0
          %v959 = vadd.f32 0.0, %v958
          %v960 = vpop.f32.mrf.mxu0
          %v961 = vpop.f32.mrf.mxu0
          %v962 = vadd.f32 0.0, %v961
          %v963 = vpop.f32.mrf.mxu0
          %964 = vdwg.mxu0
          %965 = vmatprep.subr.bf16.mxu0 0
          %966 = vmatpush1.bf16.msra.mxu0 0
          %967 = vmatprep.subr.bf16.mxu0 0
          %968 = vmatpush1.bf16.msra.mxu0 0
          %969 = vmatprep.subr.bf16.mxu0 0
          %970 = vmatpush1.bf16.msra.mxu0 0
          %971 = vmatprep.subr.bf16.mxu0 0
          %972 = vmatpush1.bf16.msra.mxu0 0
          %973 = vmatprep.subr.bf16.mxu0 0
          %974 = vmatpush1.bf16.msra.mxu0 0
          %975 = vmatprep.subr.bf16.mxu0 0
          %976 = vmatpush1.bf16.msra.mxu0 0
          %977 = vmatprep.subr.bf16.mxu0 0
          %978 = vmatpush1.bf16.msra.mxu0 %v850
          %979 = vmatprep.subr.bf16.mxu0 0
          %980 = vmatpush1.bf16.msra.mxu0 %v849
          %981 = vmatprep.subr.bf16.mxu0 0
          %982 = vmatpush2.bf16.msra.mxu0 0
          %983 = vmatprep.subr.bf16.mxu0 0
          %984 = vmatpush2.bf16.msra.mxu0 0
          %985 = vmatprep.subr.bf16.mxu0 0
          %986 = vmatpush2.bf16.msra.mxu0 0
          %987 = vmatprep.subr.bf16.mxu0 0
          %988 = vmatpush2.bf16.msra.mxu0 0
          %989 = vmatprep.subr.bf16.mxu0 0
          %990 = vmatpush2.bf16.msra.mxu0 0
          %991 = vmatprep.subr.bf16.mxu0 0
          %992 = vmatpush2.bf16.msra.mxu0 0
          %993 = vmatprep.subr.bf16.mxu0 0
          %994 = vmatpush2.bf16.msra.mxu0 0
          %995 = vmatprep.subr.bf16.mxu0 0
          %996 = vmatpush2.bf16.msra.mxu0 0
          %997 = vmatprep.mubr.bf16.mxu0 0
          %998 = vmatmul.mubr.bf16.gmra.mxu0 %v922
          %v999 = vpop.f32.mrf.mxu0
          %v1000 = vadd.f32 %v959, %v999
          %v1001 = vpop.f32.mrf.mxu0
          %v1002 = vpop.f32.mrf.mxu0
          %v1003 = vadd.f32 %v962, %v1002
          %v1004 = vpop.f32.mrf.mxu0
          %1005 = vdwg.mxu0
          %v1006 = vadd.f32 %v762, %v1000
          %v1007 = vadd.f32 %v763, %v1003
          %s1008 = smul.u32 %s862, 16
          %s1009 = scalar_lea.vmem %s339, %s1008 [#allocation2]
          %1010 = vst.msk [vmem:[%s1009] sm:$0xff] %vm873, %v1006
          %1011 = vst.msk [vmem:[%s1009 + $0x8] sm:$0xff] %vm873, %v1007
          %v1012 = vsub.f32 %v1006, %v760
          %v1013 = vsub.f32 %v1007, %v760
          %v1014 = vsel %vm873, %v1012, 0.0
          %v1015 = vsel %vm873, %v1013, 0.0
          %v1016 = vadd.f32 %v1014, %v1015
          %v1017 = vrot.slane %v1016, 4
          %v1018 = vadd.f32 %v1016, %v1017
          %v1019 = vrot.slane %v1018, 2
          %v1020 = vadd.f32 %v1018, %v1019
          %v1021 = vrot.slane %v1020, 1
          %v1022 = vadd.f32 %v1020, %v1021
          %v1023 = vadd.f32 %v869, %v1022
          %v1024 = vmul.f32 %v1012, %v1012
          %v1025 = vmul.f32 %v1013, %v1013
          %v1026 = vsel %vm873, %v1024, 0.0
          %v1027 = vsel %vm873, %v1025, 0.0
          %v1028 = vadd.f32 %v1026, %v1027
          %v1029 = vrot.slane %v1028, 4
          %v1030 = vadd.f32 %v1028, %v1029
          %v1031 = vrot.slane %v1030, 2
          %v1032 = vadd.f32 %v1030, %v1031
          %v1033 = vrot.slane %v1032, 1
          %v1034 = vadd.f32 %v1032, %v1033
          %v1035 = vadd.f32 %v870, %v1034
          %v1036 = vsel %vm914, 1e+30, %v867
          %v1037 = vsel %vm915, 1e+30, %v868
        $region53: #{attn_edge_conv.3} parent=47 // loop_footer
          %s866 = sadd.s32 1, %s862
        $region54: #{attn_edge_conv.3} parent=47 // loop_footer_branch
          %861 = sbr.rel target = $region50
        $region55: #{attn_edge_conv.3} parent=47 // loop_exit
          _
        %vm1038 = vcmask 253952
        %1039 = vst.msk [vmem:[%s365] sm:$0x1] %vm1038, %v869
        %1040 = vst.msk [vmem:[%s368] sm:$0x1] %vm1038, %v870
        %s1041 = sand.u32 %s186, 1
        %s1042 = sand.u32 %s186, 1
        %s1043 = smul.addr %s1042, 128
        %s1044 = scalar_lea.vmem [#allocation2], %s1043
        %p1045 = scmp.lt.s32.totalorder %s21, 1
        %s1046 = scalar_select %p1045, %s21, 1
        %s1047 = scalar_lea.vmem %s8, %s1046
        %p1048 = scmp.lt.s32.totalorder %s21, 1
        %s1049 = scalar_select %p1048, %s21, 1
        %s1050 = scalar_lea.vmem %s9, %s1049
        // Predicated region
        $region56: #{attn_edge_conv.3} parent=47 // pred_check
          %p1051 = pneg %p196
        $region57: #{attn_edge_conv.3} parent=47 // pred_check_branch
          %1053 = sbr.rel (%p1051) target = $region59
        $region58: #{attn_edge_conv.3} parent=47 // pred_region
          %s1054 = smul.u32 2, %s21
          %s1055 = smul.addr %s1054, 8
          %s1056 = scalar_lea.vmem %s7, %s1055
          // Predicated region
          $region60: #{attn_edge_conv.3} parent=58 // pred_check
            _
          $region61: #{attn_edge_conv.3} parent=58 // pred_check_branch
            %1058 = sbr.rel (0) target = $region63
          $region62: #{attn_edge_conv.3} parent=58 // pred_region
            // Predicated region
            $region64: #{attn_edge_conv.3} parent=62 // pred_check
              _
            $region65: #{attn_edge_conv.3} parent=62 // pred_check_branch
              %1060 = sbr.rel (0) target = $region67
            $region66: #{attn_edge_conv.3} parent=62 // pred_region
              // Predicated region
              $region79: #{attn_edge_conv.3} parent=66 // pred_check
                _
              $region80: #{attn_edge_conv.3} parent=66 // pred_check_branch
                %1106 = sbr.rel (0) target = $region82
              $region81: #{attn_edge_conv.3} parent=66 // pred_region
                loop: start=0, step=1, limit=1
                $region83: #{attn_edge_conv.3} parent=81 // loop_pre_header
                  _
                $region84: #{attn_edge_conv.3} parent=81 // loop_header
                  %s1108 = sphi 0, %s1112
                  %p1109 = scmp.ge.s32.totalorder %s1108, 1
                  %s1113 = sphi %s1044, %s1044
                  %s1114 = sphi %s1056, %s1056
                $region85: #{attn_edge_conv.3} parent=81 // loop_header_branch
                  %1111 = sbr.rel (%p1109) target = $region89
                $region86: #{attn_edge_conv.3} parent=81 // loop_body
                  %v1115 = vld [vmem:[%s1113] sm:$0xff]
                  %1116 = vst [vmem:[%s1114] sm:$0xff] %v1115
                  %v1117 = vld [vmem:[%s1113 + $0x8] sm:$0xff]
                  %1118 = vst [vmem:[%s1114 + $0x8] sm:$0xff] %v1117
                  %v1119 = vld [vmem:[%s1113 + $0x10] sm:$0xff]
                  %1120 = vst [vmem:[%s1114 + $0x20] sm:$0xff] %v1119
                  %v1121 = vld [vmem:[%s1113 + $0x18] sm:$0xff]
                  %1122 = vst [vmem:[%s1114 + $0x28] sm:$0xff] %v1121
                  %v1123 = vld [vmem:[%s1113 + $0x20] sm:$0xff]
                  %1124 = vst [vmem:[%s1114 + $0x40] sm:$0xff] %v1123
                  %v1125 = vld [vmem:[%s1113 + $0x28] sm:$0xff]
                  %1126 = vst [vmem:[%s1114 + $0x48] sm:$0xff] %v1125
                  %v1127 = vld [vmem:[%s1113 + $0x30] sm:$0xff]
                  %1128 = vst [vmem:[%s1114 + $0x60] sm:$0xff] %v1127
                  %v1129 = vld [vmem:[%s1113 + $0x38] sm:$0xff]
                  %1130 = vst [vmem:[%s1114 + $0x68] sm:$0xff] %v1129
                  %v1131 = vld [vmem:[%s1113 + $0x40] sm:$0xff]
                  %1132 = vst [vmem:[%s1114 + $0x80] sm:$0xff] %v1131
                  %v1133 = vld [vmem:[%s1113 + $0x48] sm:$0xff]
                  %1134 = vst [vmem:[%s1114 + $0x88] sm:$0xff] %v1133
                  %v1135 = vld [vmem:[%s1113 + $0x50] sm:$0xff]
                  %1136 = vst [vmem:[%s1114 + $0xa0] sm:$0xff] %v1135
                  %v1137 = vld [vmem:[%s1113 + $0x58] sm:$0xff]
                  %1138 = vst [vmem:[%s1114 + $0xa8] sm:$0xff] %v1137
                  %v1139 = vld [vmem:[%s1113 + $0x60] sm:$0xff]
                  %1140 = vst [vmem:[%s1114 + $0xc0] sm:$0xff] %v1139
                  %v1141 = vld [vmem:[%s1113 + $0x68] sm:$0xff]
                  %1142 = vst [vmem:[%s1114 + $0xc8] sm:$0xff] %v1141
                  %v1143 = vld [vmem:[%s1113 + $0x70] sm:$0xff]
                  %1144 = vst [vmem:[%s1114 + $0xe0] sm:$0xff] %v1143
                  %v1145 = vld [vmem:[%s1113 + $0x78] sm:$0xff]
                  %1146 = vst [vmem:[%s1114 + $0xe8] sm:$0xff] %v1145
                $region87: #{attn_edge_conv.3} parent=81 // loop_footer
                  %s1112 = sadd.s32 1, %s1108
                $region88: #{attn_edge_conv.3} parent=81 // loop_footer_branch
                  %1107 = sbr.rel target = $region84
                $region89: #{attn_edge_conv.3} parent=81 // loop_exit
                  _
              $region82: #{attn_edge_conv.3} parent=66 // pred_fallthru
                _
              // Predicated region
              $region90: #{attn_edge_conv.3} parent=66 // pred_check
                _
              $region91: #{attn_edge_conv.3} parent=66 // pred_check_branch
                %1148 = sbr.rel target = $region93
              $region92: #{attn_edge_conv.3} parent=66 // pred_region
                _
              $region93: #{attn_edge_conv.3} parent=66 // pred_fallthru
                _
            $region67: #{attn_edge_conv.3} parent=62 // pred_fallthru
              _
            // Predicated region
            $region68: #{attn_edge_conv.3} parent=62 // pred_check
              _
            $region69: #{attn_edge_conv.3} parent=62 // pred_check_branch
              %1062 = sbr.rel target = $region71
            $region70: #{attn_edge_conv.3} parent=62 // pred_region
              %s1064 = ssub.s32 256, 1
              loop: start=0, step=1, limit=1
              $region72: #{attn_edge_conv.3} parent=70 // loop_pre_header
                _
              $region73: #{attn_edge_conv.3} parent=70 // loop_header
                %s1066 = sphi 0, %s1070
                %p1067 = scmp.ge.s32.totalorder %s1066, 1
                %s1071 = sphi %s1044, %s1044
                %s1072 = sphi %s1056, %s1056
              $region74: #{attn_edge_conv.3} parent=70 // loop_header_branch
                %1069 = sbr.rel (%p1067) target = $region78
              $region75: #{attn_edge_conv.3} parent=70 // loop_body
                %v1073 = vld [vmem:[%s1071] sm:%s1064]
                %1074 = vst [vmem:[%s1072] sm:%s1064] %v1073
                %v1075 = vld [vmem:[%s1071 + $0x8] sm:%s1064]
                %1076 = vst [vmem:[%s1072 + $0x8] sm:%s1064] %v1075
                %v1077 = vld [vmem:[%s1071 + $0x10] sm:%s1064]
                %1078 = vst [vmem:[%s1072 + $0x20] sm:%s1064] %v1077
                %v1079 = vld [vmem:[%s1071 + $0x18] sm:%s1064]
                %1080 = vst [vmem:[%s1072 + $0x28] sm:%s1064] %v1079
                %v1081 = vld [vmem:[%s1071 + $0x20] sm:%s1064]
                %1082 = vst [vmem:[%s1072 + $0x40] sm:%s1064] %v1081
                %v1083 = vld [vmem:[%s1071 + $0x28] sm:%s1064]
                %1084 = vst [vmem:[%s1072 + $0x48] sm:%s1064] %v1083
                %v1085 = vld [vmem:[%s1071 + $0x30] sm:%s1064]
                %1086 = vst [vmem:[%s1072 + $0x60] sm:%s1064] %v1085
                %v1087 = vld [vmem:[%s1071 + $0x38] sm:%s1064]
                %1088 = vst [vmem:[%s1072 + $0x68] sm:%s1064] %v1087
                %v1089 = vld [vmem:[%s1071 + $0x40] sm:%s1064]
                %1090 = vst [vmem:[%s1072 + $0x80] sm:%s1064] %v1089
                %v1091 = vld [vmem:[%s1071 + $0x48] sm:%s1064]
                %1092 = vst [vmem:[%s1072 + $0x88] sm:%s1064] %v1091
                %v1093 = vld [vmem:[%s1071 + $0x50] sm:%s1064]
                %1094 = vst [vmem:[%s1072 + $0xa0] sm:%s1064] %v1093
                %v1095 = vld [vmem:[%s1071 + $0x58] sm:%s1064]
                %1096 = vst [vmem:[%s1072 + $0xa8] sm:%s1064] %v1095
                %v1097 = vld [vmem:[%s1071 + $0x60] sm:%s1064]
                %1098 = vst [vmem:[%s1072 + $0xc0] sm:%s1064] %v1097
                %v1099 = vld [vmem:[%s1071 + $0x68] sm:%s1064]
                %1100 = vst [vmem:[%s1072 + $0xc8] sm:%s1064] %v1099
                %v1101 = vld [vmem:[%s1071 + $0x70] sm:%s1064]
                %1102 = vst [vmem:[%s1072 + $0xe0] sm:%s1064] %v1101
                %v1103 = vld [vmem:[%s1071 + $0x78] sm:%s1064]
                %1104 = vst [vmem:[%s1072 + $0xe8] sm:%s1064] %v1103
              $region76: #{attn_edge_conv.3} parent=70 // loop_footer
                %s1070 = sadd.s32 1, %s1066
              $region77: #{attn_edge_conv.3} parent=70 // loop_footer_branch
                %1065 = sbr.rel target = $region73
              $region78: #{attn_edge_conv.3} parent=70 // loop_exit
                _
            $region71: #{attn_edge_conv.3} parent=62 // pred_fallthru
              _
          $region63: #{attn_edge_conv.3} parent=58 // pred_fallthru
            _
          %1149 = vnop
        $region59: #{attn_edge_conv.3} parent=47 // pred_fallthru
          _
        // Predicated region
        $region94: #{attn_edge_conv.3} parent=47 // pred_check
          %p1150 = pneg %p222
        $region95: #{attn_edge_conv.3} parent=47 // pred_check_branch
          %1152 = sbr.rel (%p1150) target = $region97
        $region96: #{attn_edge_conv.3} parent=47 // pred_region
          _
        $region97: #{attn_edge_conv.3} parent=47 // pred_fallthru
          _
        // Predicated region
        $region98: #{attn_edge_conv.3} parent=47 // pred_check
          %p1153 = pneg %p248
        $region99: #{attn_edge_conv.3} parent=47 // pred_check_branch
          %1155 = sbr.rel (%p1153) target = $region101
        $region100: #{attn_edge_conv.3} parent=47 // pred_region
          _
        $region101: #{attn_edge_conv.3} parent=47 // pred_fallthru
          _
      $region48: #{attn_edge_conv.3} parent=5 // pred_fallthru
        _
      %p1156 = scmp.le.s32.totalorder 2, %s16
      // Predicated region
      $region102: #{attn_edge_conv.3} parent=5 // pred_check
        %p1157 = pneg %p1156
      $region103: #{attn_edge_conv.3} parent=5 // pred_check_branch
        %1159 = sbr.rel (%p1157) target = $region105
      $region104: #{attn_edge_conv.3} parent=5 // pred_region
        %s1160 = ssub.s32 %s16, 2
        // Predicated region
        $region106: #{attn_edge_conv.3} parent=104 // pred_check
          %p1161 = pneg %p202
        $region107: #{attn_edge_conv.3} parent=104 // pred_check_branch
          %1163 = sbr.rel (%p1161) target = $region109
        $region108: #{attn_edge_conv.3} parent=104 // pred_region
          %s1164 = sand.u32 %s187, 1
          %s1165 = sand.u32 %s187, 1
          %s1166 = smul.addr %s1165, 128
          %s1167 = scalar_lea.vmem [#allocation2], %s1166
        $region109: #{attn_edge_conv.3} parent=104 // pred_fallthru
          _
        // Predicated region
        $region110: #{attn_edge_conv.3} parent=104 // pred_check
          %p1168 = pneg %p228
        $region111: #{attn_edge_conv.3} parent=104 // pred_check_branch
          %1170 = sbr.rel (%p1168) target = $region113
        $region112: #{attn_edge_conv.3} parent=104 // pred_region
          %p1171 = scmp.lt.s32.totalorder %s22, 1
          %s1172 = scalar_select %p1171, %s22, 1
          %s1173 = scalar_lea.vmem %s8, %s1172
        $region113: #{attn_edge_conv.3} parent=104 // pred_fallthru
          _
        // Predicated region
        $region114: #{attn_edge_conv.3} parent=104 // pred_check
          %p1174 = pneg %p254
        $region115: #{attn_edge_conv.3} parent=104 // pred_check_branch
          %1176 = sbr.rel (%p1174) target = $region117
        $region116: #{attn_edge_conv.3} parent=104 // pred_region
          %p1177 = scmp.lt.s32.totalorder %s22, 1
          %s1178 = scalar_select %p1177, %s22, 1
          %s1179 = scalar_lea.vmem %s9, %s1178
        $region117: #{attn_edge_conv.3} parent=104 // pred_fallthru
          _
      $region105: #{attn_edge_conv.3} parent=5 // pred_fallthru
        _
    $region6: #{attn_edge_conv.3} parent=1 // loop_footer
      %s20 = sadd.s32 1, %s16
    $region7: #{attn_edge_conv.3} parent=1 // loop_footer_branch
      %15 = sbr.rel target = $region3
    $region8: #{attn_edge_conv.3} parent=1 // loop_exit
      _

// kernel: attn_edge_conv.5
$region0: #{attn_edge_conv.5}
  #allocation0 [shape = 'u32[]', space=smem, size = 0x4, offset = 0x4, fixed_abs, tag = 'smem constant byte address 0x4 - core index']
  #allocation1 [shape = 'u32[144,128]{1,0:T(1,128)}', space=vmem, size = 0x12000, scoped, tag = 'internal scratch']
  %s0 = inlined_call_operand.vmem [shape: f32[8,32,32], index: 0, kind: input, shape index: {}]
  %s1 = inlined_call_operand.vmem [shape: f32[8,32,1], index: 1, kind: input, shape index: {}]
  %s2 = inlined_call_operand.vmem [shape: f32[1,32], index: 2, kind: input, shape index: {}]
  %s3 = inlined_call_operand.vmem [shape: f32[1,32], index: 3, kind: input, shape index: {}]
  %s4 = inlined_call_operand.hbm [shape: f32[32,32], index: 4, kind: output, shape index: {}]
  %s5 = sld [smem:[#allocation0]]
  $region125: #{attn_edge_conv.5} parent=0
    _
  %s7 = ssub.s32 1, %s5
  %s8 = scalar_select 0, %s7, %s5
  $region1: #{attn_edge_conv.5} parent=0
    #allocation2 [shape = 'u8[131072]{0}', space=vmem, size = 0x20000, scoped, tag = 'input window, operand 0']
    #allocation3 [shape = 'u8[131072]{0}', space=vmem, size = 0x20000, scoped, tag = 'input window, operand 1']
    #allocation4 [shape = 'u8[16384]{0}', space=vmem, size = 0x4000, scoped, tag = 'output window, operand 0']
    #allocation5 [shape = 's32[2]{0}', space=sflag, size = 0x8, scoped, tag = 'scoped memory for attn_edge_conv.5']
    %9 = vsyncpa [#allocation5], 0
    %s10 = scalar_lea.sflag [#allocation5], 1
    %11 = vsyncpa %s10, 0
    loop: start=0, step=1, limit=4
    $region2: #{attn_edge_conv.5} parent=1 // loop_pre_header
      _
    $region3: #{attn_edge_conv.5} parent=1 // loop_header
      %s13 = sphi 0, %s17
      %p14 = scmp.ge.s32.totalorder %s13, 4
      %s23 = sphi 0, %s25
      %s26 = sphi 0, %s23
      %s27 = sphi 0, %s26
      %s43 = sphi 0, %s27
      %s49 = sphi 0, %s51
      %s52 = sphi 0, %s49
      %s53 = sphi 0, %s52
      %s69 = sphi 0, %s53
      %s73 = sphi 0, %s73
      %s75 = sphi 0, %s73
      %s76 = sphi 0, %s75
      %s90 = sphi 0, %s76
      %s94 = sphi 0, %s94
      %s96 = sphi 0, %s94
      %s97 = sphi 0, %s96
      %s111 = sphi 0, %s97
      %s117 = sphi 0, %s119
      %s120 = sphi 0, %s117
      %s121 = sphi 0, %s120
      %s137 = sphi 0, %s121
    $region4: #{attn_edge_conv.5} parent=1 // loop_header_branch
      %16 = sbr.rel (%p14) target = $region8
    $region5: #{attn_edge_conv.5} parent=1 // loop_body
      %s18 = ssub.s32 %s13, 1
      %s19 = ssub.s32 %s13, 2
      %s20 = sadd.s32 %s13, 1
      %s21 = ssub.s32 %s13, %s20
      %p22 = scmp.eq.s32.totalorder %s21, 0
      %s24 = sadd.s32 %s23, 1
      %s25 = scalar_select %p22, %s23, %s24
      %p28 = pneg %p22
      %p29 = scmp.eq.s32.totalorder %s13, 1
      %p30 = por %p28, %p29
      %p31 = scmp.ne.s32.totalorder %s23, %s26
      %p32 = scmp.eq.s32.totalorder %s13, 0
      %p33 = por %p31, %p32
      %p34 = scmp.ne.s32.totalorder %s23, %s26
      %p35 = scmp.eq.s32.totalorder %s18, 1
      %p36 = por %p34, %p35
      %p37 = scmp.ne.s32.totalorder %s26, %s27
      %p38 = scmp.eq.s32.totalorder %s18, 0
      %p39 = por %p37, %p38
      %p40 = scmp.ne.s32.totalorder %s26, %s27
      %p41 = scmp.eq.s32.totalorder %s19, 1
      %p42 = por %p40, %p41
      %p44 = scmp.ne.s32.totalorder %s27, %s43
      %p45 = scmp.eq.s32.totalorder %s19, 0
      %p46 = por %p44, %p45
      %s47 = ssub.s32 %s13, %s20
      %p48 = scmp.eq.s32.totalorder %s47, 0
      %s50 = sadd.s32 %s49, 1
      %s51 = scalar_select %p48, %s49, %s50
      %p54 = pneg %p48
      %p55 = scmp.eq.s32.totalorder %s13, 1
      %p56 = por %p54, %p55
      %p57 = scmp.ne.s32.totalorder %s49, %s52
      %p58 = scmp.eq.s32.totalorder %s13, 0
      %p59 = por %p57, %p58
      %p60 = scmp.ne.s32.totalorder %s49, %s52
      %p61 = scmp.eq.s32.totalorder %s18, 1
      %p62 = por %p60, %p61
      %p63 = scmp.ne.s32.totalorder %s52, %s53
      %p64 = scmp.eq.s32.totalorder %s18, 0
      %p65 = por %p63, %p64
      %p66 = scmp.ne.s32.totalorder %s52, %s53
      %p67 = scmp.eq.s32.totalorder %s19, 1
      %p68 = por %p66, %p67
      %p70 = scmp.ne.s32.totalorder %s53, %s69
      %p71 = scmp.eq.s32.totalorder %s19, 0
      %p72 = por %p70, %p71
      %s74 = sadd.s32 %s73, 1
      %p77 = scmp.eq.s32.totalorder %s13, 1
      %p78 = scmp.ne.s32.totalorder %s73, %s75
      %p79 = scmp.eq.s32.totalorder %s13, 0
      %p80 = por %p78, %p79
      %p81 = scmp.ne.s32.totalorder %s73, %s75
      %p82 = scmp.eq.s32.totalorder %s18, 1
      %p83 = por %p81, %p82
      %p84 = scmp.ne.s32.totalorder %s75, %s76
      %p85 = scmp.eq.s32.totalorder %s18, 0
      %p86 = por %p84, %p85
      %p87 = scmp.ne.s32.totalorder %s75, %s76
      %p88 = scmp.eq.s32.totalorder %s19, 1
      %p89 = por %p87, %p88
      %p91 = scmp.ne.s32.totalorder %s76, %s90
      %p92 = scmp.eq.s32.totalorder %s19, 0
      %p93 = por %p91, %p92
      %s95 = sadd.s32 %s94, 1
      %p98 = scmp.eq.s32.totalorder %s13, 1
      %p99 = scmp.ne.s32.totalorder %s94, %s96
      %p100 = scmp.eq.s32.totalorder %s13, 0
      %p101 = por %p99, %p100
      %p102 = scmp.ne.s32.totalorder %s94, %s96
      %p103 = scmp.eq.s32.totalorder %s18, 1
      %p104 = por %p102, %p103
      %p105 = scmp.ne.s32.totalorder %s96, %s97
      %p106 = scmp.eq.s32.totalorder %s18, 0
      %p107 = por %p105, %p106
      %p108 = scmp.ne.s32.totalorder %s96, %s97
      %p109 = scmp.eq.s32.totalorder %s19, 1
      %p110 = por %p108, %p109
      %p112 = scmp.ne.s32.totalorder %s97, %s111
      %p113 = scmp.eq.s32.totalorder %s19, 0
      %p114 = por %p112, %p113
      %s115 = ssub.s32 %s13, %s20
      %p116 = scmp.eq.s32.totalorder %s115, 0
      %s118 = sadd.s32 %s117, 1
      %s119 = scalar_select %p116, %s117, %s118
      %p122 = pneg %p116
      %p123 = scmp.eq.s32.totalorder %s13, 1
      %p124 = por %p122, %p123
      %p125 = scmp.ne.s32.totalorder %s117, %s120
      %p126 = scmp.eq.s32.totalorder %s13, 0
      %p127 = por %p125, %p126
      %p128 = scmp.ne.s32.totalorder %s117, %s120
      %p129 = scmp.eq.s32.totalorder %s18, 1
      %p130 = por %p128, %p129
      %p131 = scmp.ne.s32.totalorder %s120, %s121
      %p132 = scmp.eq.s32.totalorder %s18, 0
      %p133 = por %p131, %p132
      %p134 = scmp.ne.s32.totalorder %s120, %s121
      %p135 = scmp.eq.s32.totalorder %s19, 1
      %p136 = por %p134, %p135
      %p138 = scmp.ne.s32.totalorder %s121, %s137
      %p139 = scmp.eq.s32.totalorder %s19, 0
      %p140 = por %p138, %p139
      %p141 = scmp.le.s32.totalorder 1, %s13
      %p142 = scmp.lt.s32.totalorder %s13, 3
      %p143 = pnand %p141, %p142
      %p144 = pneg %p143
      // Predicated region
      $region9: #{attn_edge_conv.5} parent=5 // pred_check
        _
      $region10: #{attn_edge_conv.5} parent=5 // pred_check_branch
        %146 = sbr.rel (%p143) target = $region12
      $region11: #{attn_edge_conv.5} parent=5 // pred_region
        %s147 = ssub.s32 %s13, 1
        // Predicated region
        $region13: #{attn_edge_conv.5} parent=11 // pred_check
          %p148 = pneg %p86
        $region14: #{attn_edge_conv.5} parent=11 // pred_check_branch
          %150 = sbr.rel (%p148) target = $region16
        $region15: #{attn_edge_conv.5} parent=11 // pred_region
          _
        $region16: #{attn_edge_conv.5} parent=11 // pred_fallthru
          _
        // Predicated region
        $region17: #{attn_edge_conv.5} parent=11 // pred_check
          %p151 = pneg %p107
        $region18: #{attn_edge_conv.5} parent=11 // pred_check_branch
          %153 = sbr.rel (%p151) target = $region20
        $region19: #{attn_edge_conv.5} parent=11 // pred_region
          _
        $region20: #{attn_edge_conv.5} parent=11 // pred_fallthru
          _
      $region12: #{attn_edge_conv.5} parent=5 // pred_fallthru
        _
      %p154 = scmp.lt.s32.totalorder %s13, 2
      // Predicated region
      $region21: #{attn_edge_conv.5} parent=5 // pred_check
        %p155 = pneg %p154
      $region22: #{attn_edge_conv.5} parent=5 // pred_check_branch
        %157 = sbr.rel (%p155) target = $region24
      $region23: #{attn_edge_conv.5} parent=5 // pred_region
        // Predicated region
        $region25: #{attn_edge_conv.5} parent=23 // pred_check
          %p158 = pneg %p33
        $region26: #{attn_edge_conv.5} parent=23 // pred_check_branch
          %160 = sbr.rel (%p158) target = $region28
        $region27: #{attn_edge_conv.5} parent=23 // pred_region
          %s161 = sand.u32 %s23, 1
          %s162 = sand.u32 %s23, 1
          %s163 = smul.addr %s162, 128
          %s164 = scalar_lea.vmem [#allocation2], %s163
          %s165 = smul.u32 2, %s13
          %s166 = smul.addr %s165, 8
          %s167 = scalar_lea.vmem %s0, %s166
          // Predicated region
          $region29: #{attn_edge_conv.5} parent=27 // pred_check
            _
          $region30: #{attn_edge_conv.5} parent=27 // pred_check_branch
            %169 = sbr.rel (0) target = $region32
          $region31: #{attn_edge_conv.5} parent=27 // pred_region
            // Predicated region
            $region33: #{attn_edge_conv.5} parent=31 // pred_check
              _
            $region34: #{attn_edge_conv.5} parent=31 // pred_check_branch
              %171 = sbr.rel (0) target = $region36
            $region35: #{attn_edge_conv.5} parent=31 // pred_region
              // Predicated region
              $region48: #{attn_edge_conv.5} parent=35 // pred_check
                _
              $region49: #{attn_edge_conv.5} parent=35 // pred_check_branch
                %217 = sbr.rel (0) target = $region51
              $region50: #{attn_edge_conv.5} parent=35 // pred_region
                loop: start=0, step=1, limit=1
                $region52: #{attn_edge_conv.5} parent=50 // loop_pre_header
                  _
                $region53: #{attn_edge_conv.5} parent=50 // loop_header
                  %s219 = sphi 0, %s223
                  %p220 = scmp.ge.s32.totalorder %s219, 1
                  %s224 = sphi %s167, %s167
                  %s225 = sphi %s164, %s164
                $region54: #{attn_edge_conv.5} parent=50 // loop_header_branch
                  %222 = sbr.rel (%p220) target = $region58
                $region55: #{attn_edge_conv.5} parent=50 // loop_body
                  %v226 = vld [vmem:[%s224] sm:$0xff]
                  %227 = vst [vmem:[%s225] sm:$0xff] %v226
                  %v228 = vld [vmem:[%s224 + $0x8] sm:$0xff]
                  %229 = vst [vmem:[%s225 + $0x8] sm:$0xff] %v228
                  %v230 = vld [vmem:[%s224 + $0x20] sm:$0xff]
                  %231 = vst [vmem:[%s225 + $0x10] sm:$0xff] %v230
                  %v232 = vld [vmem:[%s224 + $0x28] sm:$0xff]
                  %233 = vst [vmem:[%s225 + $0x18] sm:$0xff] %v232
                  %v234 = vld [vmem:[%s224 + $0x40] sm:$0xff]
                  %235 = vst [vmem:[%s225 + $0x20] sm:$0xff] %v234
                  %v236 = vld [vmem:[%s224 + $0x48] sm:$0xff]
                  %237 = vst [vmem:[%s225 + $0x28] sm:$0xff] %v236
                  %v238 = vld [vmem:[%s224 + $0x60] sm:$0xff]
                  %239 = vst [vmem:[%s225 + $0x30] sm:$0xff] %v238
                  %v240 = vld [vmem:[%s224 + $0x68] sm:$0xff]
                  %241 = vst [vmem:[%s225 + $0x38] sm:$0xff] %v240
                  %v242 = vld [vmem:[%s224 + $0x80] sm:$0xff]
                  %243 = vst [vmem:[%s225 + $0x40] sm:$0xff] %v242
                  %v244 = vld [vmem:[%s224 + $0x88] sm:$0xff]
                  %245 = vst [vmem:[%s225 + $0x48] sm:$0xff] %v244
                  %v246 = vld [vmem:[%s224 + $0xa0] sm:$0xff]
                  %247 = vst [vmem:[%s225 + $0x50] sm:$0xff] %v246
                  %v248 = vld [vmem:[%s224 + $0xa8] sm:$0xff]
                  %249 = vst [vmem:[%s225 + $0x58] sm:$0xff] %v248
                  %v250 = vld [vmem:[%s224 + $0xc0] sm:$0xff]
                  %251 = vst [vmem:[%s225 + $0x60] sm:$0xff] %v250
                  %v252 = vld [vmem:[%s224 + $0xc8] sm:$0xff]
                  %253 = vst [vmem:[%s225 + $0x68] sm:$0xff] %v252
                  %v254 = vld [vmem:[%s224 + $0xe0] sm:$0xff]
                  %255 = vst [vmem:[%s225 + $0x70] sm:$0xff] %v254
                  %v256 = vld [vmem:[%s224 + $0xe8] sm:$0xff]
                  %257 = vst [vmem:[%s225 + $0x78] sm:$0xff] %v256
                $region56: #{attn_edge_conv.5} parent=50 // loop_footer
                  %s223 = sadd.s32 1, %s219
                $region57: #{attn_edge_conv.5} parent=50 // loop_footer_branch
                  %218 = sbr.rel target = $region53
                $region58: #{attn_edge_conv.5} parent=50 // loop_exit
                  _
              $region51: #{attn_edge_conv.5} parent=35 // pred_fallthru
                _
              // Predicated region
              $region59: #{attn_edge_conv.5} parent=35 // pred_check
                _
              $region60: #{attn_edge_conv.5} parent=35 // pred_check_branch
                %259 = sbr.rel target = $region62
              $region61: #{attn_edge_conv.5} parent=35 // pred_region
                _
              $region62: #{attn_edge_conv.5} parent=35 // pred_fallthru
                _
            $region36: #{attn_edge_conv.5} parent=31 // pred_fallthru
              _
            // Predicated region
            $region37: #{attn_edge_conv.5} parent=31 // pred_check
              _
            $region38: #{attn_edge_conv.5} parent=31 // pred_check_branch
              %173 = sbr.rel target = $region40
            $region39: #{attn_edge_conv.5} parent=31 // pred_region
              %s175 = ssub.s32 256, 1
              loop: start=0, step=1, limit=1
              $region41: #{attn_edge_conv.5} parent=39 // loop_pre_header
                _
              $region42: #{attn_edge_conv.5} parent=39 // loop_header
                %s177 = sphi 0, %s181
                %p178 = scmp.ge.s32.totalorder %s177, 1
                %s182 = sphi %s167, %s167
                %s183 = sphi %s164, %s164
              $region43: #{attn_edge_conv.5} parent=39 // loop_header_branch
                %180 = sbr.rel (%p178) target = $region47
              $region44: #{attn_edge_conv.5} parent=39 // loop_body
                %v184 = vld [vmem:[%s182] sm:%s175]
                %185 = vst [vmem:[%s183] sm:%s175] %v184
                %v186 = vld [vmem:[%s182 + $0x8] sm:%s175]
                %187 = vst [vmem:[%s183 + $0x8] sm:%s175] %v186
                %v188 = vld [vmem:[%s182 + $0x20] sm:%s175]
                %189 = vst [vmem:[%s183 + $0x10] sm:%s175] %v188
                %v190 = vld [vmem:[%s182 + $0x28] sm:%s175]
                %191 = vst [vmem:[%s183 + $0x18] sm:%s175] %v190
                %v192 = vld [vmem:[%s182 + $0x40] sm:%s175]
                %193 = vst [vmem:[%s183 + $0x20] sm:%s175] %v192
                %v194 = vld [vmem:[%s182 + $0x48] sm:%s175]
                %195 = vst [vmem:[%s183 + $0x28] sm:%s175] %v194
                %v196 = vld [vmem:[%s182 + $0x60] sm:%s175]
                %197 = vst [vmem:[%s183 + $0x30] sm:%s175] %v196
                %v198 = vld [vmem:[%s182 + $0x68] sm:%s175]
                %199 = vst [vmem:[%s183 + $0x38] sm:%s175] %v198
                %v200 = vld [vmem:[%s182 + $0x80] sm:%s175]
                %201 = vst [vmem:[%s183 + $0x40] sm:%s175] %v200
                %v202 = vld [vmem:[%s182 + $0x88] sm:%s175]
                %203 = vst [vmem:[%s183 + $0x48] sm:%s175] %v202
                %v204 = vld [vmem:[%s182 + $0xa0] sm:%s175]
                %205 = vst [vmem:[%s183 + $0x50] sm:%s175] %v204
                %v206 = vld [vmem:[%s182 + $0xa8] sm:%s175]
                %207 = vst [vmem:[%s183 + $0x58] sm:%s175] %v206
                %v208 = vld [vmem:[%s182 + $0xc0] sm:%s175]
                %209 = vst [vmem:[%s183 + $0x60] sm:%s175] %v208
                %v210 = vld [vmem:[%s182 + $0xc8] sm:%s175]
                %211 = vst [vmem:[%s183 + $0x68] sm:%s175] %v210
                %v212 = vld [vmem:[%s182 + $0xe0] sm:%s175]
                %213 = vst [vmem:[%s183 + $0x70] sm:%s175] %v212
                %v214 = vld [vmem:[%s182 + $0xe8] sm:%s175]
                %215 = vst [vmem:[%s183 + $0x78] sm:%s175] %v214
              $region45: #{attn_edge_conv.5} parent=39 // loop_footer
                %s181 = sadd.s32 1, %s177
              $region46: #{attn_edge_conv.5} parent=39 // loop_footer_branch
                %176 = sbr.rel target = $region42
              $region47: #{attn_edge_conv.5} parent=39 // loop_exit
                _
            $region40: #{attn_edge_conv.5} parent=31 // pred_fallthru
              _
          $region32: #{attn_edge_conv.5} parent=27 // pred_fallthru
            _
          %260 = vnop
        $region28: #{attn_edge_conv.5} parent=23 // pred_fallthru
          _
        // Predicated region
        $region63: #{attn_edge_conv.5} parent=23 // pred_check
          %p261 = pneg %p59
        $region64: #{attn_edge_conv.5} parent=23 // pred_check_branch
          %263 = sbr.rel (%p261) target = $region66
        $region65: #{attn_edge_conv.5} parent=23 // pred_region
          %s264 = sand.u32 %s49, 1
          %s265 = sand.u32 %s49, 1
          %s266 = smul.addr %s265, 128
          %s267 = scalar_lea.vmem [#allocation3], %s266
          %s268 = smul.u32 2, %s13
          %s269 = smul.addr %s268, 8
          %s270 = scalar_lea.vmem %s1, %s269
          // Predicated region
          $region67: #{attn_edge_conv.5} parent=65 // pred_check
            _
          $region68: #{attn_edge_conv.5} parent=65 // pred_check_branch
            %272 = sbr.rel (0) target = $region70
          $region69: #{attn_edge_conv.5} parent=65 // pred_region
            // Predicated region
            $region71: #{attn_edge_conv.5} parent=69 // pred_check
              _
            $region72: #{attn_edge_conv.5} parent=69 // pred_check_branch
              %274 = sbr.rel (0) target = $region74
            $region73: #{attn_edge_conv.5} parent=69 // pred_region
              // Predicated region
              $region86: #{attn_edge_conv.5} parent=73 // pred_check
                _
              $region87: #{attn_edge_conv.5} parent=73 // pred_check_branch
                %320 = sbr.rel (0) target = $region89
              $region88: #{attn_edge_conv.5} parent=73 // pred_region
                loop: start=0, step=1, limit=1
                $region90: #{attn_edge_conv.5} parent=88 // loop_pre_header
                  _
                $region91: #{attn_edge_conv.5} parent=88 // loop_header
                  %s322 = sphi 0, %s326
                  %p323 = scmp.ge.s32.totalorder %s322, 1
                  %s327 = sphi %s270, %s270
                  %s328 = sphi %s267, %s267
                $region92: #{attn_edge_conv.5} parent=88 // loop_header_branch
                  %325 = sbr.rel (%p323) target = $region96
                $region93: #{attn_edge_conv.5} parent=88 // loop_body
                  %v329 = vld [vmem:[%s327] sm:$0xff]
                  %330 = vst [vmem:[%s328] sm:$0xff] %v329
                  %v331 = vld [vmem:[%s327 + $0x8] sm:$0xff]
                  %332 = vst [vmem:[%s328 + $0x8] sm:$0xff] %v331
                  %v333 = vld [vmem:[%s327 + $0x20] sm:$0xff]
                  %334 = vst [vmem:[%s328 + $0x10] sm:$0xff] %v333
                  %v335 = vld [vmem:[%s327 + $0x28] sm:$0xff]
                  %336 = vst [vmem:[%s328 + $0x18] sm:$0xff] %v335
                  %v337 = vld [vmem:[%s327 + $0x40] sm:$0xff]
                  %338 = vst [vmem:[%s328 + $0x20] sm:$0xff] %v337
                  %v339 = vld [vmem:[%s327 + $0x48] sm:$0xff]
                  %340 = vst [vmem:[%s328 + $0x28] sm:$0xff] %v339
                  %v341 = vld [vmem:[%s327 + $0x60] sm:$0xff]
                  %342 = vst [vmem:[%s328 + $0x30] sm:$0xff] %v341
                  %v343 = vld [vmem:[%s327 + $0x68] sm:$0xff]
                  %344 = vst [vmem:[%s328 + $0x38] sm:$0xff] %v343
                  %v345 = vld [vmem:[%s327 + $0x80] sm:$0xff]
                  %346 = vst [vmem:[%s328 + $0x40] sm:$0xff] %v345
                  %v347 = vld [vmem:[%s327 + $0x88] sm:$0xff]
                  %348 = vst [vmem:[%s328 + $0x48] sm:$0xff] %v347
                  %v349 = vld [vmem:[%s327 + $0xa0] sm:$0xff]
                  %350 = vst [vmem:[%s328 + $0x50] sm:$0xff] %v349
                  %v351 = vld [vmem:[%s327 + $0xa8] sm:$0xff]
                  %352 = vst [vmem:[%s328 + $0x58] sm:$0xff] %v351
                  %v353 = vld [vmem:[%s327 + $0xc0] sm:$0xff]
                  %354 = vst [vmem:[%s328 + $0x60] sm:$0xff] %v353
                  %v355 = vld [vmem:[%s327 + $0xc8] sm:$0xff]
                  %356 = vst [vmem:[%s328 + $0x68] sm:$0xff] %v355
                  %v357 = vld [vmem:[%s327 + $0xe0] sm:$0xff]
                  %358 = vst [vmem:[%s328 + $0x70] sm:$0xff] %v357
                  %v359 = vld [vmem:[%s327 + $0xe8] sm:$0xff]
                  %360 = vst [vmem:[%s328 + $0x78] sm:$0xff] %v359
                $region94: #{attn_edge_conv.5} parent=88 // loop_footer
                  %s326 = sadd.s32 1, %s322
                $region95: #{attn_edge_conv.5} parent=88 // loop_footer_branch
                  %321 = sbr.rel target = $region91
                $region96: #{attn_edge_conv.5} parent=88 // loop_exit
                  _
              $region89: #{attn_edge_conv.5} parent=73 // pred_fallthru
                _
              // Predicated region
              $region97: #{attn_edge_conv.5} parent=73 // pred_check
                _
              $region98: #{attn_edge_conv.5} parent=73 // pred_check_branch
                %362 = sbr.rel target = $region100
              $region99: #{attn_edge_conv.5} parent=73 // pred_region
                _
              $region100: #{attn_edge_conv.5} parent=73 // pred_fallthru
                _
            $region74: #{attn_edge_conv.5} parent=69 // pred_fallthru
              _
            // Predicated region
            $region75: #{attn_edge_conv.5} parent=69 // pred_check
              _
            $region76: #{attn_edge_conv.5} parent=69 // pred_check_branch
              %276 = sbr.rel target = $region78
            $region77: #{attn_edge_conv.5} parent=69 // pred_region
              %s278 = ssub.s32 256, 1
              loop: start=0, step=1, limit=1
              $region79: #{attn_edge_conv.5} parent=77 // loop_pre_header
                _
              $region80: #{attn_edge_conv.5} parent=77 // loop_header
                %s280 = sphi 0, %s284
                %p281 = scmp.ge.s32.totalorder %s280, 1
                %s285 = sphi %s270, %s270
                %s286 = sphi %s267, %s267
              $region81: #{attn_edge_conv.5} parent=77 // loop_header_branch
                %283 = sbr.rel (%p281) target = $region85
              $region82: #{attn_edge_conv.5} parent=77 // loop_body
                %v287 = vld [vmem:[%s285] sm:%s278]
                %288 = vst [vmem:[%s286] sm:%s278] %v287
                %v289 = vld [vmem:[%s285 + $0x8] sm:%s278]
                %290 = vst [vmem:[%s286 + $0x8] sm:%s278] %v289
                %v291 = vld [vmem:[%s285 + $0x20] sm:%s278]
                %292 = vst [vmem:[%s286 + $0x10] sm:%s278] %v291
                %v293 = vld [vmem:[%s285 + $0x28] sm:%s278]
                %294 = vst [vmem:[%s286 + $0x18] sm:%s278] %v293
                %v295 = vld [vmem:[%s285 + $0x40] sm:%s278]
                %296 = vst [vmem:[%s286 + $0x20] sm:%s278] %v295
                %v297 = vld [vmem:[%s285 + $0x48] sm:%s278]
                %298 = vst [vmem:[%s286 + $0x28] sm:%s278] %v297
                %v299 = vld [vmem:[%s285 + $0x60] sm:%s278]
                %300 = vst [vmem:[%s286 + $0x30] sm:%s278] %v299
                %v301 = vld [vmem:[%s285 + $0x68] sm:%s278]
                %302 = vst [vmem:[%s286 + $0x38] sm:%s278] %v301
                %v303 = vld [vmem:[%s285 + $0x80] sm:%s278]
                %304 = vst [vmem:[%s286 + $0x40] sm:%s278] %v303
                %v305 = vld [vmem:[%s285 + $0x88] sm:%s278]
                %306 = vst [vmem:[%s286 + $0x48] sm:%s278] %v305
                %v307 = vld [vmem:[%s285 + $0xa0] sm:%s278]
                %308 = vst [vmem:[%s286 + $0x50] sm:%s278] %v307
                %v309 = vld [vmem:[%s285 + $0xa8] sm:%s278]
                %310 = vst [vmem:[%s286 + $0x58] sm:%s278] %v309
                %v311 = vld [vmem:[%s285 + $0xc0] sm:%s278]
                %312 = vst [vmem:[%s286 + $0x60] sm:%s278] %v311
                %v313 = vld [vmem:[%s285 + $0xc8] sm:%s278]
                %314 = vst [vmem:[%s286 + $0x68] sm:%s278] %v313
                %v315 = vld [vmem:[%s285 + $0xe0] sm:%s278]
                %316 = vst [vmem:[%s286 + $0x70] sm:%s278] %v315
                %v317 = vld [vmem:[%s285 + $0xe8] sm:%s278]
                %318 = vst [vmem:[%s286 + $0x78] sm:%s278] %v317
              $region83: #{attn_edge_conv.5} parent=77 // loop_footer
                %s284 = sadd.s32 1, %s280
              $region84: #{attn_edge_conv.5} parent=77 // loop_footer_branch
                %279 = sbr.rel target = $region80
              $region85: #{attn_edge_conv.5} parent=77 // loop_exit
                _
            $region78: #{attn_edge_conv.5} parent=69 // pred_fallthru
              _
          $region70: #{attn_edge_conv.5} parent=65 // pred_fallthru
            _
          %363 = vnop
        $region66: #{attn_edge_conv.5} parent=23 // pred_fallthru
          _
      $region24: #{attn_edge_conv.5} parent=5 // pred_fallthru
        _
      %p364 = scmp.le.s32.totalorder 1, %s13
      %p365 = scmp.lt.s32.totalorder %s13, 3
      %p366 = pnand %p364, %p365
      %p367 = pneg %p366
      // Predicated region
      $region101: #{attn_edge_conv.5} parent=5 // pred_check
        _
      $region102: #{attn_edge_conv.5} parent=5 // pred_check_branch
        %369 = sbr.rel (%p366) target = $region104
      $region103: #{attn_edge_conv.5} parent=5 // pred_region
        %s370 = ssub.s32 %s13, 1
        %s371 = sand.u32 %s26, 1
        %s372 = sand.u32 %s26, 1
        %s373 = smul.addr %s372, 128
        %s374 = scalar_lea.vmem [#allocation2], %s373
        // Predicated region
        $region105: #{attn_edge_conv.5} parent=103 // pred_check
          %p375 = pneg %p39
        $region106: #{attn_edge_conv.5} parent=103 // pred_check_branch
          %377 = sbr.rel (%p375) target = $region108
        $region107: #{attn_edge_conv.5} parent=103 // pred_region
          _
        $region108: #{attn_edge_conv.5} parent=103 // pred_fallthru
          _
        %s378 = sand.u32 %s52, 1
        %s379 = sand.u32 %s52, 1
        %s380 = smul.addr %s379, 128
        %s381 = scalar_lea.vmem [#allocation3], %s380
        // Predicated region
        $region109: #{attn_edge_conv.5} parent=103 // pred_check
          %p382 = pneg %p65
        $region110: #{attn_edge_conv.5} parent=103 // pred_check_branch
          %384 = sbr.rel (%p382) target = $region112
        $region111: #{attn_edge_conv.5} parent=103 // pred_region
          _
        $region112: #{attn_edge_conv.5} parent=103 // pred_fallthru
          _
        %s385 = sand.u32 %s26, 1
        %s386 = sand.u32 %s26, 1
        %s387 = smul.addr %s386, 128
        %s388 = scalar_lea.vmem [#allocation2], %s387
        %p389 = pneg %p39
        %p390 = pneg %p36
        %s391 = sand.u32 %s52, 1
        %s392 = sand.u32 %s52, 1
        %s393 = smul.addr %s392, 128
        %s394 = scalar_lea.vmem [#allocation3], %s393
        %p395 = pneg %p65
        %p396 = pneg %p62
        %p397 = pneg %p86
        %p398 = pneg %p83
        %p399 = pneg %p107
        %p400 = pneg %p104
        %p401 = pneg %p133
        %p402 = pneg %p130
        %s403 = sand.u32 %s120, 1
        %s404 = scalar_lea.sflag [#allocation5], %s403
        %s405 = sand.u32 %s120, 1
        %s406 = smul.addr %s405, 16
        %s407 = scalar_lea.vmem [#allocation4], %s406
        %s408 = smul.u32 2, %s18
        %s409 = smul.u32 2, %s18
        %s410 = smul.u32 2, %s18
        %v411 = vld [vmem:[%s2] sm:$0x1]
        %v412 = vld [vmem:[%s3] sm:$0x1]
        %v413 = vld [vmem:[%s374] sm:$0xff]
        %v414 = vld [vmem:[%s374 + $0x8] sm:$0xff]
        %v416 = vlaneseq
        %v417 = vshrl.u32 %v416, 7
        %v418 = vsub.s32 0, %v417
        %v419 = vrot.slane %v411, %v418
        %v421 = vmul.f32 %v413, %v419
        %v422 = vmul.f32 %v414, %v419
        %v424 = vlaneseq
        %v425 = vshrl.u32 %v424, 7
        %v426 = vsub.s32 0, %v425
        %v427 = vrot.slane %v412, %v426
        %v429 = vadd.f32 %v421, %v427
        %v430 = vadd.f32 %v422, %v427
        %v431 = vxor.u32 %v429, 2147483648
        %v432 = vxor.u32 %v430, 2147483648
        %v433 = vmul.f32 %v431, 1.442695
        %v434 = vpow.pop %v433
        %v435 = vmul.f32 %v432, 1.442695
        %v436 = vpow.pop %v435
        %v437 = vadd.f32 %v434, 1.0
        %v438 = vadd.f32 %v436, 1.0
        %v439 = vrcp.pop %v437
        %v440 = vmul.f32 1.0, %v439
        %v441 = vrcp.pop %v438
        %v442 = vmul.f32 1.0, %v441
        %v443 = vmul.f32 %v429, %v440
        %v444 = vmul.f32 %v430, %v442
        %v445 = vld [vmem:[%s381] sm:$0xff]
        %v446 = vld [vmem:[%s381 + $0x8] sm:$0xff]
        %448 = vset.pattern.permute.xlu0 0
        %449 = vperm.xlu0 %448, %v445
        %v450 = vpop.permute.xlu0 %449
        %453 = vset.pattern.permute.xlu0 0
        %454 = vperm.xlu0 %453, %v446
        %v455 = vpop.permute.xlu0 %454
        %v457 = vmul.f32 %v450, %v443
        %v458 = vmul.f32 %v455, %v444
        %v459 = vadd.f32 %v457, 0.0
        %v460 = vadd.f32 %v458, 0.0
        %s461 = scalar_lea.vmem %s374, 16 [#allocation2]
        %v462 = vld [vmem:[%s461] sm:$0xff]
        %v463 = vld [vmem:[%s461 + $0x8] sm:$0xff]
        %v464 = vmul.f32 %v462, %v419
        %v465 = vmul.f32 %v463, %v419
        %v466 = vadd.f32 %v464, %v427
        %v467 = vadd.f32 %v465, %v427
        %v468 = vxor.u32 %v466, 2147483648
        %v469 = vxor.u32 %v467, 2147483648
        %v470 = vmul.f32 %v468, 1.442695
        %v471 = vpow.pop %v470
        %v472 = vmul.f32 %v469, 1.442695
        %v473 = vpow.pop %v472
        %v474 = vadd.f32 %v471, 1.0
        %v475 = vadd.f32 %v473, 1.0
        %v476 = vrcp.pop %v474
        %v477 = vmul.f32 1.0, %v476
        %v478 = vrcp.pop %v475
        %v479 = vmul.f32 1.0, %v478
        %v480 = vmul.f32 %v466, %v477
        %v481 = vmul.f32 %v467, %v479
        %s482 = scalar_lea.vmem %s381, 16 [#allocation3]
        %v483 = vld [vmem:[%s482] sm:$0xff]
        %v484 = vld [vmem:[%s482 + $0x8] sm:$0xff]
        %486 = vset.pattern.permute.xlu0 0
        %487 = vperm.xlu0 %486, %v483
        %v488 = vpop.permute.xlu0 %487
        %491 = vset.pattern.permute.xlu0 0
        %492 = vperm.xlu0 %491, %v484
        %v493 = vpop.permute.xlu0 %492
        %v495 = vmul.f32 %v488, %v480
        %v496 = vmul.f32 %v493, %v481
        %v497 = vadd.f32 %v459, %v495
        %v498 = vadd.f32 %v460, %v496
        %s499 = scalar_lea.vmem %s374, 32 [#allocation2]
        %v500 = vld [vmem:[%s499] sm:$0xff]
        %v501 = vld [vmem:[%s499 + $0x8] sm:$0xff]
        %v502 = vmul.f32 %v500, %v419
        %v503 = vmul.f32 %v501, %v419
        %v504 = vadd.f32 %v502, %v427
        %v505 = vadd.f32 %v503, %v427
        %v506 = vxor.u32 %v504, 2147483648
        %v507 = vxor.u32 %v505, 2147483648
        %v508 = vmul.f32 %v506, 1.442695
        %v509 = vpow.pop %v508
        %v510 = vmul.f32 %v507, 1.442695
        %v511 = vpow.pop %v510
        %v512 = vadd.f32 %v509, 1.0
        %v513 = vadd.f32 %v511, 1.0
        %v514 = vrcp.pop %v512
        %v515 = vmul.f32 1.0, %v514
        %v516 = vrcp.pop %v513
        %v517 = vmul.f32 1.0, %v516
        %v518 = vmul.f32 %v504, %v515
        %v519 = vmul.f32 %v505, %v517
        %s520 = scalar_lea.vmem %s381, 32 [#allocation3]
        %v521 = vld [vmem:[%s520] sm:$0xff]
        %v522 = vld [vmem:[%s520 + $0x8] sm:$0xff]
        %524 = vset.pattern.permute.xlu0 0
        %525 = vperm.xlu0 %524, %v521
        %v526 = vpop.permute.xlu0 %525
        %529 = vset.pattern.permute.xlu0 0
        %530 = vperm.xlu0 %529, %v522
        %v531 = vpop.permute.xlu0 %530
        %v533 = vmul.f32 %v526, %v518
        %v534 = vmul.f32 %v531, %v519
        %v535 = vadd.f32 %v497, %v533
        %v536 = vadd.f32 %v498, %v534
        %s537 = scalar_lea.vmem %s374, 48 [#allocation2]
        %v538 = vld [vmem:[%s537] sm:$0xff]
        %v539 = vld [vmem:[%s537 + $0x8] sm:$0xff]
        %v540 = vmul.f32 %v538, %v419
        %v541 = vmul.f32 %v539, %v419
        %v542 = vadd.f32 %v540, %v427
        %v543 = vadd.f32 %v541, %v427
        %v544 = vxor.u32 %v542, 2147483648
        %v545 = vxor.u32 %v543, 2147483648
        %v546 = vmul.f32 %v544, 1.442695
        %v547 = vpow.pop %v546
        %v548 = vmul.f32 %v545, 1.442695
        %v549 = vpow.pop %v548
        %v550 = vadd.f32 %v547, 1.0
        %v551 = vadd.f32 %v549, 1.0
        %v552 = vrcp.pop %v550
        %v553 = vmul.f32 1.0, %v552
        %v554 = vrcp.pop %v551
        %v555 = vmul.f32 1.0, %v554
        %v556 = vmul.f32 %v542, %v553
        %v557 = vmul.f32 %v543, %v555
        %s558 = scalar_lea.vmem %s381, 48 [#allocation3]
        %v559 = vld [vmem:[%s558] sm:$0xff]
        %v560 = vld [vmem:[%s558 + $0x8] sm:$0xff]
        %562 = vset.pattern.permute.xlu0 0
        %563 = vperm.xlu0 %562, %v559
        %v564 = vpop.permute.xlu0 %563
        %567 = vset.pattern.permute.xlu0 0
        %568 = vperm.xlu0 %567, %v560
        %v569 = vpop.permute.xlu0 %568
        %v571 = vmul.f32 %v564, %v556
        %v572 = vmul.f32 %v569, %v557
        %v573 = vadd.f32 %v535, %v571
        %v574 = vadd.f32 %v536, %v572
        %s575 = scalar_lea.vmem %s374, 64 [#allocation2]
        %v576 = vld [vmem:[%s575] sm:$0xff]
        %v577 = vld [vmem:[%s575 + $0x8] sm:$0xff]
        %v578 = vmul.f32 %v576, %v419
        %v579 = vmul.f32 %v577, %v419
        %v580 = vadd.f32 %v578, %v427
        %v581 = vadd.f32 %v579, %v427
        %v582 = vxor.u32 %v580, 2147483648
        %v583 = vxor.u32 %v581, 2147483648
        %v584 = vmul.f32 %v582, 1.442695
        %v585 = vpow.pop %v584
        %v586 = vmul.f32 %v583, 1.442695
        %v587 = vpow.pop %v586
        %v588 = vadd.f32 %v585, 1.0
        %v589 = vadd.f32 %v587, 1.0
        %v590 = vrcp.pop %v588
        %v591 = vmul.f32 1.0, %v590
        %v592 = vrcp.pop %v589
        %v593 = vmul.f32 1.0, %v592
        %v594 = vmul.f32 %v580, %v591
        %v595 = vmul.f32 %v581, %v593
        %s596 = scalar_lea.vmem %s381, 64 [#allocation3]
        %v597 = vld [vmem:[%s596] sm:$0xff]
        %v598 = vld [vmem:[%s596 + $0x8] sm:$0xff]
        %600 = vset.pattern.permute.xlu0 0
        %601 = vperm.xlu0 %600, %v597
        %v602 = vpop.permute.xlu0 %601
        %605 = vset.pattern.permute.xlu0 0
        %606 = vperm.xlu0 %605, %v598
        %v607 = vpop.permute.xlu0 %606
        %v609 = vmul.f32 %v602, %v594
        %v610 = vmul.f32 %v607, %v595
        %v611 = vadd.f32 %v573, %v609
        %v612 = vadd.f32 %v574, %v610
        %s613 = scalar_lea.vmem %s374, 80 [#allocation2]
        %v614 = vld [vmem:[%s613] sm:$0xff]
        %v615 = vld [vmem:[%s613 + $0x8] sm:$0xff]
        %v616 = vmul.f32 %v614, %v419
        %v617 = vmul.f32 %v615, %v419
        %v618 = vadd.f32 %v616, %v427
        %v619 = vadd.f32 %v617, %v427
        %v620 = vxor.u32 %v618, 2147483648
        %v621 = vxor.u32 %v619, 2147483648
        %v622 = vmul.f32 %v620, 1.442695
        %v623 = vpow.pop %v622
        %v624 = vmul.f32 %v621, 1.442695
        %v625 = vpow.pop %v624
        %v626 = vadd.f32 %v623, 1.0
        %v627 = vadd.f32 %v625, 1.0
        %v628 = vrcp.pop %v626
        %v629 = vmul.f32 1.0, %v628
        %v630 = vrcp.pop %v627
        %v631 = vmul.f32 1.0, %v630
        %v632 = vmul.f32 %v618, %v629
        %v633 = vmul.f32 %v619, %v631
        %s634 = scalar_lea.vmem %s381, 80 [#allocation3]
        %v635 = vld [vmem:[%s634] sm:$0xff]
        %v636 = vld [vmem:[%s634 + $0x8] sm:$0xff]
        %638 = vset.pattern.permute.xlu0 0
        %639 = vperm.xlu0 %638, %v635
        %v640 = vpop.permute.xlu0 %639
        %643 = vset.pattern.permute.xlu0 0
        %644 = vperm.xlu0 %643, %v636
        %v645 = vpop.permute.xlu0 %644
        %v647 = vmul.f32 %v640, %v632
        %v648 = vmul.f32 %v645, %v633
        %v649 = vadd.f32 %v611, %v647
        %v650 = vadd.f32 %v612, %v648
        %s651 = scalar_lea.vmem %s374, 96 [#allocation2]
        %v652 = vld [vmem:[%s651] sm:$0xff]
        %v653 = vld [vmem:[%s651 + $0x8] sm:$0xff]
        %v654 = vmul.f32 %v652, %v419
        %v655 = vmul.f32 %v653, %v419
        %v656 = vadd.f32 %v654, %v427
        %v657 = vadd.f32 %v655, %v427
        %v658 = vxor.u32 %v656, 2147483648
        %v659 = vxor.u32 %v657, 2147483648
        %v660 = vmul.f32 %v658, 1.442695
        %v661 = vpow.pop %v660
        %v662 = vmul.f32 %v659, 1.442695
        %v663 = vpow.pop %v662
        %v664 = vadd.f32 %v661, 1.0
        %v665 = vadd.f32 %v663, 1.0
        %v666 = vrcp.pop %v664
        %v667 = vmul.f32 1.0, %v666
        %v668 = vrcp.pop %v665
        %v669 = vmul.f32 1.0, %v668
        %v670 = vmul.f32 %v656, %v667
        %v671 = vmul.f32 %v657, %v669
        %s672 = scalar_lea.vmem %s381, 96 [#allocation3]
        %v673 = vld [vmem:[%s672] sm:$0xff]
        %v674 = vld [vmem:[%s672 + $0x8] sm:$0xff]
        %676 = vset.pattern.permute.xlu0 0
        %677 = vperm.xlu0 %676, %v673
        %v678 = vpop.permute.xlu0 %677
        %681 = vset.pattern.permute.xlu0 0
        %682 = vperm.xlu0 %681, %v674
        %v683 = vpop.permute.xlu0 %682
        %v685 = vmul.f32 %v678, %v670
        %v686 = vmul.f32 %v683, %v671
        %v687 = vadd.f32 %v649, %v685
        %v688 = vadd.f32 %v650, %v686
        %s689 = scalar_lea.vmem %s374, 112 [#allocation2]
        %v690 = vld [vmem:[%s689] sm:$0xff]
        %v691 = vld [vmem:[%s689 + $0x8] sm:$0xff]
        %v692 = vmul.f32 %v690, %v419
        %v693 = vmul.f32 %v691, %v419
        %v694 = vadd.f32 %v692, %v427
        %v695 = vadd.f32 %v693, %v427
        %v696 = vxor.u32 %v694, 2147483648
        %v697 = vxor.u32 %v695, 2147483648
        %v698 = vmul.f32 %v696, 1.442695
        %v699 = vpow.pop %v698
        %v700 = vmul.f32 %v697, 1.442695
        %v701 = vpow.pop %v700
        %v702 = vadd.f32 %v699, 1.0
        %v703 = vadd.f32 %v701, 1.0
        %v704 = vrcp.pop %v702
        %v705 = vmul.f32 1.0, %v704
        %v706 = vrcp.pop %v703
        %v707 = vmul.f32 1.0, %v706
        %v708 = vmul.f32 %v694, %v705
        %v709 = vmul.f32 %v695, %v707
        %s710 = scalar_lea.vmem %s381, 112 [#allocation3]
        %v711 = vld [vmem:[%s710] sm:$0xff]
        %v712 = vld [vmem:[%s710 + $0x8] sm:$0xff]
        %714 = vset.pattern.permute.xlu0 0
        %715 = vperm.xlu0 %714, %v711
        %v716 = vpop.permute.xlu0 %715
        %719 = vset.pattern.permute.xlu0 0
        %720 = vperm.xlu0 %719, %v712
        %v721 = vpop.permute.xlu0 %720
        %v723 = vmul.f32 %v716, %v708
        %v724 = vmul.f32 %v721, %v709
        %v725 = vadd.f32 %v687, %v723
        %v726 = vadd.f32 %v688, %v724
        %vm727 = vcmask 261120
        %728 = vst.msk [vmem:[%s407] sm:$0xff] %vm727, %v725
        %729 = vst.msk [vmem:[%s407 + $0x8] sm:$0xff] %vm727, %v726
        %s730 = sand.u32 %s120, 1
        %s731 = scalar_lea.sflag [#allocation5], %s730
        %s732 = sand.u32 %s120, 1
        %s733 = smul.addr %s732, 16
        %s734 = scalar_lea.vmem [#allocation4], %s733
        // Predicated region
        $region113: #{attn_edge_conv.5} parent=103 // pred_check
          %p735 = pneg %p130
        $region114: #{attn_edge_conv.5} parent=103 // pred_check_branch
          %737 = sbr.rel (%p735) target = $region116
        $region115: #{attn_edge_conv.5} parent=103 // pred_region
          %s738 = smul.u32 2, %s18
          %s740 = ssub.s32 256, 256
          %741 = vsyncadd %s731, %s740
          %s742 = smul.addr %s738, 128
          %s743 = scalar_lea.hbm %s4, %s742
          %s744 = sshll.u32 %s734, 4
          %s745 = int_to_ptr.vmem [resolvable:$true] %s744
          %750 = dma.vmem_to_hbm [thread:$0]  %s745, 256, %s743, %s731, 128, 128, 8
        $region116: #{attn_edge_conv.5} parent=103 // pred_fallthru
          _
      $region104: #{attn_edge_conv.5} parent=5 // pred_fallthru
        _
      %p751 = scmp.le.s32.totalorder 2, %s13
      // Predicated region
      $region117: #{attn_edge_conv.5} parent=5 // pred_check
        %p752 = pneg %p751
      $region118: #{attn_edge_conv.5} parent=5 // pred_check_branch
        %754 = sbr.rel (%p752) target = $region120
      $region119: #{attn_edge_conv.5} parent=5 // pred_region
        %s755 = ssub.s32 %s13, 2
        // Predicated region
        $region121: #{attn_edge_conv.5} parent=119 // pred_check
          %p756 = pneg %p136
        $region122: #{attn_edge_conv.5} parent=119 // pred_check_branch
          %758 = sbr.rel (%p756) target = $region124
        $region123: #{attn_edge_conv.5} parent=119 // pred_region
          %s759 = sand.u32 %s121, 1
          %s760 = scalar_lea.sflag [#allocation5], %s759
          %s761 = sand.u32 %s121, 1
          %s762 = smul.addr %s761, 16
          %s763 = scalar_lea.vmem [#allocation4], %s762
          %764 = dma.done %s760, 256
        $region124: #{attn_edge_conv.5} parent=119 // pred_fallthru
          _
      $region120: #{attn_edge_conv.5} parent=5 // pred_fallthru
        _
    $region6: #{attn_edge_conv.5} parent=1 // loop_footer
      %s17 = sadd.s32 1, %s13
    $region7: #{attn_edge_conv.5} parent=1 // loop_footer_branch
      %12 = sbr.rel target = $region3
    $region8: #{attn_edge_conv.5} parent=1 // loop_exit
      _
    %765 = vsyncpa [#allocation5], 1
    %s766 = scalar_lea.sflag [#allocation5], 1
    %767 = vsyncpa %s766, 1

</llo_original>
